<compile_context>
chip_gen: v6e
topology: v6e:2x2x1
jax: 0.10.0
libtpu: 0.0.40
codegen_flags: <defaults>
</compile_context>

<pallas_src>
import functools

import jax
import jax.numpy as jnp
from jax.experimental import pallas as pl
from jax.experimental.pallas import tpu as pltpu


# ---------------------------------------------------------------------------
# Pallas kernel: one grid step == block_b batch elements.
# ---------------------------------------------------------------------------
def _cross_attention_kernel(x_ref, wq_ref, wkv_ref, wp_ref, bp_ref, o_ref,
                            *, num_heads):
    xb = x_ref[...]                                    # (Bt, N, C) bf16
    Bt, N, C = xb.shape
    H = num_heads
    dh = C // H

    # ---- q from token 0 of each sample (1/sqrt(dh) pre-folded into wq) ------
    q = jnp.dot(xb[:, 0, :], wq_ref[...],
                preferred_element_type=jnp.float32)                  # (Bt, C) f32

    # ---- fused k/v projection: one big MXU matmul over all Bt*N rows --------
    # Cast to bf16 right away: halves the largest in-kernel temporary.
    kv = jnp.dot(xb.reshape(Bt * N, C), wkv_ref[...],
                 preferred_element_type=jnp.float32).astype(jnp.bfloat16)
    k = kv[:, :C].reshape(Bt, N, C)                                  # (Bt, N, C) bf16
    v = kv[:, C:].reshape(Bt, N, C)                                  # (Bt, N, C) bf16

    # ---- per-head channel mask (H, C): 1 where channel c belongs to head h --
    h_ids = jax.lax.broadcasted_iota(jnp.int32, (H, C), 0)
    c_ids = jax.lax.broadcasted_iota(jnp.int32, (H, C), 1)
    lo = h_ids * dh
    head_maskf = jnp.logical_and(c_ids >= lo, c_ids < lo + dh).astype(jnp.float32)

    # ---- block-diagonal expanded q: zero outside each head's channel block --
    q_bd = (q[:, None, :] * head_maskf[None, :, :]).astype(jnp.bfloat16)  # (Bt, H, C)

    # ---- scores for all heads with one batched contraction over C -----------
    s = jnp.einsum("bhc,bnc->bhn", q_bd, k,
                   preferred_element_type=jnp.float32)               # (Bt, H, N)

    # ---- softmax over keys (f32, max-subtracted, EUP reciprocal) ------------
    s = s - jnp.max(s, axis=-1, keepdims=True)
    p = jnp.exp(s)
    denom = jnp.sum(p, axis=-1, keepdims=True)
    p = p * pl.reciprocal(denom, approx=True)                        # (Bt, H, N)

    # ---- one batched P @ V for all heads, keep each head's own block --------
    pv = jnp.einsum("bhn,bnc->bhc", p.astype(jnp.bfloat16), v,
                    preferred_element_type=jnp.float32)              # (Bt, H, C)
    attn_out = jnp.sum(pv * head_maskf[None, :, :], axis=1)          # (Bt, C) f32

    # ---- output projection (+ bias) ------------------------------------------
    out = jnp.dot(attn_out.astype(jnp.bfloat16), wp_ref[...],
                  preferred_element_type=jnp.float32) + bp_ref[...]  # (Bt, C)

    o_ref[...] = out.astype(o_ref.dtype)                             # lane-dense 2-D store


# ---------------------------------------------------------------------------
# One-time weight preparation (do this once per model, not per forward call).
# ---------------------------------------------------------------------------
def prepare_params(params, num_heads):
    C = params["wq"].shape[0]
    dh = C // num_heads
    scale = dh ** -0.5
    return {
        "wq": (params["wq"] * scale).astype(jnp.bfloat16),   # scale folded in
        "wkv": jnp.concatenate([params["wk"], params["wv"]], axis=1).astype(jnp.bfloat16),
        "wp": params["wp"].astype(jnp.bfloat16),
        "bp": params["bp"].reshape(1, -1).astype(jnp.float32),
    }


# ---------------------------------------------------------------------------
# Generation-aware hardware knobs.
# ---------------------------------------------------------------------------
def _vmem_limit_bytes():
    try:
        cap = int(pltpu.get_tpu_info().vmem_capacity_bytes)
    except Exception:
        cap = 64 * 1024 * 1024       # conservative: safe on v7x too
    return (cap * 3) // 4            # leave ~25% headroom below physical VMEM


def _num_tensorcores():
    try:
        kind = jax.devices()[0].device_kind.lower()
    except Exception:
        return 1
    # v3/v4 megacore and v7x have 2 TensorCores per chip; v5e/v6e have 1.
    return 2 if any(t in kind for t in ("v3", "v4", "v7")) else 1


def _pick_block_b(B, N, C, num_heads, vmem_limit, n_cores):
    divisors = [d for d in range(1, B + 1) if B % d == 0]

    def step_bytes(bb):
        x_tile = 2 * bb * N * C * 2                 # bf16 x, double-buffered
        kv_f32 = bb * N * 2 * C * 4                 # f32 kv result before cast
        kv_b16 = bb * N * 2 * C * 2                 # bf16 kv / k / v
        attn = bb * num_heads * (N + 2 * C) * 4     # scores + q_bd + pv (f32-ish)
        weights = 4 * C * C * 2 + C * 4             # bf16 wq|wkv|wp + f32 bias
        return x_tile + kv_f32 + kv_b16 + attn + weights

    fitting = [d for d in divisors if step_bytes(d) <= 0.6 * vmem_limit] or [1]
    bb = fitting[-1]                                # largest divisor that fits
    if n_cores > 1:
        # keep >= n_cores grid steps so every TensorCore gets work
        while bb > 1 and B // bb < n_cores:
            bb = max(d for d in divisors if d < bb)
    return bb


# ---------------------------------------------------------------------------
# Wrapper: tiles the batch dimension; weights are grid-invariant full blocks.
# ---------------------------------------------------------------------------
def cross_attention(x, params, num_heads, *, block_b=None):
    B, N, C = x.shape
    assert C % num_heads == 0

    # Accept raw {wq, wk, wv, wp, bp} params too (prepare once here if needed).
    if "wkv" not in params:
        params = prepare_params(params, num_heads)
    wq, wkv, wp, bp = params["wq"], params["wkv"], params["wp"], params["bp"]

    vmem_limit = _vmem_limit_bytes()
    n_cores = _num_tensorcores()

    if block_b is None:
        block_b = _pick_block_b(B, N, C, num_heads, vmem_limit, n_cores)
    assert B % block_b == 0, (B, block_b)

    out_dtype = x.dtype
    xb = x if x.dtype == jnp.bfloat16 else x.astype(jnp.bfloat16)   # stream x as bf16

    kern = functools.partial(_cross_attention_kernel, num_heads=num_heads)

    def _call(single_buffer_weights):
        def const(shape):   # grid-invariant full-array block (index never changes)
            idx = lambda i: (0,) * len(shape)
            if single_buffer_weights:
                # weights are DMA'd once; no need for a second pipeline buffer
                return pl.BlockSpec(shape, idx, pipeline_mode=pl.Buffered(1))
            return pl.BlockSpec(shape, idx)

        in_specs = [
            pl.BlockSpec((block_b, N, C), lambda i: (i, 0, 0)),   # x tile (bf16)
            const((C, C)),                                        # wq (scale folded)
            const((C, 2 * C)),                                    # fused wk|wv
            const((C, C)),                                        # proj weight
            const((1, C)),                                        # proj bias
        ]
        out_spec = pl.BlockSpec((block_b, C), lambda i: (i, 0))   # 2-D lane-dense out

        return pl.pallas_call(
            kern,
            out_shape=jax.ShapeDtypeStruct((B, C), out_dtype),
            grid_spec=pltpu.PrefetchScalarGridSpec(
                num_scalar_prefetch=0,
                grid=(B // block_b,),
                in_specs=in_specs,
                out_specs=out_spec,
            ),
            compiler_params=pltpu.CompilerParams(
                dimension_semantics=("parallel",),
                vmem_limit_bytes=vmem_limit,
            ),
        )(xb, wq, wkv, wp, bp)

    try:
        out2d = _call(True)
    except Exception:
        # pipeline_mode=pl.Buffered(1) unsupported in this jax build -> default buffering
        out2d = _call(False)

    return out2d.reshape(B, 1, C)


# ---------------------------------------------------------------------------
# Pure-JAX f32 reference mirroring the PyTorch forward, for a correctness check.
# ---------------------------------------------------------------------------
def reference(x, params, num_heads):
    B, N, C = x.shape
    dh = C // num_heads
    scale = dh ** -0.5
    q = (x[:, 0:1] @ params["wq"]).reshape(B, 1, num_heads, dh).transpose(0, 2, 1, 3)
    k = (x @ params["wk"]).reshape(B, N, num_heads, dh).transpose(0, 2, 1, 3)
    v = (x @ params["wv"]).reshape(B, N, num_heads, dh).transpose(0, 2, 1, 3)
    attn = jax.nn.softmax((q @ jnp.swapaxes(k, -2, -1)) * scale, axis=-1)
    out = (attn @ v).transpose(0, 2, 1, 3).reshape(B, 1, C)
    return out @ params["wp"] + params["bp"]


if __name__ == "__main__":
    B, N, C = 8, 8, 128          # small, but C lane-aligned for dense stores
    num_heads = 8                # head_dim = 16

    key = jax.random.PRNGKey(0)
    ks = jax.random.split(key, 6)
    f32 = jnp.float32

    params = {
        "wq": 0.02 * jax.random.normal(ks[0], (C, C), f32),
        "wk": 0.02 * jax.random.normal(ks[1], (C, C), f32),
        "wv": 0.02 * jax.random.normal(ks[2], (C, C), f32),
        "wp": 0.02 * jax.random.normal(ks[3], (C, C), f32),
        "bp": 0.02 * jax.random.normal(ks[4], (1, C), f32),
    }
    x = jax.random.normal(ks[5], (B, N, C), f32)

    prepared = prepare_params(params, num_heads)   # one-time fuse/cast (model state)
    out = cross_attention(x, prepared, num_heads)  # block_b chosen generation-aware
    out = jax.block_until_ready(out)

    ref = reference(x, params, num_heads)
    err = float(jnp.max(jnp.abs(out - ref)))
    assert out.shape == (B, 1, C), out.shape
    # bf16 matmul operands with f32 accumulation + approx reciprocal -> loosened tol.
    assert err < 5e-3, f"max abs error {err}"

    print("KERNEL_OK")
</pallas_src>

<mosaic_0001>
module attributes {stable_mosaic.version = 11 : i64} {
  func.func @_cross_attention_kernel(%arg0: i32, %arg1: memref<8x8x128xbf16, #tpu.memory_space<vmem>>, %arg2: memref<128x128xbf16, #tpu.memory_space<vmem>>, %arg3: memref<128x256xbf16, #tpu.memory_space<vmem>>, %arg4: memref<128x128xbf16, #tpu.memory_space<vmem>>, %arg5: memref<1x128xf32, #tpu.memory_space<vmem>>, %arg6: memref<8x128xf32, #tpu.memory_space<vmem>>) attributes {dimension_semantics = [#tpu.dimension_semantics<parallel>], iteration_bounds = array<i64: 1>, scalar_prefetch = 0 : i64, scratch_operands = 0 : i64, tpu.core_type = #tpu.core_type<tc>, window_params = [{transform_indices = @transform_0, window_bounds = array<i64: 8, 8, 128>}, {pipeline_mode = #tpu.pipeline_mode<synchronous>, transform_indices = @transform_1, window_bounds = array<i64: 128, 128>}, {pipeline_mode = #tpu.pipeline_mode<synchronous>, transform_indices = @transform_2, window_bounds = array<i64: 128, 256>}, {pipeline_mode = #tpu.pipeline_mode<synchronous>, transform_indices = @transform_3, window_bounds = array<i64: 128, 128>}, {pipeline_mode = #tpu.pipeline_mode<synchronous>, transform_indices = @transform_4, window_bounds = array<i64: 1, 128>}, {transform_indices = @transform_5, window_bounds = array<i64: 8, 128>}]} {
    %c0 = arith.constant 0 : index
    %c0_0 = arith.constant 0 : index
    %c0_1 = arith.constant 0 : index
    %0 = vector.load %arg1[%c0, %c0_0, %c0_1] : memref<8x8x128xbf16, #tpu.memory_space<vmem>>, vector<8x8x128xbf16>
    %1 = vector.extract_strided_slice %0 {offsets = [0, 0, 0], sizes = [8, 1, 128], strides = [1, 1, 1]} : vector<8x8x128xbf16> to vector<8x1x128xbf16>
    %2 = vector.shape_cast %1 : vector<8x1x128xbf16> to vector<8x128xbf16>
    %c0_2 = arith.constant 0 : index
    %c0_3 = arith.constant 0 : index
    %3 = vector.load %arg2[%c0_2, %c0_3] : memref<128x128xbf16, #tpu.memory_space<vmem>>, vector<128x128xbf16>
    %cst = arith.constant dense<0.000000e+00> : vector<8x128xf32>
    %4 = tpu.matmul %2, %3, %cst {dimension_numbers = #tpu.dot_dimension_numbers<[1], [0], [0], [1], [0, 0, 1, 1], [], []>} : vector<8x128xbf16>, vector<128x128xbf16>, vector<8x128xf32> -> vector<8x128xf32>
    %5 = vector.shape_cast %0 : vector<8x8x128xbf16> to vector<64x128xbf16>
    %c0_4 = arith.constant 0 : index
    %c0_5 = arith.constant 0 : index
    %6 = vector.load %arg3[%c0_4, %c0_5] : memref<128x256xbf16, #tpu.memory_space<vmem>>, vector<128x256xbf16>
    %cst_6 = arith.constant dense<0.000000e+00> : vector<64x256xf32>
    %7 = tpu.matmul %5, %6, %cst_6 {dimension_numbers = #tpu.dot_dimension_numbers<[1], [0], [0], [1], [0, 0, 1, 1], [], []>} : vector<64x128xbf16>, vector<128x256xbf16>, vector<64x256xf32> -> vector<64x256xf32>
    %8 = arith.truncf %7 : vector<64x256xf32> to vector<64x256xbf16>
    %9 = vector.extract_strided_slice %8 {offsets = [0, 0], sizes = [64, 128], strides = [1, 1]} : vector<64x256xbf16> to vector<64x128xbf16>
    %10 = vector.shape_cast %9 : vector<64x128xbf16> to vector<8x8x128xbf16>
    %11 = vector.extract_strided_slice %8 {offsets = [0, 128], sizes = [64, 128], strides = [1, 1]} : vector<64x256xbf16> to vector<64x128xbf16>
    %12 = vector.shape_cast %11 : vector<64x128xbf16> to vector<8x8x128xbf16>
    %13 = tpu.iota {dimensions = array<i32: 0>} : vector<8x128xi32>
    %14 = tpu.iota {dimensions = array<i32: 1>} : vector<8x128xi32>
    %c16_i32 = arith.constant 16 : i32
    %15 = vector.broadcast %c16_i32 : i32 to vector<8x128xi32>
    %16 = arith.muli %13, %15 : vector<8x128xi32>
    %17 = arith.cmpi sge, %14, %16 : vector<8x128xi32>
    %c16_i32_7 = arith.constant 16 : i32
    %18 = vector.broadcast %c16_i32_7 : i32 to vector<8x128xi32>
    %19 = arith.addi %16, %18 : vector<8x128xi32>
    %20 = arith.cmpi slt, %14, %19 : vector<8x128xi32>
    %21 = arith.andi %17, %20 : vector<8x128xi1>
    %22 = arith.extui %21 : vector<8x128xi1> to vector<8x128xi32>
    %23 = arith.sitofp %22 : vector<8x128xi32> to vector<8x128xf32>
    %24 = vector.shape_cast %4 : vector<8x128xf32> to vector<8x1x128xf32>
    %25 = vector.shape_cast %23 : vector<8x128xf32> to vector<1x8x128xf32>
    %26 = vector.broadcast %24 : vector<8x1x128xf32> to vector<8x8x128xf32>
    %27 = vector.broadcast %25 : vector<1x8x128xf32> to vector<8x8x128xf32>
    %28 = arith.mulf %26, %27 : vector<8x8x128xf32>
    %29 = arith.truncf %28 : vector<8x8x128xf32> to vector<8x8x128xbf16>
    "tpu.trace_start"() <{level = 10 : i32, message = "bhc,bnc->bhn"}> : () -> ()
    %cst_8 = arith.constant dense<0.000000e+00> : vector<8x8x8xf32>
    %30 = tpu.matmul %29, %10, %cst_8 {dimension_numbers = #tpu.dot_dimension_numbers<[2], [2], [1], [1], [0, 0, 0, 1, 1, 1], [0], [0]>} : vector<8x8x128xbf16>, vector<8x8x128xbf16>, vector<8x8x8xf32> -> vector<8x8x8xf32>
    "tpu.trace_stop"() : () -> ()
    %cst_9 = arith.constant dense<0xFF800000> : vector<8x8xf32>
    %31 = vector.multi_reduction <maximumf>, %30, %cst_9 [2] : vector<8x8x8xf32> to vector<8x8xf32>
    %32 = vector.shape_cast %31 : vector<8x8xf32> to vector<8x8x1xf32>
    %33 = vector.broadcast %32 : vector<8x8x1xf32> to vector<8x8x8xf32>
    %34 = arith.subf %30, %33 : vector<8x8x8xf32>
    %35 = math.exp %34 : vector<8x8x8xf32>
    %cst_10 = arith.constant dense<0.000000e+00> : vector<8x8xf32>
    %36 = vector.multi_reduction <add>, %35, %cst_10 [2] : vector<8x8x8xf32> to vector<8x8xf32>
    %37 = vector.shape_cast %36 : vector<8x8xf32> to vector<8x8x1xf32>
    %38 = tpu.reciprocal %37 {approx = true} : vector<8x8x1xf32> -> vector<8x8x1xf32>
    %39 = vector.broadcast %38 : vector<8x8x1xf32> to vector<8x8x8xf32>
    %40 = arith.mulf %35, %39 : vector<8x8x8xf32>
    %41 = arith.truncf %40 : vector<8x8x8xf32> to vector<8x8x8xbf16>
    "tpu.trace_start"() <{level = 10 : i32, message = "bhn,bnc->bhc"}> : () -> ()
    %cst_11 = arith.constant dense<0.000000e+00> : vector<8x8x128xf32>
    %42 = tpu.matmul %41, %12, %cst_11 {dimension_numbers = #tpu.dot_dimension_numbers<[2], [1], [1], [2], [0, 0, 0, 1, 1, 2], [0], [0]>} : vector<8x8x8xbf16>, vector<8x8x128xbf16>, vector<8x8x128xf32> -> vector<8x8x128xf32>
    "tpu.trace_stop"() : () -> ()
    %43 = vector.shape_cast %23 : vector<8x128xf32> to vector<1x8x128xf32>
    %44 = vector.broadcast %43 : vector<1x8x128xf32> to vector<8x8x128xf32>
    %45 = arith.mulf %42, %44 : vector<8x8x128xf32>
    %cst_12 = arith.constant dense<0.000000e+00> : vector<8x128xf32>
    %46 = vector.multi_reduction <add>, %45, %cst_12 [1] : vector<8x8x128xf32> to vector<8x128xf32>
    %47 = arith.truncf %46 : vector<8x128xf32> to vector<8x128xbf16>
    %c0_13 = arith.constant 0 : index
    %c0_14 = arith.constant 0 : index
    %48 = vector.load %arg4[%c0_13, %c0_14] : memref<128x128xbf16, #tpu.memory_space<vmem>>, vector<128x128xbf16>
    %cst_15 = arith.constant dense<0.000000e+00> : vector<8x128xf32>
    %49 = tpu.matmul %47, %48, %cst_15 {dimension_numbers = #tpu.dot_dimension_numbers<[1], [0], [0], [1], [0, 0, 1, 1], [], []>} : vector<8x128xbf16>, vector<128x128xbf16>, vector<8x128xf32> -> vector<8x128xf32>
    %c0_16 = arith.constant 0 : index
    %c0_17 = arith.constant 0 : index
    %50 = vector.load %arg5[%c0_16, %c0_17] : memref<1x128xf32, #tpu.memory_space<vmem>>, vector<1x128xf32>
    %51 = vector.broadcast %50 : vector<1x128xf32> to vector<8x128xf32>
    %52 = arith.addf %49, %51 : vector<8x128xf32>
    %c0_18 = arith.constant 0 : index
    %c0_19 = arith.constant 0 : index
    %53 = vector.load %arg6[%c0_18, %c0_19] : memref<8x128xf32, #tpu.memory_space<vmem>>, vector<8x128xf32>
    tpu.vector_store %arg6[%c0_18, %c0_19], %52 {strides = array<i32>} : memref<8x128xf32, #tpu.memory_space<vmem>>, vector<8x128xf32>,
    return
  }
  func.func @transform_0(%arg0: i32) -> (i32, i32, i32) {
    %c0_i32 = arith.constant 0 : i32
    %c0_i32_0 = arith.constant 0 : i32
    %c0_i32_1 = arith.constant 0 : i32
    return %arg0, %c0_i32, %c0_i32_0 : i32, i32, i32
  }
  func.func @transform_1(%arg0: i32) -> (i32, i32) {
    %c0_i32 = arith.constant 0 : i32
    %c0_i32_0 = arith.constant 0 : i32
    %c0_i32_1 = arith.constant 0 : i32
    return %c0_i32, %c0_i32_0 : i32, i32
  }
  func.func @transform_2(%arg0: i32) -> (i32, i32) {
    %c0_i32 = arith.constant 0 : i32
    %c0_i32_0 = arith.constant 0 : i32
    %c0_i32_1 = arith.constant 0 : i32
    return %c0_i32, %c0_i32_0 : i32, i32
  }
  func.func @transform_3(%arg0: i32) -> (i32, i32) {
    %c0_i32 = arith.constant 0 : i32
    %c0_i32_0 = arith.constant 0 : i32
    %c0_i32_1 = arith.constant 0 : i32
    return %c0_i32, %c0_i32_0 : i32, i32
  }
  func.func @transform_4(%arg0: i32) -> (i32, i32) {
    %c0_i32 = arith.constant 0 : i32
    %c0_i32_0 = arith.constant 0 : i32
    %c0_i32_1 = arith.constant 0 : i32
    return %c0_i32, %c0_i32_0 : i32, i32
  }
  func.func @transform_5(%arg0: i32) -> (i32, i32) {
    %c0_i32 = arith.constant 0 : i32
    %c0_i32_0 = arith.constant 0 : i32
    return %arg0, %c0_i32 : i32, i32
  }
}

module attributes {stable_mosaic.version = 11 : i64} {
  func.func @_cross_attention_kernel(%arg0: i32, %arg1: memref<8x8x128xbf16, #tpu.memory_space<vmem>>, %arg2: memref<128x128xbf16, #tpu.memory_space<vmem>>, %arg3: memref<128x256xbf16, #tpu.memory_space<vmem>>, %arg4: memref<128x128xbf16, #tpu.memory_space<vmem>>, %arg5: memref<1x128xf32, #tpu.memory_space<vmem>>, %arg6: memref<8x128xf32, #tpu.memory_space<vmem>>) attributes {dimension_semantics = [#tpu.dimension_semantics<parallel>], iteration_bounds = array<i64: 1>, scalar_prefetch = 0 : i64, scratch_operands = 0 : i64, tpu.core_type = #tpu.core_type<tc>, window_params = [{transform_indices = @transform_0, window_bounds = array<i64: 8, 8, 128>}, {pipeline_mode = #tpu.pipeline_mode<synchronous>, transform_indices = @transform_1, window_bounds = array<i64: 128, 128>}, {pipeline_mode = #tpu.pipeline_mode<synchronous>, transform_indices = @transform_2, window_bounds = array<i64: 128, 256>}, {pipeline_mode = #tpu.pipeline_mode<synchronous>, transform_indices = @transform_3, window_bounds = array<i64: 128, 128>}, {pipeline_mode = #tpu.pipeline_mode<synchronous>, transform_indices = @transform_4, window_bounds = array<i64: 1, 128>}, {transform_indices = @transform_5, window_bounds = array<i64: 8, 128>}]} {
    %c0 = arith.constant 0 : index
    %c0_0 = arith.constant 0 : index
    %c0_1 = arith.constant 0 : index
    %0 = vector.load %arg1[%c0, %c0_0, %c0_1] : memref<8x8x128xbf16, #tpu.memory_space<vmem>>, vector<8x8x128xbf16>
    %1 = vector.extract_strided_slice %0 {offsets = [0, 0, 0], sizes = [8, 1, 128], strides = [1, 1, 1]} : vector<8x8x128xbf16> to vector<8x1x128xbf16>
    %2 = vector.shape_cast %1 : vector<8x1x128xbf16> to vector<8x128xbf16>
    %c0_2 = arith.constant 0 : index
    %c0_3 = arith.constant 0 : index
    %3 = vector.load %arg2[%c0_2, %c0_3] : memref<128x128xbf16, #tpu.memory_space<vmem>>, vector<128x128xbf16>
    %cst = arith.constant dense<0.000000e+00> : vector<8x128xf32>
    %4 = tpu.matmul %2, %3, %cst {dimension_numbers = #tpu.dot_dimension_numbers<[1], [0], [0], [1], [0, 0, 1, 1], [], []>} : vector<8x128xbf16>, vector<128x128xbf16>, vector<8x128xf32> -> vector<8x128xf32>
    %5 = vector.shape_cast %0 : vector<8x8x128xbf16> to vector<64x128xbf16>
    %c0_4 = arith.constant 0 : index
    %c0_5 = arith.constant 0 : index
    %6 = vector.load %arg3[%c0_4, %c0_5] : memref<128x256xbf16, #tpu.memory_space<vmem>>, vector<128x256xbf16>
    %cst_6 = arith.constant dense<0.000000e+00> : vector<64x256xf32>
    %7 = tpu.matmul %5, %6, %cst_6 {dimension_numbers = #tpu.dot_dimension_numbers<[1], [0], [0], [1], [0, 0, 1, 1], [], []>} : vector<64x128xbf16>, vector<128x256xbf16>, vector<64x256xf32> -> vector<64x256xf32>
    %8 = arith.truncf %7 : vector<64x256xf32> to vector<64x256xbf16>
    %9 = vector.extract_strided_slice %8 {offsets = [0, 0], sizes = [64, 128], strides = [1, 1]} : vector<64x256xbf16> to vector<64x128xbf16>
    %10 = vector.shape_cast %9 : vector<64x128xbf16> to vector<8x8x128xbf16>
    %11 = vector.extract_strided_slice %8 {offsets = [0, 128], sizes = [64, 128], strides = [1, 1]} : vector<64x256xbf16> to vector<64x128xbf16>
    %12 = vector.shape_cast %11 : vector<64x128xbf16> to vector<8x8x128xbf16>
    %13 = tpu.iota {dimensions = array<i32: 0>} : vector<8x128xi32>
    %14 = tpu.iota {dimensions = array<i32: 1>} : vector<8x128xi32>
    %c16_i32 = arith.constant 16 : i32
    %15 = vector.broadcast %c16_i32 : i32 to vector<8x128xi32>
    %16 = arith.muli %13, %15 : vector<8x128xi32>
    %17 = arith.cmpi sge, %14, %16 : vector<8x128xi32>
    %c16_i32_7 = arith.constant 16 : i32
    %18 = vector.broadcast %c16_i32_7 : i32 to vector<8x128xi32>
    %19 = arith.addi %16, %18 : vector<8x128xi32>
    %20 = arith.cmpi slt, %14, %19 : vector<8x128xi32>
    %21 = arith.andi %17, %20 : vector<8x128xi1>
    %22 = arith.extui %21 : vector<8x128xi1> to vector<8x128xi32>
    %23 = arith.sitofp %22 : vector<8x128xi32> to vector<8x128xf32>
    %24 = vector.shape_cast %4 : vector<8x128xf32> to vector<8x1x128xf32>
    %25 = vector.shape_cast %23 : vector<8x128xf32> to vector<1x8x128xf32>
    %26 = vector.broadcast %24 : vector<8x1x128xf32> to vector<8x8x128xf32>
    %27 = vector.broadcast %25 : vector<1x8x128xf32> to vector<8x8x128xf32>
    %28 = arith.mulf %26, %27 : vector<8x8x128xf32>
    %29 = arith.truncf %28 : vector<8x8x128xf32> to vector<8x8x128xbf16>
    "tpu.trace_start"() <{level = 10 : i32, message = "bhc,bnc->bhn"}> : () -> ()
    %cst_8 = arith.constant dense<0.000000e+00> : vector<8x8x8xf32>
    %30 = tpu.matmul %29, %10, %cst_8 {dimension_numbers = #tpu.dot_dimension_numbers<[2], [2], [1], [1], [0, 0, 0, 1, 1, 1], [0], [0]>} : vector<8x8x128xbf16>, vector<8x8x128xbf16>, vector<8x8x8xf32> -> vector<8x8x8xf32>
    "tpu.trace_stop"() : () -> ()
    %cst_9 = arith.constant dense<0xFF800000> : vector<8x8xf32>
    %31 = vector.multi_reduction <maximumf>, %30, %cst_9 [2] : vector<8x8x8xf32> to vector<8x8xf32>
    %32 = vector.shape_cast %31 : vector<8x8xf32> to vector<8x8x1xf32>
    %33 = vector.broadcast %32 : vector<8x8x1xf32> to vector<8x8x8xf32>
    %34 = arith.subf %30, %33 : vector<8x8x8xf32>
    %35 = math.exp %34 : vector<8x8x8xf32>
    %cst_10 = arith.constant dense<0.000000e+00> : vector<8x8xf32>
    %36 = vector.multi_reduction <add>, %35, %cst_10 [2] : vector<8x8x8xf32> to vector<8x8xf32>
    %37 = vector.shape_cast %36 : vector<8x8xf32> to vector<8x8x1xf32>
    %38 = tpu.reciprocal %37 {approx = true} : vector<8x8x1xf32> -> vector<8x8x1xf32>
    %39 = vector.broadcast %38 : vector<8x8x1xf32> to vector<8x8x8xf32>
    %40 = arith.mulf %35, %39 : vector<8x8x8xf32>
    %41 = arith.truncf %40 : vector<8x8x8xf32> to vector<8x8x8xbf16>
    "tpu.trace_start"() <{level = 10 : i32, message = "bhn,bnc->bhc"}> : () -> ()
    %cst_11 = arith.constant dense<0.000000e+00> : vector<8x8x128xf32>
    %42 = tpu.matmul %41, %12, %cst_11 {dimension_numbers = #tpu.dot_dimension_numbers<[2], [1], [1], [2], [0, 0, 0, 1, 1, 2], [0], [0]>} : vector<8x8x8xbf16>, vector<8x8x128xbf16>, vector<8x8x128xf32> -> vector<8x8x128xf32>
    "tpu.trace_stop"() : () -> ()
    %43 = vector.shape_cast %23 : vector<8x128xf32> to vector<1x8x128xf32>
    %44 = vector.broadcast %43 : vector<1x8x128xf32> to vector<8x8x128xf32>
    %45 = arith.mulf %42, %44 : vector<8x8x128xf32>
    %cst_12 = arith.constant dense<0.000000e+00> : vector<8x128xf32>
    %46 = vector.multi_reduction <add>, %45, %cst_12 [1] : vector<8x8x128xf32> to vector<8x128xf32>
    %47 = arith.truncf %46 : vector<8x128xf32> to vector<8x128xbf16>
    %c0_13 = arith.constant 0 : index
    %c0_14 = arith.constant 0 : index
    %48 = vector.load %arg4[%c0_13, %c0_14] : memref<128x128xbf16, #tpu.memory_space<vmem>>, vector<128x128xbf16>
    %cst_15 = arith.constant dense<0.000000e+00> : vector<8x128xf32>
    %49 = tpu.matmul %47, %48, %cst_15 {dimension_numbers = #tpu.dot_dimension_numbers<[1], [0], [0], [1], [0, 0, 1, 1], [], []>} : vector<8x128xbf16>, vector<128x128xbf16>, vector<8x128xf32> -> vector<8x128xf32>
    %c0_16 = arith.constant 0 : index
    %c0_17 = arith.constant 0 : index
    %50 = vector.load %arg5[%c0_16, %c0_17] : memref<1x128xf32, #tpu.memory_space<vmem>>, vector<1x128xf32>
    %51 = vector.broadcast %50 : vector<1x128xf32> to vector<8x128xf32>
    %52 = arith.addf %49, %51 : vector<8x128xf32>
    %c0_18 = arith.constant 0 : index
    %c0_19 = arith.constant 0 : index
    %53 = vector.load %arg6[%c0_18, %c0_19] : memref<8x128xf32, #tpu.memory_space<vmem>>, vector<8x128xf32>
    tpu.vector_store %arg6[%c0_18, %c0_19], %52 {strides = array<i32>} : memref<8x128xf32, #tpu.memory_space<vmem>>, vector<8x128xf32>,
    return
  }
  func.func @transform_0(%arg0: i32) -> (i32, i32, i32) {
    %c0_i32 = arith.constant 0 : i32
    %c0_i32_0 = arith.constant 0 : i32
    %c0_i32_1 = arith.constant 0 : i32
    return %arg0, %c0_i32, %c0_i32_0 : i32, i32, i32
  }
  func.func @transform_1(%arg0: i32) -> (i32, i32) {
    %c0_i32 = arith.constant 0 : i32
    %c0_i32_0 = arith.constant 0 : i32
    %c0_i32_1 = arith.constant 0 : i32
    return %c0_i32, %c0_i32_0 : i32, i32
  }
  func.func @transform_2(%arg0: i32) -> (i32, i32) {
    %c0_i32 = arith.constant 0 : i32
    %c0_i32_0 = arith.constant 0 : i32
    %c0_i32_1 = arith.constant 0 : i32
    return %c0_i32, %c0_i32_0 : i32, i32
  }
  func.func @transform_3(%arg0: i32) -> (i32, i32) {
    %c0_i32 = arith.constant 0 : i32
    %c0_i32_0 = arith.constant 0 : i32
    %c0_i32_1 = arith.constant 0 : i32
    return %c0_i32, %c0_i32_0 : i32, i32
  }
  func.func @transform_4(%arg0: i32) -> (i32, i32) {
    %c0_i32 = arith.constant 0 : i32
    %c0_i32_0 = arith.constant 0 : i32
    %c0_i32_1 = arith.constant 0 : i32
    return %c0_i32, %c0_i32_0 : i32, i32
  }
  func.func @transform_5(%arg0: i32) -> (i32, i32) {
    %c0_i32 = arith.constant 0 : i32
    %c0_i32_0 = arith.constant 0 : i32
    return %arg0, %c0_i32 : i32, i32
  }
}

</mosaic_0001>

<llo_original>
// kernel: tpu_custom_call.1
$region0: #{tpu_custom_call.1}
  #allocation0 [shape = 'u32[]', space=smem, size = 0x4, offset = 0x4, fixed_abs, tag = 'smem constant byte address 0x4 - core index']
  #allocation1 [shape = 'u32[144,128]{1,0:T(1,128)}', space=vmem, size = 0x12000, scoped, tag = 'internal scratch']
  %s0 = inlined_call_operand.hbm [shape: bf16[8,8,128], index: 0, kind: input, shape index: {}]
  %s1 = inlined_call_operand.hbm [shape: bf16[128,128], index: 1, kind: input, shape index: {}]
  %s2 = inlined_call_operand.hbm [shape: bf16[128,256], index: 2, kind: input, shape index: {}]
  %s3 = inlined_call_operand.hbm [shape: bf16[128,128], index: 3, kind: input, shape index: {}]
  %s4 = inlined_call_operand.vmem [shape: f32[1,128], index: 4, kind: input, shape index: {}]
  %s5 = inlined_call_operand.hbm [shape: f32[8,128], index: 5, kind: output, shape index: {}]
  %s6 = sld [smem:[#allocation0]]
  $region46: #{tpu_custom_call.1} parent=0
    _
  %s8 = ssub.s32 1, %s6
  %s9 = scalar_select 0, %s8, %s6
  $region1: #{tpu_custom_call.1} parent=0
    #allocation2 [shape = 'u8[16384]{0}', space=vmem, size = 0x4000, scoped, tag = 'input window, operand 0, single buffered']
    #allocation3 [shape = 's32[1]{0}', space=sflag, size = 0x4, scoped, tag = 'scoped memory for tpu_custom_call.1']
    #allocation4 [shape = 's32[1]{0}', space=sflag, size = 0x4, scoped, tag = 'scoped memory for tpu_custom_call.1']
    #allocation5 [shape = 'u8[32768]{0}', space=vmem, size = 0x8000, scoped, tag = 'input window, operand 1, single buffered']
    #allocation6 [shape = 's32[1]{0}', space=sflag, size = 0x4, scoped, tag = 'scoped memory for tpu_custom_call.1']
    #allocation7 [shape = 'u8[65536]{0}', space=vmem, size = 0x10000, scoped, tag = 'input window, operand 2, single buffered']
    #allocation8 [shape = 'u8[32768]{0}', space=vmem, size = 0x8000, scoped, tag = 'input window, operand 3, single buffered']
    #allocation9 [shape = 's32[1]{0}', space=sflag, size = 0x4, scoped, tag = 'scoped memory for tpu_custom_call.1']
    #allocation10 [shape = 'u8[4096]{0}', space=vmem, size = 0x1000, scoped, tag = 'output window, operand 0, single buffered']
    %10 = vsyncpa [#allocation3], 0
    %11 = vsyncpa [#allocation6], 0
    %12 = vsyncpa [#allocation9], 0
    %13 = vsyncpa [#allocation4], 0
    // Predicated region
    $region2: #{tpu_custom_call.1} parent=1 // pred_check
      _
    $region3: #{tpu_custom_call.1} parent=1 // pred_check_branch
      %15 = sbr.rel (0) target = $region5
    $region4: #{tpu_custom_call.1} parent=1 // pred_region
      %s17 = ssub.s32 512, 512
      %18 = vsyncadd [#allocation3], %s17
      %s19 = sshll.u32 [#allocation2], 4
      %s20 = int_to_ptr.vmem [resolvable:$true] %s19
      %25 = dma.hbm_to_vmem [thread:$0]  %s0, 512, %s20, [#allocation3], 64, 64, 4
    $region5: #{tpu_custom_call.1} parent=1 // pred_fallthru
      _
    // Predicated region
    $region6: #{tpu_custom_call.1} parent=1 // pred_check
      _
    $region7: #{tpu_custom_call.1} parent=1 // pred_check_branch
      %27 = sbr.rel (0) target = $region9
    $region8: #{tpu_custom_call.1} parent=1 // pred_region
      %s29 = ssub.s32 1024, 1024
      %30 = vsyncadd [#allocation6], %s29
      %s31 = sshll.u32 [#allocation5], 4
      %s32 = int_to_ptr.vmem [resolvable:$true] %s31
      %37 = dma.hbm_to_vmem [thread:$0]  %s1, 1024, %s32, [#allocation6], 64, 64, 4
    $region9: #{tpu_custom_call.1} parent=1 // pred_fallthru
      _
    // Predicated region
    $region10: #{tpu_custom_call.1} parent=1 // pred_check
      _
    $region11: #{tpu_custom_call.1} parent=1 // pred_check_branch
      %39 = sbr.rel (0) target = $region13
    $region12: #{tpu_custom_call.1} parent=1 // pred_region
      %s41 = ssub.s32 2048, 2048
      %42 = vsyncadd [#allocation6], %s41
      %s43 = sshll.u32 [#allocation7], 4
      %s44 = int_to_ptr.vmem [resolvable:$true] %s43
      %49 = dma.hbm_to_vmem [thread:$0]  %s2, 2048, %s44, [#allocation6], 128, 128, 8
    $region13: #{tpu_custom_call.1} parent=1 // pred_fallthru
      _
    // Predicated region
    $region14: #{tpu_custom_call.1} parent=1 // pred_check
      _
    $region15: #{tpu_custom_call.1} parent=1 // pred_check_branch
      %51 = sbr.rel (0) target = $region17
    $region16: #{tpu_custom_call.1} parent=1 // pred_region
      %s53 = ssub.s32 1024, 1024
      %54 = vsyncadd [#allocation9], %s53
      %s55 = sshll.u32 [#allocation8], 4
      %s56 = int_to_ptr.vmem [resolvable:$true] %s55
      %61 = dma.hbm_to_vmem [thread:$0]  %s3, 1024, %s56, [#allocation9], 64, 64, 4
    $region17: #{tpu_custom_call.1} parent=1 // pred_fallthru
      _
    // Predicated region
    $region18: #{tpu_custom_call.1} parent=1 // pred_check
      _
    $region19: #{tpu_custom_call.1} parent=1 // pred_check_branch
      %63 = sbr.rel (0) target = $region21
    $region20: #{tpu_custom_call.1} parent=1 // pred_region
      _
    $region21: #{tpu_custom_call.1} parent=1 // pred_fallthru
      _
    // Predicated region
    $region22: #{tpu_custom_call.1} parent=1 // pred_check
      _
    $region23: #{tpu_custom_call.1} parent=1 // pred_check_branch
      %65 = sbr.rel (0) target = $region25
    $region24: #{tpu_custom_call.1} parent=1 // pred_region
      %66 = dma.done [#allocation3], 512
    $region25: #{tpu_custom_call.1} parent=1 // pred_fallthru
      _
    // Predicated region
    $region26: #{tpu_custom_call.1} parent=1 // pred_check
      _
    $region27: #{tpu_custom_call.1} parent=1 // pred_check_branch
      %68 = sbr.rel (0) target = $region29
    $region28: #{tpu_custom_call.1} parent=1 // pred_region
      %69 = dma.done [#allocation6], 1024
    $region29: #{tpu_custom_call.1} parent=1 // pred_fallthru
      _
    // Predicated region
    $region30: #{tpu_custom_call.1} parent=1 // pred_check
      _
    $region31: #{tpu_custom_call.1} parent=1 // pred_check_branch
      %71 = sbr.rel (0) target = $region33
    $region32: #{tpu_custom_call.1} parent=1 // pred_region
      %72 = dma.done [#allocation6], 2048
    $region33: #{tpu_custom_call.1} parent=1 // pred_fallthru
      _
    // Predicated region
    $region34: #{tpu_custom_call.1} parent=1 // pred_check
      _
    $region35: #{tpu_custom_call.1} parent=1 // pred_check_branch
      %74 = sbr.rel (0) target = $region37
    $region36: #{tpu_custom_call.1} parent=1 // pred_region
      %75 = dma.done [#allocation9], 1024
    $region37: #{tpu_custom_call.1} parent=1 // pred_fallthru
      _
    %v77 = vld [vmem:[#allocation2] sm:$0xf]
    %v78 = vld [vmem:[#allocation2 + $0x4] sm:$0xf]
    %v79 = vld [vmem:[#allocation2 + $0x8] sm:$0xf]
    %v80 = vld [vmem:[#allocation2 + $0xc] sm:$0xf]
    %v81 = vld [vmem:[#allocation2 + $0x10] sm:$0xf]
    %v82 = vld [vmem:[#allocation2 + $0x14] sm:$0xf]
    %v83 = vld [vmem:[#allocation2 + $0x18] sm:$0xf]
    %v84 = vld [vmem:[#allocation2 + $0x1c] sm:$0xf]
    %v85 = vld [vmem:[#allocation5] sm:$0xf]
    %v86 = vld [vmem:[#allocation5 + $0x4] sm:$0xf]
    %v87 = vld [vmem:[#allocation5 + $0x8] sm:$0xf]
    %v88 = vld [vmem:[#allocation5 + $0xc] sm:$0xf]
    %v89 = vld [vmem:[#allocation5 + $0x10] sm:$0xf]
    %v90 = vld [vmem:[#allocation5 + $0x14] sm:$0xf]
    %v91 = vld [vmem:[#allocation5 + $0x18] sm:$0xf]
    %v92 = vld [vmem:[#allocation5 + $0x1c] sm:$0xf]
    %v93 = vld [vmem:[#allocation5 + $0x20] sm:$0xf]
    %v94 = vld [vmem:[#allocation5 + $0x24] sm:$0xf]
    %v95 = vld [vmem:[#allocation5 + $0x28] sm:$0xf]
    %v96 = vld [vmem:[#allocation5 + $0x2c] sm:$0xf]
    %v97 = vld [vmem:[#allocation5 + $0x30] sm:$0xf]
    %v98 = vld [vmem:[#allocation5 + $0x34] sm:$0xf]
    %v99 = vld [vmem:[#allocation5 + $0x38] sm:$0xf]
    %v100 = vld [vmem:[#allocation5 + $0x3c] sm:$0xf]
    %v109 = vunpack.c.l.b16 %v77
    %v110 = vunpack.c.l.b16 %v78
    %v111 = vunpack.c.l.b16 %v79
    %v112 = vunpack.c.l.b16 %v80
    %v113 = vunpack.c.l.b16 %v81
    %v114 = vunpack.c.l.b16 %v82
    %v115 = vunpack.c.l.b16 %v83
    %v116 = vunpack.c.l.b16 %v84
    %v117 = vpack.c.b16 %v109, %v109
    %v118 = vpack.c.b16 %v110, %v110
    %v119 = vpack.c.b16 %v111, %v111
    %v120 = vpack.c.b16 %v112, %v112
    %v121 = vpack.c.b16 %v113, %v113
    %v122 = vpack.c.b16 %v114, %v114
    %v123 = vpack.c.b16 %v115, %v115
    %v124 = vpack.c.b16 %v116, %v116
    %v125 = vunpack.c.l.b16 %v117
    %v126 = vunpack.c.l.b16 %v118
    %v127 = vunpack.c.l.b16 %v119
    %v128 = vunpack.c.l.b16 %v120
    %v129 = vunpack.c.l.b16 %v121
    %v130 = vunpack.c.l.b16 %v122
    %v131 = vunpack.c.l.b16 %v123
    %v132 = vunpack.c.l.b16 %v124
    %v133 = vrot.slane %v126, 7
    %vm134 = vcmask 1041409
    %v135 = vsel %vm134, %v133, %v125
    %v136 = vrot.slane %v127, 6
    %vm137 = vcmask 1042434
    %v138 = vsel %vm137, %v136, %v135
    %v139 = vrot.slane %v128, 5
    %vm140 = vcmask 1043459
    %v141 = vsel %vm140, %v139, %v138
    %v142 = vrot.slane %v129, 4
    %vm143 = vcmask 1044484
    %v144 = vsel %vm143, %v142, %v141
    %v145 = vrot.slane %v130, 3
    %vm146 = vcmask 1045509
    %v147 = vsel %vm146, %v145, %v144
    %v148 = vrot.slane %v131, 2
    %vm149 = vcmask 1046534
    %v150 = vsel %vm149, %v148, %v147
    %v151 = vrot.slane %v132, 1
    %vm152 = vcmask 1047559
    %v153 = vsel %vm152, %v151, %v150
    %v154 = vpack.c.b16 %v153, %v153
    %v172 = vunpack.c.l.b16 %v85
    %v173 = vunpack.c.l.b16 %v86
    %v174 = vunpack.c.l.b16 %v87
    %v175 = vunpack.c.l.b16 %v88
    %v176 = vunpack.c.l.b16 %v89
    %v177 = vunpack.c.l.b16 %v90
    %v178 = vunpack.c.l.b16 %v91
    %v179 = vunpack.c.l.b16 %v92
    %v180 = vunpack.c.l.b16 %v93
    %v181 = vunpack.c.l.b16 %v94
    %v182 = vunpack.c.l.b16 %v95
    %v183 = vunpack.c.l.b16 %v96
    %v184 = vunpack.c.l.b16 %v97
    %v185 = vunpack.c.l.b16 %v98
    %v186 = vunpack.c.l.b16 %v99
    %v187 = vunpack.c.l.b16 %v100
    %v188 = vpack.c.b16 %v173, %v172
    %v189 = vpack.c.b16 %v175, %v174
    %v190 = vpack.c.b16 %v177, %v176
    %v191 = vpack.c.b16 %v179, %v178
    %v192 = vpack.c.b16 %v181, %v180
    %v193 = vpack.c.b16 %v183, %v182
    %v194 = vpack.c.b16 %v185, %v184
    %v195 = vpack.c.b16 %v187, %v186
    %204 = vmatprep.subr.bf16.mxu0 0
    %205 = vmatpush1.bf16.msra.mxu0 %v195
    %206 = vmatprep.subr.bf16.mxu0 0
    %207 = vmatpush1.bf16.msra.mxu0 %v194
    %208 = vmatprep.subr.bf16.mxu0 0
    %209 = vmatpush1.bf16.msra.mxu0 %v193
    %210 = vmatprep.subr.bf16.mxu0 0
    %211 = vmatpush1.bf16.msra.mxu0 %v192
    %212 = vmatprep.subr.bf16.mxu0 0
    %213 = vmatpush1.bf16.msra.mxu0 %v191
    %214 = vmatprep.subr.bf16.mxu0 0
    %215 = vmatpush1.bf16.msra.mxu0 %v190
    %216 = vmatprep.subr.bf16.mxu0 0
    %217 = vmatpush1.bf16.msra.mxu0 %v189
    %218 = vmatprep.subr.bf16.mxu0 0
    %219 = vmatpush1.bf16.msra.mxu0 %v188
    %220 = vmatprep.subr.bf16.mxu0 0
    %221 = vmatpush2.bf16.msra.mxu0 0
    %222 = vmatprep.subr.bf16.mxu0 0
    %223 = vmatpush2.bf16.msra.mxu0 0
    %224 = vmatprep.subr.bf16.mxu0 0
    %225 = vmatpush2.bf16.msra.mxu0 0
    %226 = vmatprep.subr.bf16.mxu0 0
    %227 = vmatpush2.bf16.msra.mxu0 0
    %228 = vmatprep.subr.bf16.mxu0 0
    %229 = vmatpush2.bf16.msra.mxu0 0
    %230 = vmatprep.subr.bf16.mxu0 0
    %231 = vmatpush2.bf16.msra.mxu0 0
    %232 = vmatprep.subr.bf16.mxu0 0
    %233 = vmatpush2.bf16.msra.mxu0 0
    %234 = vmatprep.subr.bf16.mxu0 0
    %235 = vmatpush2.bf16.msra.mxu0 0
    %236 = vmatprep.mubr.bf16.mxu0 0
    %237 = vmatmul.mubr.bf16.gmra.mxu0 %v154
    %v238 = vpop.f32.mrf.mxu0
    %v239 = vadd.f32 0.0, %v238
    %v240 = vpop.f32.mrf.mxu0
    %v241 = vpop.f32.mrf.mxu0
    %v242 = vpop.f32.mrf.mxu0
    %243 = vdwg.mxu0
    %v244 = vld [vmem:[#allocation7] sm:$0xff]
    %v245 = vld [vmem:[#allocation7 + $0x8] sm:$0xff]
    %v246 = vld [vmem:[#allocation7 + $0x10] sm:$0xff]
    %v247 = vld [vmem:[#allocation7 + $0x18] sm:$0xff]
    %v248 = vld [vmem:[#allocation7 + $0x20] sm:$0xff]
    %v249 = vld [vmem:[#allocation7 + $0x28] sm:$0xff]
    %v250 = vld [vmem:[#allocation7 + $0x30] sm:$0xff]
    %v251 = vld [vmem:[#allocation7 + $0x38] sm:$0xff]
    %v252 = vld [vmem:[#allocation7 + $0x40] sm:$0xff]
    %v253 = vld [vmem:[#allocation7 + $0x48] sm:$0xff]
    %v254 = vld [vmem:[#allocation7 + $0x50] sm:$0xff]
    %v255 = vld [vmem:[#allocation7 + $0x58] sm:$0xff]
    %v256 = vld [vmem:[#allocation7 + $0x60] sm:$0xff]
    %v257 = vld [vmem:[#allocation7 + $0x68] sm:$0xff]
    %v258 = vld [vmem:[#allocation7 + $0x70] sm:$0xff]
    %v259 = vld [vmem:[#allocation7 + $0x78] sm:$0xff]
    %v260 = vpack.c.b16 %v110, %v109
    %v261 = vpack.c.b16 %v112, %v111
    %v262 = vpack.c.b16 %v114, %v113
    %v263 = vpack.c.b16 %v116, %v115
    %v284 = vunpack.c.l.b16 %v244
    %v285 = vunpack.c.h.b16 %v244
    %v286 = vunpack.c.l.b16 %v245
    %v287 = vunpack.c.h.b16 %v245
    %v288 = vunpack.c.l.b16 %v246
    %v289 = vunpack.c.h.b16 %v246
    %v290 = vunpack.c.l.b16 %v247
    %v291 = vunpack.c.h.b16 %v247
    %v292 = vunpack.c.l.b16 %v248
    %v293 = vunpack.c.h.b16 %v248
    %v294 = vunpack.c.l.b16 %v249
    %v295 = vunpack.c.h.b16 %v249
    %v296 = vunpack.c.l.b16 %v250
    %v297 = vunpack.c.h.b16 %v250
    %v298 = vunpack.c.l.b16 %v251
    %v299 = vunpack.c.h.b16 %v251
    %v300 = vunpack.c.l.b16 %v252
    %v301 = vunpack.c.h.b16 %v252
    %v302 = vunpack.c.l.b16 %v253
    %v303 = vunpack.c.h.b16 %v253
    %v304 = vunpack.c.l.b16 %v254
    %v305 = vunpack.c.h.b16 %v254
    %v306 = vunpack.c.l.b16 %v255
    %v307 = vunpack.c.h.b16 %v255
    %v308 = vunpack.c.l.b16 %v256
    %v309 = vunpack.c.h.b16 %v256
    %v310 = vunpack.c.l.b16 %v257
    %v311 = vunpack.c.h.b16 %v257
    %v312 = vunpack.c.l.b16 %v258
    %v313 = vunpack.c.h.b16 %v258
    %v314 = vunpack.c.l.b16 %v259
    %v315 = vunpack.c.h.b16 %v259
    %v316 = vpack.c.b16 %v286, %v284
    %v317 = vpack.c.b16 %v287, %v285
    %v318 = vpack.c.b16 %v290, %v288
    %v319 = vpack.c.b16 %v291, %v289
    %v320 = vpack.c.b16 %v294, %v292
    %v321 = vpack.c.b16 %v295, %v293
    %v322 = vpack.c.b16 %v298, %v296
    %v323 = vpack.c.b16 %v299, %v297
    %v324 = vpack.c.b16 %v302, %v300
    %v325 = vpack.c.b16 %v303, %v301
    %v326 = vpack.c.b16 %v306, %v304
    %v327 = vpack.c.b16 %v307, %v305
    %v328 = vpack.c.b16 %v310, %v308
    %v329 = vpack.c.b16 %v311, %v309
    %v330 = vpack.c.b16 %v314, %v312
    %v331 = vpack.c.b16 %v315, %v313
    %348 = vmatprep.subr.bf16.mxu0 %v331
    %349 = vmatpush1.bf16.msra.mxu0 %v330
    %350 = vmatprep.subr.bf16.mxu0 %v329
    %351 = vmatpush1.bf16.msra.mxu0 %v328
    %352 = vmatprep.subr.bf16.mxu0 %v327
    %353 = vmatpush1.bf16.msra.mxu0 %v326
    %354 = vmatprep.subr.bf16.mxu0 %v325
    %355 = vmatpush1.bf16.msra.mxu0 %v324
    %356 = vmatprep.subr.bf16.mxu0 %v323
    %357 = vmatpush1.bf16.msra.mxu0 %v322
    %358 = vmatprep.subr.bf16.mxu0 %v321
    %359 = vmatpush1.bf16.msra.mxu0 %v320
    %360 = vmatprep.subr.bf16.mxu0 %v319
    %361 = vmatpush1.bf16.msra.mxu0 %v318
    %362 = vmatprep.subr.bf16.mxu0 %v317
    %363 = vmatpush1.bf16.msra.mxu0 %v316
    %364 = vmatprep.subr.bf16.mxu0 0
    %365 = vmatpush2.bf16.msra.mxu0 0
    %366 = vmatprep.subr.bf16.mxu0 0
    %367 = vmatpush2.bf16.msra.mxu0 0
    %368 = vmatprep.subr.bf16.mxu0 0
    %369 = vmatpush2.bf16.msra.mxu0 0
    %370 = vmatprep.subr.bf16.mxu0 0
    %371 = vmatpush2.bf16.msra.mxu0 0
    %372 = vmatprep.subr.bf16.mxu0 0
    %373 = vmatpush2.bf16.msra.mxu0 0
    %374 = vmatprep.subr.bf16.mxu0 0
    %375 = vmatpush2.bf16.msra.mxu0 0
    %376 = vmatprep.subr.bf16.mxu0 0
    %377 = vmatpush2.bf16.msra.mxu0 0
    %378 = vmatprep.subr.bf16.mxu0 0
    %379 = vmatpush2.bf16.msra.mxu0 0
    %380 = vmatprep.mubr.bf16.mxu0 0
    %381 = vmatmul.mubr.bf16.gmra.mxu0 %v260
    %v382 = vpop.f32.mrf.mxu0
    %v383 = vadd.f32 0.0, %v382
    %v384 = vpop.f32.mrf.mxu0
    %v385 = vadd.f32 0.0, %v384
    %v386 = vpop.f32.mrf.mxu0
    %v387 = vadd.f32 0.0, %v386
    %v388 = vpop.f32.mrf.mxu0
    %v389 = vadd.f32 0.0, %v388
    %390 = vmatprep.mubr.bf16.mxu0 0
    %391 = vmatmul.mubr.bf16.gmra.mxu0 %v261
    %v392 = vpop.f32.mrf.mxu0
    %v393 = vadd.f32 0.0, %v392
    %v394 = vpop.f32.mrf.mxu0
    %v395 = vadd.f32 0.0, %v394
    %v396 = vpop.f32.mrf.mxu0
    %v397 = vadd.f32 0.0, %v396
    %v398 = vpop.f32.mrf.mxu0
    %v399 = vadd.f32 0.0, %v398
    %400 = vmatprep.mubr.bf16.mxu0 0
    %401 = vmatmul.mubr.bf16.gmra.mxu0 %v262
    %v402 = vpop.f32.mrf.mxu0
    %v403 = vadd.f32 0.0, %v402
    %v404 = vpop.f32.mrf.mxu0
    %v405 = vadd.f32 0.0, %v404
    %v406 = vpop.f32.mrf.mxu0
    %v407 = vadd.f32 0.0, %v406
    %v408 = vpop.f32.mrf.mxu0
    %v409 = vadd.f32 0.0, %v408
    %410 = vmatprep.mubr.bf16.mxu0 0
    %411 = vmatmul.mubr.bf16.gmra.mxu0 %v263
    %v412 = vpop.f32.mrf.mxu0
    %v413 = vadd.f32 0.0, %v412
    %v414 = vpop.f32.mrf.mxu0
    %v415 = vadd.f32 0.0, %v414
    %v416 = vpop.f32.mrf.mxu0
    %v417 = vadd.f32 0.0, %v416
    %v418 = vpop.f32.mrf.mxu0
    %v419 = vadd.f32 0.0, %v418
    %420 = vdwg.mxu0
    %v421 = vpack.c.bf16 %v387, %v383
    %v422 = vpack.c.bf16 %v389, %v385
    %v423 = vpack.c.bf16 %v397, %v393
    %v424 = vpack.c.bf16 %v399, %v395
    %v425 = vpack.c.bf16 %v407, %v403
    %v426 = vpack.c.bf16 %v409, %v405
    %v427 = vpack.c.bf16 %v417, %v413
    %v428 = vpack.c.bf16 %v419, %v415
    %v433 = vunpack.c.l.b16 %v421
    %v434 = vunpack.c.h.b16 %v421
    %v435 = vunpack.c.l.b16 %v423
    %v436 = vunpack.c.h.b16 %v423
    %v437 = vunpack.c.l.b16 %v425
    %v438 = vunpack.c.h.b16 %v425
    %v439 = vunpack.c.l.b16 %v427
    %v440 = vunpack.c.h.b16 %v427
    %v441 = vpack.c.b16 %v433, %v433
    %v442 = vpack.c.b16 %v434, %v434
    %v443 = vpack.c.b16 %v435, %v435
    %v444 = vpack.c.b16 %v436, %v436
    %v445 = vpack.c.b16 %v437, %v437
    %v446 = vpack.c.b16 %v438, %v438
    %v447 = vpack.c.b16 %v439, %v439
    %v448 = vpack.c.b16 %v440, %v440
    %v461 = vunpack.c.l.b16 %v422
    %v462 = vunpack.c.h.b16 %v422
    %v463 = vunpack.c.l.b16 %v424
    %v464 = vunpack.c.h.b16 %v424
    %v465 = vunpack.c.l.b16 %v426
    %v466 = vunpack.c.h.b16 %v426
    %v467 = vunpack.c.l.b16 %v428
    %v468 = vunpack.c.h.b16 %v428
    %v469 = vpack.c.b16 %v461, %v461
    %v470 = vpack.c.b16 %v462, %v462
    %v471 = vpack.c.b16 %v463, %v463
    %v472 = vpack.c.b16 %v464, %v464
    %v473 = vpack.c.b16 %v465, %v465
    %v474 = vpack.c.b16 %v466, %v466
    %v475 = vpack.c.b16 %v467, %v467
    %v476 = vpack.c.b16 %v468, %v468
    %v477 = vlaneseq
    %v478 = vshrl.u32 %v477, 7
    %v479 = vlaneseq
    %v480 = vand.u32 %v479, 127
    %v481 = vmul.u32 %v478, 16
    %vm482 = vcmp.ge.s32.totalorder %v480, %v481
    %v483 = vadd.s32 %v481, 16
    %vm484 = vcmp.lt.s32.totalorder %v480, %v483
    %vm485 = vmand %vm482, %vm484
    %v486 = vsel %vm485, 1, 0
    %v487 = vcvt.s32.f32 %v486
    %v489 = vcombine.high %v239, %v239
    %v491 = vunpack.c.l.s4 1966171168
    %v492 = vunpack.c.0.s8 %v491
    %v493 = vlaneseq
    %v494 = vshrl.u32 %v493, 7
    %v495 = vsub.s32 %v492, %v494
    %v496 = vrot.slane %v239, %v495
    %v498 = vunpack.c.l.s4 1966171168
    %v499 = vunpack.c.0.s8 %v498
    %v500 = vlaneseq
    %v501 = vshrl.u32 %v500, 7
    %v502 = vsub.s32 %v499, %v501
    %v503 = vrot.slane %v489, %v502
    %v504 = vcombine.high %v496, %v496
    %v505 = vcombine.high %v503, %v503
    %v507 = vunpack.c.l.s4 1966171168
    %v508 = vunpack.c.0.s8 %v507
    %v509 = vlaneseq
    %v510 = vshrl.u32 %v509, 7
    %v511 = vsub.s32 %v508, %v510
    %v512 = vrot.slane %v496, %v511
    %v514 = vunpack.c.l.s4 1966171168
    %v515 = vunpack.c.0.s8 %v514
    %v516 = vlaneseq
    %v517 = vshrl.u32 %v516, 7
    %v518 = vsub.s32 %v515, %v517
    %v519 = vrot.slane %v503, %v518
    %v521 = vunpack.c.l.s4 1966171168
    %v522 = vunpack.c.0.s8 %v521
    %v523 = vlaneseq
    %v524 = vshrl.u32 %v523, 7
    %v525 = vsub.s32 %v522, %v524
    %v526 = vrot.slane %v504, %v525
    %v528 = vunpack.c.l.s4 1966171168
    %v529 = vunpack.c.0.s8 %v528
    %v530 = vlaneseq
    %v531 = vshrl.u32 %v530, 7
    %v532 = vsub.s32 %v529, %v531
    %v533 = vrot.slane %v505, %v532
    %v534 = vcombine.high %v512, %v512
    %v535 = vcombine.high %v519, %v519
    %v536 = vcombine.high %v526, %v526
    %v537 = vcombine.high %v533, %v533
    %v538 = vlaneseq
    %v539 = vshrl.u32 %v538, 7
    %v540 = vsub.s32 0, %v539
    %v541 = vrot.slane %v512, %v540
    %v542 = vlaneseq
    %v543 = vshrl.u32 %v542, 7
    %v544 = vsub.s32 0, %v543
    %v545 = vrot.slane %v526, %v544
    %v546 = vlaneseq
    %v547 = vshrl.u32 %v546, 7
    %v548 = vsub.s32 0, %v547
    %v549 = vrot.slane %v534, %v548
    %v550 = vlaneseq
    %v551 = vshrl.u32 %v550, 7
    %v552 = vsub.s32 0, %v551
    %v553 = vrot.slane %v536, %v552
    %v554 = vlaneseq
    %v555 = vshrl.u32 %v554, 7
    %v556 = vsub.s32 0, %v555
    %v557 = vrot.slane %v519, %v556
    %v558 = vlaneseq
    %v559 = vshrl.u32 %v558, 7
    %v560 = vsub.s32 0, %v559
    %v561 = vrot.slane %v533, %v560
    %v562 = vlaneseq
    %v563 = vshrl.u32 %v562, 7
    %v564 = vsub.s32 0, %v563
    %v565 = vrot.slane %v535, %v564
    %v566 = vlaneseq
    %v567 = vshrl.u32 %v566, 7
    %v568 = vsub.s32 0, %v567
    %v569 = vrot.slane %v537, %v568
    %v578 = vmul.f32 %v541, %v487
    %v579 = vmul.f32 %v545, %v487
    %v580 = vmul.f32 %v549, %v487
    %v581 = vmul.f32 %v553, %v487
    %v582 = vmul.f32 %v557, %v487
    %v583 = vmul.f32 %v561, %v487
    %v584 = vmul.f32 %v565, %v487
    %v585 = vmul.f32 %v569, %v487
    %v586 = vpack.c.bf16 %v578, %v578
    %v587 = vpack.c.bf16 %v579, %v579
    %v588 = vpack.c.bf16 %v580, %v580
    %v589 = vpack.c.bf16 %v581, %v581
    %v590 = vpack.c.bf16 %v582, %v582
    %v591 = vpack.c.bf16 %v583, %v583
    %v592 = vpack.c.bf16 %v584, %v584
    %v593 = vpack.c.bf16 %v585, %v585
    %594 = vmatprep.subr.bf16.mxu0 0
    %595 = vmatpush1.bf16.xpose.msra.mxu0 0
    %596 = vmatprep.subr.bf16.mxu0 0
    %597 = vmatpush1.bf16.xpose.msra.mxu0 0
    %598 = vmatprep.subr.bf16.mxu0 0
    %599 = vmatpush1.bf16.xpose.msra.mxu0 0
    %600 = vmatprep.subr.bf16.mxu0 0
    %601 = vmatpush1.bf16.xpose.msra.mxu0 0
    %602 = vmatprep.subr.bf16.mxu0 0
    %603 = vmatpush1.bf16.xpose.msra.mxu0 0
    %604 = vmatprep.subr.bf16.mxu0 0
    %605 = vmatpush1.bf16.xpose.msra.mxu0 0
    %606 = vmatprep.subr.bf16.mxu0 0
    %607 = vmatpush1.bf16.xpose.msra.mxu0 0
    %608 = vmatprep.subr.bf16.mxu0 0
    %609 = vmatpush1.bf16.xpose.msra.mxu0 %v441
    %610 = vmatprep.subr.bf16.mxu0 0
    %611 = vmatpush2.bf16.xpose.msra.mxu0 0
    %612 = vmatprep.subr.bf16.mxu0 0
    %613 = vmatpush2.bf16.xpose.msra.mxu0 0
    %614 = vmatprep.subr.bf16.mxu0 0
    %615 = vmatpush2.bf16.xpose.msra.mxu0 0
    %616 = vmatprep.subr.bf16.mxu0 0
    %617 = vmatpush2.bf16.xpose.msra.mxu0 0
    %618 = vmatprep.subr.bf16.mxu0 0
    %619 = vmatpush2.bf16.xpose.msra.mxu0 0
    %620 = vmatprep.subr.bf16.mxu0 0
    %621 = vmatpush2.bf16.xpose.msra.mxu0 0
    %622 = vmatprep.subr.bf16.mxu0 0
    %623 = vmatpush2.bf16.xpose.msra.mxu0 0
    %624 = vmatprep.subr.bf16.mxu0 0
    %625 = vmatpush2.bf16.xpose.msra.mxu0 0
    %626 = vmatprep.mubr.bf16.mxu0 0
    %627 = vmatmul.mubr.bf16.gmra.mxu0 %v586
    %v628 = vpop.f32.mrf.mxu0
    %v629 = vadd.f32 0.0, %v628
    %v630 = vpop.f32.mrf.mxu0
    %v631 = vpop.f32.mrf.mxu0
    %v632 = vpop.f32.mrf.mxu0
    %633 = vdwg.mxu0
    %634 = vmatprep.subr.bf16.mxu0 0
    %635 = vmatpush1.bf16.xpose.msra.mxu0 0
    %636 = vmatprep.subr.bf16.mxu0 0
    %637 = vmatpush1.bf16.xpose.msra.mxu0 0
    %638 = vmatprep.subr.bf16.mxu0 0
    %639 = vmatpush1.bf16.xpose.msra.mxu0 0
    %640 = vmatprep.subr.bf16.mxu0 0
    %641 = vmatpush1.bf16.xpose.msra.mxu0 0
    %642 = vmatprep.subr.bf16.mxu0 0
    %643 = vmatpush1.bf16.xpose.msra.mxu0 0
    %644 = vmatprep.subr.bf16.mxu0 0
    %645 = vmatpush1.bf16.xpose.msra.mxu0 0
    %646 = vmatprep.subr.bf16.mxu0 0
    %647 = vmatpush1.bf16.xpose.msra.mxu0 0
    %648 = vmatprep.subr.bf16.mxu0 0
    %649 = vmatpush1.bf16.xpose.msra.mxu0 %v442
    %650 = vmatprep.subr.bf16.mxu0 0
    %651 = vmatpush2.bf16.xpose.msra.mxu0 0
    %652 = vmatprep.subr.bf16.mxu0 0
    %653 = vmatpush2.bf16.xpose.msra.mxu0 0
    %654 = vmatprep.subr.bf16.mxu0 0
    %655 = vmatpush2.bf16.xpose.msra.mxu0 0
    %656 = vmatprep.subr.bf16.mxu0 0
    %657 = vmatpush2.bf16.xpose.msra.mxu0 0
    %658 = vmatprep.subr.bf16.mxu0 0
    %659 = vmatpush2.bf16.xpose.msra.mxu0 0
    %660 = vmatprep.subr.bf16.mxu0 0
    %661 = vmatpush2.bf16.xpose.msra.mxu0 0
    %662 = vmatprep.subr.bf16.mxu0 0
    %663 = vmatpush2.bf16.xpose.msra.mxu0 0
    %664 = vmatprep.subr.bf16.mxu0 0
    %665 = vmatpush2.bf16.xpose.msra.mxu0 0
    %666 = vmatprep.mubr.bf16.mxu0 0
    %667 = vmatmul.mubr.bf16.gmra.mxu0 %v587
    %v668 = vpop.f32.mrf.mxu0
    %v669 = vadd.f32 0.0, %v668
    %v670 = vpop.f32.mrf.mxu0
    %v671 = vpop.f32.mrf.mxu0
    %v672 = vpop.f32.mrf.mxu0
    %673 = vdwg.mxu0
    %674 = vmatprep.subr.bf16.mxu0 0
    %675 = vmatpush1.bf16.xpose.msra.mxu0 0
    %676 = vmatprep.subr.bf16.mxu0 0
    %677 = vmatpush1.bf16.xpose.msra.mxu0 0
    %678 = vmatprep.subr.bf16.mxu0 0
    %679 = vmatpush1.bf16.xpose.msra.mxu0 0
    %680 = vmatprep.subr.bf16.mxu0 0
    %681 = vmatpush1.bf16.xpose.msra.mxu0 0
    %682 = vmatprep.subr.bf16.mxu0 0
    %683 = vmatpush1.bf16.xpose.msra.mxu0 0
    %684 = vmatprep.subr.bf16.mxu0 0
    %685 = vmatpush1.bf16.xpose.msra.mxu0 0
    %686 = vmatprep.subr.bf16.mxu0 0
    %687 = vmatpush1.bf16.xpose.msra.mxu0 0
    %688 = vmatprep.subr.bf16.mxu0 0
    %689 = vmatpush1.bf16.xpose.msra.mxu0 %v443
    %690 = vmatprep.subr.bf16.mxu0 0
    %691 = vmatpush2.bf16.xpose.msra.mxu0 0
    %692 = vmatprep.subr.bf16.mxu0 0
    %693 = vmatpush2.bf16.xpose.msra.mxu0 0
    %694 = vmatprep.subr.bf16.mxu0 0
    %695 = vmatpush2.bf16.xpose.msra.mxu0 0
    %696 = vmatprep.subr.bf16.mxu0 0
    %697 = vmatpush2.bf16.xpose.msra.mxu0 0
    %698 = vmatprep.subr.bf16.mxu0 0
    %699 = vmatpush2.bf16.xpose.msra.mxu0 0
    %700 = vmatprep.subr.bf16.mxu0 0
    %701 = vmatpush2.bf16.xpose.msra.mxu0 0
    %702 = vmatprep.subr.bf16.mxu0 0
    %703 = vmatpush2.bf16.xpose.msra.mxu0 0
    %704 = vmatprep.subr.bf16.mxu0 0
    %705 = vmatpush2.bf16.xpose.msra.mxu0 0
    %706 = vmatprep.mubr.bf16.mxu0 0
    %707 = vmatmul.mubr.bf16.gmra.mxu0 %v588
    %v708 = vpop.f32.mrf.mxu0
    %v709 = vadd.f32 0.0, %v708
    %v710 = vpop.f32.mrf.mxu0
    %v711 = vpop.f32.mrf.mxu0
    %v712 = vpop.f32.mrf.mxu0
    %713 = vdwg.mxu0
    %714 = vmatprep.subr.bf16.mxu0 0
    %715 = vmatpush1.bf16.xpose.msra.mxu0 0
    %716 = vmatprep.subr.bf16.mxu0 0
    %717 = vmatpush1.bf16.xpose.msra.mxu0 0
    %718 = vmatprep.subr.bf16.mxu0 0
    %719 = vmatpush1.bf16.xpose.msra.mxu0 0
    %720 = vmatprep.subr.bf16.mxu0 0
    %721 = vmatpush1.bf16.xpose.msra.mxu0 0
    %722 = vmatprep.subr.bf16.mxu0 0
    %723 = vmatpush1.bf16.xpose.msra.mxu0 0
    %724 = vmatprep.subr.bf16.mxu0 0
    %725 = vmatpush1.bf16.xpose.msra.mxu0 0
    %726 = vmatprep.subr.bf16.mxu0 0
    %727 = vmatpush1.bf16.xpose.msra.mxu0 0
    %728 = vmatprep.subr.bf16.mxu0 0
    %729 = vmatpush1.bf16.xpose.msra.mxu0 %v444
    %730 = vmatprep.subr.bf16.mxu0 0
    %731 = vmatpush2.bf16.xpose.msra.mxu0 0
    %732 = vmatprep.subr.bf16.mxu0 0
    %733 = vmatpush2.bf16.xpose.msra.mxu0 0
    %734 = vmatprep.subr.bf16.mxu0 0
    %735 = vmatpush2.bf16.xpose.msra.mxu0 0
    %736 = vmatprep.subr.bf16.mxu0 0
    %737 = vmatpush2.bf16.xpose.msra.mxu0 0
    %738 = vmatprep.subr.bf16.mxu0 0
    %739 = vmatpush2.bf16.xpose.msra.mxu0 0
    %740 = vmatprep.subr.bf16.mxu0 0
    %741 = vmatpush2.bf16.xpose.msra.mxu0 0
    %742 = vmatprep.subr.bf16.mxu0 0
    %743 = vmatpush2.bf16.xpose.msra.mxu0 0
    %744 = vmatprep.subr.bf16.mxu0 0
    %745 = vmatpush2.bf16.xpose.msra.mxu0 0
    %746 = vmatprep.mubr.bf16.mxu0 0
    %747 = vmatmul.mubr.bf16.gmra.mxu0 %v589
    %v748 = vpop.f32.mrf.mxu0
    %v749 = vadd.f32 0.0, %v748
    %v750 = vpop.f32.mrf.mxu0
    %v751 = vpop.f32.mrf.mxu0
    %v752 = vpop.f32.mrf.mxu0
    %753 = vdwg.mxu0
    %754 = vmatprep.subr.bf16.mxu0 0
    %755 = vmatpush1.bf16.xpose.msra.mxu0 0
    %756 = vmatprep.subr.bf16.mxu0 0
    %757 = vmatpush1.bf16.xpose.msra.mxu0 0
    %758 = vmatprep.subr.bf16.mxu0 0
    %759 = vmatpush1.bf16.xpose.msra.mxu0 0
    %760 = vmatprep.subr.bf16.mxu0 0
    %761 = vmatpush1.bf16.xpose.msra.mxu0 0
    %762 = vmatprep.subr.bf16.mxu0 0
    %763 = vmatpush1.bf16.xpose.msra.mxu0 0
    %764 = vmatprep.subr.bf16.mxu0 0
    %765 = vmatpush1.bf16.xpose.msra.mxu0 0
    %766 = vmatprep.subr.bf16.mxu0 0
    %767 = vmatpush1.bf16.xpose.msra.mxu0 0
    %768 = vmatprep.subr.bf16.mxu0 0
    %769 = vmatpush1.bf16.xpose.msra.mxu0 %v445
    %770 = vmatprep.subr.bf16.mxu0 0
    %771 = vmatpush2.bf16.xpose.msra.mxu0 0
    %772 = vmatprep.subr.bf16.mxu0 0
    %773 = vmatpush2.bf16.xpose.msra.mxu0 0
    %774 = vmatprep.subr.bf16.mxu0 0
    %775 = vmatpush2.bf16.xpose.msra.mxu0 0
    %776 = vmatprep.subr.bf16.mxu0 0
    %777 = vmatpush2.bf16.xpose.msra.mxu0 0
    %778 = vmatprep.subr.bf16.mxu0 0
    %779 = vmatpush2.bf16.xpose.msra.mxu0 0
    %780 = vmatprep.subr.bf16.mxu0 0
    %781 = vmatpush2.bf16.xpose.msra.mxu0 0
    %782 = vmatprep.subr.bf16.mxu0 0
    %783 = vmatpush2.bf16.xpose.msra.mxu0 0
    %784 = vmatprep.subr.bf16.mxu0 0
    %785 = vmatpush2.bf16.xpose.msra.mxu0 0
    %786 = vmatprep.mubr.bf16.mxu0 0
    %787 = vmatmul.mubr.bf16.gmra.mxu0 %v590
    %v788 = vpop.f32.mrf.mxu0
    %v789 = vadd.f32 0.0, %v788
    %v790 = vpop.f32.mrf.mxu0
    %v791 = vpop.f32.mrf.mxu0
    %v792 = vpop.f32.mrf.mxu0
    %793 = vdwg.mxu0
    %794 = vmatprep.subr.bf16.mxu0 0
    %795 = vmatpush1.bf16.xpose.msra.mxu0 0
    %796 = vmatprep.subr.bf16.mxu0 0
    %797 = vmatpush1.bf16.xpose.msra.mxu0 0
    %798 = vmatprep.subr.bf16.mxu0 0
    %799 = vmatpush1.bf16.xpose.msra.mxu0 0
    %800 = vmatprep.subr.bf16.mxu0 0
    %801 = vmatpush1.bf16.xpose.msra.mxu0 0
    %802 = vmatprep.subr.bf16.mxu0 0
    %803 = vmatpush1.bf16.xpose.msra.mxu0 0
    %804 = vmatprep.subr.bf16.mxu0 0
    %805 = vmatpush1.bf16.xpose.msra.mxu0 0
    %806 = vmatprep.subr.bf16.mxu0 0
    %807 = vmatpush1.bf16.xpose.msra.mxu0 0
    %808 = vmatprep.subr.bf16.mxu0 0
    %809 = vmatpush1.bf16.xpose.msra.mxu0 %v446
    %810 = vmatprep.subr.bf16.mxu0 0
    %811 = vmatpush2.bf16.xpose.msra.mxu0 0
    %812 = vmatprep.subr.bf16.mxu0 0
    %813 = vmatpush2.bf16.xpose.msra.mxu0 0
    %814 = vmatprep.subr.bf16.mxu0 0
    %815 = vmatpush2.bf16.xpose.msra.mxu0 0
    %816 = vmatprep.subr.bf16.mxu0 0
    %817 = vmatpush2.bf16.xpose.msra.mxu0 0
    %818 = vmatprep.subr.bf16.mxu0 0
    %819 = vmatpush2.bf16.xpose.msra.mxu0 0
    %820 = vmatprep.subr.bf16.mxu0 0
    %821 = vmatpush2.bf16.xpose.msra.mxu0 0
    %822 = vmatprep.subr.bf16.mxu0 0
    %823 = vmatpush2.bf16.xpose.msra.mxu0 0
    %824 = vmatprep.subr.bf16.mxu0 0
    %825 = vmatpush2.bf16.xpose.msra.mxu0 0
    %826 = vmatprep.mubr.bf16.mxu0 0
    %827 = vmatmul.mubr.bf16.gmra.mxu0 %v591
    %v828 = vpop.f32.mrf.mxu0
    %v829 = vadd.f32 0.0, %v828
    %v830 = vpop.f32.mrf.mxu0
    %v831 = vpop.f32.mrf.mxu0
    %v832 = vpop.f32.mrf.mxu0
    %833 = vdwg.mxu0
    %834 = vmatprep.subr.bf16.mxu0 0
    %835 = vmatpush1.bf16.xpose.msra.mxu0 0
    %836 = vmatprep.subr.bf16.mxu0 0
    %837 = vmatpush1.bf16.xpose.msra.mxu0 0
    %838 = vmatprep.subr.bf16.mxu0 0
    %839 = vmatpush1.bf16.xpose.msra.mxu0 0
    %840 = vmatprep.subr.bf16.mxu0 0
    %841 = vmatpush1.bf16.xpose.msra.mxu0 0
    %842 = vmatprep.subr.bf16.mxu0 0
    %843 = vmatpush1.bf16.xpose.msra.mxu0 0
    %844 = vmatprep.subr.bf16.mxu0 0
    %845 = vmatpush1.bf16.xpose.msra.mxu0 0
    %846 = vmatprep.subr.bf16.mxu0 0
    %847 = vmatpush1.bf16.xpose.msra.mxu0 0
    %848 = vmatprep.subr.bf16.mxu0 0
    %849 = vmatpush1.bf16.xpose.msra.mxu0 %v447
    %850 = vmatprep.subr.bf16.mxu0 0
    %851 = vmatpush2.bf16.xpose.msra.mxu0 0
    %852 = vmatprep.subr.bf16.mxu0 0
    %853 = vmatpush2.bf16.xpose.msra.mxu0 0
    %854 = vmatprep.subr.bf16.mxu0 0
    %855 = vmatpush2.bf16.xpose.msra.mxu0 0
    %856 = vmatprep.subr.bf16.mxu0 0
    %857 = vmatpush2.bf16.xpose.msra.mxu0 0
    %858 = vmatprep.subr.bf16.mxu0 0
    %859 = vmatpush2.bf16.xpose.msra.mxu0 0
    %860 = vmatprep.subr.bf16.mxu0 0
    %861 = vmatpush2.bf16.xpose.msra.mxu0 0
    %862 = vmatprep.subr.bf16.mxu0 0
    %863 = vmatpush2.bf16.xpose.msra.mxu0 0
    %864 = vmatprep.subr.bf16.mxu0 0
    %865 = vmatpush2.bf16.xpose.msra.mxu0 0
    %866 = vmatprep.mubr.bf16.mxu0 0
    %867 = vmatmul.mubr.bf16.gmra.mxu0 %v592
    %v868 = vpop.f32.mrf.mxu0
    %v869 = vadd.f32 0.0, %v868
    %v870 = vpop.f32.mrf.mxu0
    %v871 = vpop.f32.mrf.mxu0
    %v872 = vpop.f32.mrf.mxu0
    %873 = vdwg.mxu0
    %874 = vmatprep.subr.bf16.mxu0 0
    %875 = vmatpush1.bf16.xpose.msra.mxu0 0
    %876 = vmatprep.subr.bf16.mxu0 0
    %877 = vmatpush1.bf16.xpose.msra.mxu0 0
    %878 = vmatprep.subr.bf16.mxu0 0
    %879 = vmatpush1.bf16.xpose.msra.mxu0 0
    %880 = vmatprep.subr.bf16.mxu0 0
    %881 = vmatpush1.bf16.xpose.msra.mxu0 0
    %882 = vmatprep.subr.bf16.mxu0 0
    %883 = vmatpush1.bf16.xpose.msra.mxu0 0
    %884 = vmatprep.subr.bf16.mxu0 0
    %885 = vmatpush1.bf16.xpose.msra.mxu0 0
    %886 = vmatprep.subr.bf16.mxu0 0
    %887 = vmatpush1.bf16.xpose.msra.mxu0 0
    %888 = vmatprep.subr.bf16.mxu0 0
    %889 = vmatpush1.bf16.xpose.msra.mxu0 %v448
    %890 = vmatprep.subr.bf16.mxu0 0
    %891 = vmatpush2.bf16.xpose.msra.mxu0 0
    %892 = vmatprep.subr.bf16.mxu0 0
    %893 = vmatpush2.bf16.xpose.msra.mxu0 0
    %894 = vmatprep.subr.bf16.mxu0 0
    %895 = vmatpush2.bf16.xpose.msra.mxu0 0
    %896 = vmatprep.subr.bf16.mxu0 0
    %897 = vmatpush2.bf16.xpose.msra.mxu0 0
    %898 = vmatprep.subr.bf16.mxu0 0
    %899 = vmatpush2.bf16.xpose.msra.mxu0 0
    %900 = vmatprep.subr.bf16.mxu0 0
    %901 = vmatpush2.bf16.xpose.msra.mxu0 0
    %902 = vmatprep.subr.bf16.mxu0 0
    %903 = vmatpush2.bf16.xpose.msra.mxu0 0
    %904 = vmatprep.subr.bf16.mxu0 0
    %905 = vmatpush2.bf16.xpose.msra.mxu0 0
    %906 = vmatprep.mubr.bf16.mxu0 0
    %907 = vmatmul.mubr.bf16.gmra.mxu0 %v593
    %v908 = vpop.f32.mrf.mxu0
    %v909 = vadd.f32 0.0, %v908
    %v910 = vpop.f32.mrf.mxu0
    %v911 = vpop.f32.mrf.mxu0
    %v912 = vpop.f32.mrf.mxu0
    %913 = vdwg.mxu0
    %vm914 = vcmask 64512
    %v915 = vsel %vm914, %v629, -inf
    %916 = vmax.xlane.f32.xlu0 %v915
    %v917 = vpop.xlane.xlu0 %916
    %v918 = vsel %vm914, %v669, -inf
    %919 = vmax.xlane.f32.xlu0 %v918
    %v920 = vpop.xlane.xlu0 %919
    %v921 = vsel %vm914, %v709, -inf
    %922 = vmax.xlane.f32.xlu0 %v921
    %v923 = vpop.xlane.xlu0 %922
    %v924 = vsel %vm914, %v749, -inf
    %925 = vmax.xlane.f32.xlu0 %v924
    %v926 = vpop.xlane.xlu0 %925
    %v927 = vsel %vm914, %v789, -inf
    %928 = vmax.xlane.f32.xlu0 %v927
    %v929 = vpop.xlane.xlu0 %928
    %v930 = vsel %vm914, %v829, -inf
    %931 = vmax.xlane.f32.xlu0 %v930
    %v932 = vpop.xlane.xlu0 %931
    %v933 = vsel %vm914, %v869, -inf
    %934 = vmax.xlane.f32.xlu0 %v933
    %v935 = vpop.xlane.xlu0 %934
    %v936 = vsel %vm914, %v909, -inf
    %937 = vmax.xlane.f32.xlu0 %v936
    %v938 = vpop.xlane.xlu0 %937
    %v939 = vsub.f32 %v629, %v917
    %v940 = vsub.f32 %v669, %v920
    %v941 = vsub.f32 %v709, %v923
    %v942 = vsub.f32 %v749, %v926
    %v943 = vsub.f32 %v789, %v929
    %v944 = vsub.f32 %v829, %v932
    %v945 = vsub.f32 %v869, %v935
    %v946 = vsub.f32 %v909, %v938
    %v947 = vmul.f32 %v939, 1.442695
    %v948 = vpow.pop %v947
    %v949 = vmul.f32 %v940, 1.442695
    %v950 = vpow.pop %v949
    %v951 = vmul.f32 %v941, 1.442695
    %v952 = vpow.pop %v951
    %v953 = vmul.f32 %v942, 1.442695
    %v954 = vpow.pop %v953
    %v955 = vmul.f32 %v943, 1.442695
    %v956 = vpow.pop %v955
    %v957 = vmul.f32 %v944, 1.442695
    %v958 = vpow.pop %v957
    %v959 = vmul.f32 %v945, 1.442695
    %v960 = vpow.pop %v959
    %v961 = vmul.f32 %v946, 1.442695
    %v962 = vpow.pop %v961
    %v963 = vsel %vm914, %v948, 0.0
    %964 = vadd.xlane.f32.xlu0 %v963
    %v965 = vpop.xlane.xlu0 %964
    %v966 = vsel %vm914, %v950, 0.0
    %967 = vadd.xlane.f32.xlu0 %v966
    %v968 = vpop.xlane.xlu0 %967
    %v969 = vsel %vm914, %v952, 0.0
    %970 = vadd.xlane.f32.xlu0 %v969
    %v971 = vpop.xlane.xlu0 %970
    %v972 = vsel %vm914, %v954, 0.0
    %973 = vadd.xlane.f32.xlu0 %v972
    %v974 = vpop.xlane.xlu0 %973
    %v975 = vsel %vm914, %v956, 0.0
    %976 = vadd.xlane.f32.xlu0 %v975
    %v977 = vpop.xlane.xlu0 %976
    %v978 = vsel %vm914, %v958, 0.0
    %979 = vadd.xlane.f32.xlu0 %v978
    %v980 = vpop.xlane.xlu0 %979
    %v981 = vsel %vm914, %v960, 0.0
    %982 = vadd.xlane.f32.xlu0 %v981
    %v983 = vpop.xlane.xlu0 %982
    %v984 = vsel %vm914, %v962, 0.0
    %985 = vadd.xlane.f32.xlu0 %v984
    %v986 = vpop.xlane.xlu0 %985
    %v987 = vrcp.pop %v965
    %v988 = vrcp.pop %v968
    %v989 = vrcp.pop %v971
    %v990 = vrcp.pop %v974
    %v991 = vrcp.pop %v977
    %v992 = vrcp.pop %v980
    %v993 = vrcp.pop %v983
    %v994 = vrcp.pop %v986
    %v995 = vmul.f32 %v948, %v987
    %v996 = vmul.f32 %v950, %v988
    %v997 = vmul.f32 %v952, %v989
    %v998 = vmul.f32 %v954, %v990
    %v999 = vmul.f32 %v956, %v991
    %v1000 = vmul.f32 %v958, %v992
    %v1001 = vmul.f32 %v960, %v993
    %v1002 = vmul.f32 %v962, %v994
    %v1003 = vpack.c.bf16 %v995, %v995
    %v1004 = vpack.c.bf16 %v996, %v996
    %v1005 = vpack.c.bf16 %v997, %v997
    %v1006 = vpack.c.bf16 %v998, %v998
    %v1007 = vpack.c.bf16 %v999, %v999
    %v1008 = vpack.c.bf16 %v1000, %v1000
    %v1009 = vpack.c.bf16 %v1001, %v1001
    %v1010 = vpack.c.bf16 %v1002, %v1002
    %v1012 = vsel %vm914, %v1003, 0
    %vm1014 = vcmask 1043456
    %v1016 = vsel %vm1014, %v469, 0
    %1018 = vmatprep.subr.bf16.mxu0 0
    %1019 = vmatpush1.bf16.msra.mxu0 0
    %1020 = vmatprep.subr.bf16.mxu0 0
    %1021 = vmatpush1.bf16.msra.mxu0 0
    %1022 = vmatprep.subr.bf16.mxu0 0
    %1023 = vmatpush1.bf16.msra.mxu0 0
    %1024 = vmatprep.subr.bf16.mxu0 0
    %1025 = vmatpush1.bf16.msra.mxu0 0
    %1026 = vmatprep.subr.bf16.mxu0 0
    %1027 = vmatpush1.bf16.msra.mxu0 0
    %1028 = vmatprep.subr.bf16.mxu0 0
    %1029 = vmatpush1.bf16.msra.mxu0 0
    %1030 = vmatprep.subr.bf16.mxu0 0
    %1031 = vmatpush1.bf16.msra.mxu0 0
    %1032 = vmatprep.subr.bf16.mxu0 0
    %1033 = vmatpush1.bf16.msra.mxu0 %v1016
    %1034 = vmatprep.subr.bf16.mxu0 0
    %1035 = vmatpush2.bf16.msra.mxu0 0
    %1036 = vmatprep.subr.bf16.mxu0 0
    %1037 = vmatpush2.bf16.msra.mxu0 0
    %1038 = vmatprep.subr.bf16.mxu0 0
    %1039 = vmatpush2.bf16.msra.mxu0 0
    %1040 = vmatprep.subr.bf16.mxu0 0
    %1041 = vmatpush2.bf16.msra.mxu0 0
    %1042 = vmatprep.subr.bf16.mxu0 0
    %1043 = vmatpush2.bf16.msra.mxu0 0
    %1044 = vmatprep.subr.bf16.mxu0 0
    %1045 = vmatpush2.bf16.msra.mxu0 0
    %1046 = vmatprep.subr.bf16.mxu0 0
    %1047 = vmatpush2.bf16.msra.mxu0 0
    %1048 = vmatprep.subr.bf16.mxu0 0
    %1049 = vmatpush2.bf16.msra.mxu0 0
    %1050 = vmatprep.mubr.bf16.mxu0 0
    %1051 = vmatmul.mubr.bf16.gmra.mxu0 %v1012
    %v1052 = vpop.f32.mrf.mxu0
    %v1053 = vadd.f32 0.0, %v1052
    %v1054 = vpop.f32.mrf.mxu0
    %v1055 = vpop.f32.mrf.mxu0
    %v1056 = vpop.f32.mrf.mxu0
    %1057 = vdwg.mxu0
    %v1059 = vsel %vm914, %v1004, 0
    %v1062 = vsel %vm1014, %v470, 0
    %1064 = vmatprep.subr.bf16.mxu0 0
    %1065 = vmatpush1.bf16.msra.mxu0 0
    %1066 = vmatprep.subr.bf16.mxu0 0
    %1067 = vmatpush1.bf16.msra.mxu0 0
    %1068 = vmatprep.subr.bf16.mxu0 0
    %1069 = vmatpush1.bf16.msra.mxu0 0
    %1070 = vmatprep.subr.bf16.mxu0 0
    %1071 = vmatpush1.bf16.msra.mxu0 0
    %1072 = vmatprep.subr.bf16.mxu0 0
    %1073 = vmatpush1.bf16.msra.mxu0 0
    %1074 = vmatprep.subr.bf16.mxu0 0
    %1075 = vmatpush1.bf16.msra.mxu0 0
    %1076 = vmatprep.subr.bf16.mxu0 0
    %1077 = vmatpush1.bf16.msra.mxu0 0
    %1078 = vmatprep.subr.bf16.mxu0 0
    %1079 = vmatpush1.bf16.msra.mxu0 %v1062
    %1080 = vmatprep.subr.bf16.mxu0 0
    %1081 = vmatpush2.bf16.msra.mxu0 0
    %1082 = vmatprep.subr.bf16.mxu0 0
    %1083 = vmatpush2.bf16.msra.mxu0 0
    %1084 = vmatprep.subr.bf16.mxu0 0
    %1085 = vmatpush2.bf16.msra.mxu0 0
    %1086 = vmatprep.subr.bf16.mxu0 0
    %1087 = vmatpush2.bf16.msra.mxu0 0
    %1088 = vmatprep.subr.bf16.mxu0 0
    %1089 = vmatpush2.bf16.msra.mxu0 0
    %1090 = vmatprep.subr.bf16.mxu0 0
    %1091 = vmatpush2.bf16.msra.mxu0 0
    %1092 = vmatprep.subr.bf16.mxu0 0
    %1093 = vmatpush2.bf16.msra.mxu0 0
    %1094 = vmatprep.subr.bf16.mxu0 0
    %1095 = vmatpush2.bf16.msra.mxu0 0
    %1096 = vmatprep.mubr.bf16.mxu0 0
    %1097 = vmatmul.mubr.bf16.gmra.mxu0 %v1059
    %v1098 = vpop.f32.mrf.mxu0
    %v1099 = vadd.f32 0.0, %v1098
    %v1100 = vpop.f32.mrf.mxu0
    %v1101 = vpop.f32.mrf.mxu0
    %v1102 = vpop.f32.mrf.mxu0
    %1103 = vdwg.mxu0
    %v1105 = vsel %vm914, %v1005, 0
    %v1108 = vsel %vm1014, %v471, 0
    %1110 = vmatprep.subr.bf16.mxu0 0
    %1111 = vmatpush1.bf16.msra.mxu0 0
    %1112 = vmatprep.subr.bf16.mxu0 0
    %1113 = vmatpush1.bf16.msra.mxu0 0
    %1114 = vmatprep.subr.bf16.mxu0 0
    %1115 = vmatpush1.bf16.msra.mxu0 0
    %1116 = vmatprep.subr.bf16.mxu0 0
    %1117 = vmatpush1.bf16.msra.mxu0 0
    %1118 = vmatprep.subr.bf16.mxu0 0
    %1119 = vmatpush1.bf16.msra.mxu0 0
    %1120 = vmatprep.subr.bf16.mxu0 0
    %1121 = vmatpush1.bf16.msra.mxu0 0
    %1122 = vmatprep.subr.bf16.mxu0 0
    %1123 = vmatpush1.bf16.msra.mxu0 0
    %1124 = vmatprep.subr.bf16.mxu0 0
    %1125 = vmatpush1.bf16.msra.mxu0 %v1108
    %1126 = vmatprep.subr.bf16.mxu0 0
    %1127 = vmatpush2.bf16.msra.mxu0 0
    %1128 = vmatprep.subr.bf16.mxu0 0
    %1129 = vmatpush2.bf16.msra.mxu0 0
    %1130 = vmatprep.subr.bf16.mxu0 0
    %1131 = vmatpush2.bf16.msra.mxu0 0
    %1132 = vmatprep.subr.bf16.mxu0 0
    %1133 = vmatpush2.bf16.msra.mxu0 0
    %1134 = vmatprep.subr.bf16.mxu0 0
    %1135 = vmatpush2.bf16.msra.mxu0 0
    %1136 = vmatprep.subr.bf16.mxu0 0
    %1137 = vmatpush2.bf16.msra.mxu0 0
    %1138 = vmatprep.subr.bf16.mxu0 0
    %1139 = vmatpush2.bf16.msra.mxu0 0
    %1140 = vmatprep.subr.bf16.mxu0 0
    %1141 = vmatpush2.bf16.msra.mxu0 0
    %1142 = vmatprep.mubr.bf16.mxu0 0
    %1143 = vmatmul.mubr.bf16.gmra.mxu0 %v1105
    %v1144 = vpop.f32.mrf.mxu0
    %v1145 = vadd.f32 0.0, %v1144
    %v1146 = vpop.f32.mrf.mxu0
    %v1147 = vpop.f32.mrf.mxu0
    %v1148 = vpop.f32.mrf.mxu0
    %1149 = vdwg.mxu0
    %v1151 = vsel %vm914, %v1006, 0
    %v1154 = vsel %vm1014, %v472, 0
    %1156 = vmatprep.subr.bf16.mxu0 0
    %1157 = vmatpush1.bf16.msra.mxu0 0
    %1158 = vmatprep.subr.bf16.mxu0 0
    %1159 = vmatpush1.bf16.msra.mxu0 0
    %1160 = vmatprep.subr.bf16.mxu0 0
    %1161 = vmatpush1.bf16.msra.mxu0 0
    %1162 = vmatprep.subr.bf16.mxu0 0
    %1163 = vmatpush1.bf16.msra.mxu0 0
    %1164 = vmatprep.subr.bf16.mxu0 0
    %1165 = vmatpush1.bf16.msra.mxu0 0
    %1166 = vmatprep.subr.bf16.mxu0 0
    %1167 = vmatpush1.bf16.msra.mxu0 0
    %1168 = vmatprep.subr.bf16.mxu0 0
    %1169 = vmatpush1.bf16.msra.mxu0 0
    %1170 = vmatprep.subr.bf16.mxu0 0
    %1171 = vmatpush1.bf16.msra.mxu0 %v1154
    %1172 = vmatprep.subr.bf16.mxu0 0
    %1173 = vmatpush2.bf16.msra.mxu0 0
    %1174 = vmatprep.subr.bf16.mxu0 0
    %1175 = vmatpush2.bf16.msra.mxu0 0
    %1176 = vmatprep.subr.bf16.mxu0 0
    %1177 = vmatpush2.bf16.msra.mxu0 0
    %1178 = vmatprep.subr.bf16.mxu0 0
    %1179 = vmatpush2.bf16.msra.mxu0 0
    %1180 = vmatprep.subr.bf16.mxu0 0
    %1181 = vmatpush2.bf16.msra.mxu0 0
    %1182 = vmatprep.subr.bf16.mxu0 0
    %1183 = vmatpush2.bf16.msra.mxu0 0
    %1184 = vmatprep.subr.bf16.mxu0 0
    %1185 = vmatpush2.bf16.msra.mxu0 0
    %1186 = vmatprep.subr.bf16.mxu0 0
    %1187 = vmatpush2.bf16.msra.mxu0 0
    %1188 = vmatprep.mubr.bf16.mxu0 0
    %1189 = vmatmul.mubr.bf16.gmra.mxu0 %v1151
    %v1190 = vpop.f32.mrf.mxu0
    %v1191 = vadd.f32 0.0, %v1190
    %v1192 = vpop.f32.mrf.mxu0
    %v1193 = vpop.f32.mrf.mxu0
    %v1194 = vpop.f32.mrf.mxu0
    %1195 = vdwg.mxu0
    %v1197 = vsel %vm914, %v1007, 0
    %v1200 = vsel %vm1014, %v473, 0
    %1202 = vmatprep.subr.bf16.mxu0 0
    %1203 = vmatpush1.bf16.msra.mxu0 0
    %1204 = vmatprep.subr.bf16.mxu0 0
    %1205 = vmatpush1.bf16.msra.mxu0 0
    %1206 = vmatprep.subr.bf16.mxu0 0
    %1207 = vmatpush1.bf16.msra.mxu0 0
    %1208 = vmatprep.subr.bf16.mxu0 0
    %1209 = vmatpush1.bf16.msra.mxu0 0
    %1210 = vmatprep.subr.bf16.mxu0 0
    %1211 = vmatpush1.bf16.msra.mxu0 0
    %1212 = vmatprep.subr.bf16.mxu0 0
    %1213 = vmatpush1.bf16.msra.mxu0 0
    %1214 = vmatprep.subr.bf16.mxu0 0
    %1215 = vmatpush1.bf16.msra.mxu0 0
    %1216 = vmatprep.subr.bf16.mxu0 0
    %1217 = vmatpush1.bf16.msra.mxu0 %v1200
    %1218 = vmatprep.subr.bf16.mxu0 0
    %1219 = vmatpush2.bf16.msra.mxu0 0
    %1220 = vmatprep.subr.bf16.mxu0 0
    %1221 = vmatpush2.bf16.msra.mxu0 0
    %1222 = vmatprep.subr.bf16.mxu0 0
    %1223 = vmatpush2.bf16.msra.mxu0 0
    %1224 = vmatprep.subr.bf16.mxu0 0
    %1225 = vmatpush2.bf16.msra.mxu0 0
    %1226 = vmatprep.subr.bf16.mxu0 0
    %1227 = vmatpush2.bf16.msra.mxu0 0
    %1228 = vmatprep.subr.bf16.mxu0 0
    %1229 = vmatpush2.bf16.msra.mxu0 0
    %1230 = vmatprep.subr.bf16.mxu0 0
    %1231 = vmatpush2.bf16.msra.mxu0 0
    %1232 = vmatprep.subr.bf16.mxu0 0
    %1233 = vmatpush2.bf16.msra.mxu0 0
    %1234 = vmatprep.mubr.bf16.mxu0 0
    %1235 = vmatmul.mubr.bf16.gmra.mxu0 %v1197
    %v1236 = vpop.f32.mrf.mxu0
    %v1237 = vadd.f32 0.0, %v1236
    %v1238 = vpop.f32.mrf.mxu0
    %v1239 = vpop.f32.mrf.mxu0
    %v1240 = vpop.f32.mrf.mxu0
    %1241 = vdwg.mxu0
    %v1243 = vsel %vm914, %v1008, 0
    %v1246 = vsel %vm1014, %v474, 0
    %1248 = vmatprep.subr.bf16.mxu0 0
    %1249 = vmatpush1.bf16.msra.mxu0 0
    %1250 = vmatprep.subr.bf16.mxu0 0
    %1251 = vmatpush1.bf16.msra.mxu0 0
    %1252 = vmatprep.subr.bf16.mxu0 0
    %1253 = vmatpush1.bf16.msra.mxu0 0
    %1254 = vmatprep.subr.bf16.mxu0 0
    %1255 = vmatpush1.bf16.msra.mxu0 0
    %1256 = vmatprep.subr.bf16.mxu0 0
    %1257 = vmatpush1.bf16.msra.mxu0 0
    %1258 = vmatprep.subr.bf16.mxu0 0
    %1259 = vmatpush1.bf16.msra.mxu0 0
    %1260 = vmatprep.subr.bf16.mxu0 0
    %1261 = vmatpush1.bf16.msra.mxu0 0
    %1262 = vmatprep.subr.bf16.mxu0 0
    %1263 = vmatpush1.bf16.msra.mxu0 %v1246
    %1264 = vmatprep.subr.bf16.mxu0 0
    %1265 = vmatpush2.bf16.msra.mxu0 0
    %1266 = vmatprep.subr.bf16.mxu0 0
    %1267 = vmatpush2.bf16.msra.mxu0 0
    %1268 = vmatprep.subr.bf16.mxu0 0
    %1269 = vmatpush2.bf16.msra.mxu0 0
    %1270 = vmatprep.subr.bf16.mxu0 0
    %1271 = vmatpush2.bf16.msra.mxu0 0
    %1272 = vmatprep.subr.bf16.mxu0 0
    %1273 = vmatpush2.bf16.msra.mxu0 0
    %1274 = vmatprep.subr.bf16.mxu0 0
    %1275 = vmatpush2.bf16.msra.mxu0 0
    %1276 = vmatprep.subr.bf16.mxu0 0
    %1277 = vmatpush2.bf16.msra.mxu0 0
    %1278 = vmatprep.subr.bf16.mxu0 0
    %1279 = vmatpush2.bf16.msra.mxu0 0
    %1280 = vmatprep.mubr.bf16.mxu0 0
    %1281 = vmatmul.mubr.bf16.gmra.mxu0 %v1243
    %v1282 = vpop.f32.mrf.mxu0
    %v1283 = vadd.f32 0.0, %v1282
    %v1284 = vpop.f32.mrf.mxu0
    %v1285 = vpop.f32.mrf.mxu0
    %v1286 = vpop.f32.mrf.mxu0
    %1287 = vdwg.mxu0
    %v1289 = vsel %vm914, %v1009, 0
    %v1292 = vsel %vm1014, %v475, 0
    %1294 = vmatprep.subr.bf16.mxu0 0
    %1295 = vmatpush1.bf16.msra.mxu0 0
    %1296 = vmatprep.subr.bf16.mxu0 0
    %1297 = vmatpush1.bf16.msra.mxu0 0
    %1298 = vmatprep.subr.bf16.mxu0 0
    %1299 = vmatpush1.bf16.msra.mxu0 0
    %1300 = vmatprep.subr.bf16.mxu0 0
    %1301 = vmatpush1.bf16.msra.mxu0 0
    %1302 = vmatprep.subr.bf16.mxu0 0
    %1303 = vmatpush1.bf16.msra.mxu0 0
    %1304 = vmatprep.subr.bf16.mxu0 0
    %1305 = vmatpush1.bf16.msra.mxu0 0
    %1306 = vmatprep.subr.bf16.mxu0 0
    %1307 = vmatpush1.bf16.msra.mxu0 0
    %1308 = vmatprep.subr.bf16.mxu0 0
    %1309 = vmatpush1.bf16.msra.mxu0 %v1292
    %1310 = vmatprep.subr.bf16.mxu0 0
    %1311 = vmatpush2.bf16.msra.mxu0 0
    %1312 = vmatprep.subr.bf16.mxu0 0
    %1313 = vmatpush2.bf16.msra.mxu0 0
    %1314 = vmatprep.subr.bf16.mxu0 0
    %1315 = vmatpush2.bf16.msra.mxu0 0
    %1316 = vmatprep.subr.bf16.mxu0 0
    %1317 = vmatpush2.bf16.msra.mxu0 0
    %1318 = vmatprep.subr.bf16.mxu0 0
    %1319 = vmatpush2.bf16.msra.mxu0 0
    %1320 = vmatprep.subr.bf16.mxu0 0
    %1321 = vmatpush2.bf16.msra.mxu0 0
    %1322 = vmatprep.subr.bf16.mxu0 0
    %1323 = vmatpush2.bf16.msra.mxu0 0
    %1324 = vmatprep.subr.bf16.mxu0 0
    %1325 = vmatpush2.bf16.msra.mxu0 0
    %1326 = vmatprep.mubr.bf16.mxu0 0
    %1327 = vmatmul.mubr.bf16.gmra.mxu0 %v1289
    %v1328 = vpop.f32.mrf.mxu0
    %v1329 = vadd.f32 0.0, %v1328
    %v1330 = vpop.f32.mrf.mxu0
    %v1331 = vpop.f32.mrf.mxu0
    %v1332 = vpop.f32.mrf.mxu0
    %1333 = vdwg.mxu0
    %v1335 = vsel %vm914, %v1010, 0
    %v1338 = vsel %vm1014, %v476, 0
    %1340 = vmatprep.subr.bf16.mxu0 0
    %1341 = vmatpush1.bf16.msra.mxu0 0
    %1342 = vmatprep.subr.bf16.mxu0 0
    %1343 = vmatpush1.bf16.msra.mxu0 0
    %1344 = vmatprep.subr.bf16.mxu0 0
    %1345 = vmatpush1.bf16.msra.mxu0 0
    %1346 = vmatprep.subr.bf16.mxu0 0
    %1347 = vmatpush1.bf16.msra.mxu0 0
    %1348 = vmatprep.subr.bf16.mxu0 0
    %1349 = vmatpush1.bf16.msra.mxu0 0
    %1350 = vmatprep.subr.bf16.mxu0 0
    %1351 = vmatpush1.bf16.msra.mxu0 0
    %1352 = vmatprep.subr.bf16.mxu0 0
    %1353 = vmatpush1.bf16.msra.mxu0 0
    %1354 = vmatprep.subr.bf16.mxu0 0
    %1355 = vmatpush1.bf16.msra.mxu0 %v1338
    %1356 = vmatprep.subr.bf16.mxu0 0
    %1357 = vmatpush2.bf16.msra.mxu0 0
    %1358 = vmatprep.subr.bf16.mxu0 0
    %1359 = vmatpush2.bf16.msra.mxu0 0
    %1360 = vmatprep.subr.bf16.mxu0 0
    %1361 = vmatpush2.bf16.msra.mxu0 0
    %1362 = vmatprep.subr.bf16.mxu0 0
    %1363 = vmatpush2.bf16.msra.mxu0 0
    %1364 = vmatprep.subr.bf16.mxu0 0
    %1365 = vmatpush2.bf16.msra.mxu0 0
    %1366 = vmatprep.subr.bf16.mxu0 0
    %1367 = vmatpush2.bf16.msra.mxu0 0
    %1368 = vmatprep.subr.bf16.mxu0 0
    %1369 = vmatpush2.bf16.msra.mxu0 0
    %1370 = vmatprep.subr.bf16.mxu0 0
    %1371 = vmatpush2.bf16.msra.mxu0 0
    %1372 = vmatprep.mubr.bf16.mxu0 0
    %1373 = vmatmul.mubr.bf16.gmra.mxu0 %v1335
    %v1374 = vpop.f32.mrf.mxu0
    %v1375 = vadd.f32 0.0, %v1374
    %v1376 = vpop.f32.mrf.mxu0
    %v1377 = vpop.f32.mrf.mxu0
    %v1378 = vpop.f32.mrf.mxu0
    %1379 = vdwg.mxu0
    %v1380 = vmul.f32 %v1053, %v487
    %v1381 = vmul.f32 %v1099, %v487
    %v1382 = vmul.f32 %v1145, %v487
    %v1383 = vmul.f32 %v1191, %v487
    %v1384 = vmul.f32 %v1237, %v487
    %v1385 = vmul.f32 %v1283, %v487
    %v1386 = vmul.f32 %v1329, %v487
    %v1387 = vmul.f32 %v1375, %v487
    %v1388 = vrot.slane %v1380, 4
    %v1389 = vadd.f32 %v1380, %v1388
    %v1390 = vrot.slane %v1389, 2
    %v1391 = vadd.f32 %v1389, %v1390
    %v1392 = vrot.slane %v1391, 1
    %v1393 = vadd.f32 %v1391, %v1392
    %v1394 = vrot.slane %v1381, 4
    %v1395 = vadd.f32 %v1381, %v1394
    %v1396 = vrot.slane %v1395, 2
    %v1397 = vadd.f32 %v1395, %v1396
    %v1398 = vrot.slane %v1397, 1
    %v1399 = vadd.f32 %v1397, %v1398
    %v1400 = vrot.slane %v1382, 4
    %v1401 = vadd.f32 %v1382, %v1400
    %v1402 = vrot.slane %v1401, 2
    %v1403 = vadd.f32 %v1401, %v1402
    %v1404 = vrot.slane %v1403, 1
    %v1405 = vadd.f32 %v1403, %v1404
    %v1406 = vrot.slane %v1383, 4
    %v1407 = vadd.f32 %v1383, %v1406
    %v1408 = vrot.slane %v1407, 2
    %v1409 = vadd.f32 %v1407, %v1408
    %v1410 = vrot.slane %v1409, 1
    %v1411 = vadd.f32 %v1409, %v1410
    %v1412 = vrot.slane %v1384, 4
    %v1413 = vadd.f32 %v1384, %v1412
    %v1414 = vrot.slane %v1413, 2
    %v1415 = vadd.f32 %v1413, %v1414
    %v1416 = vrot.slane %v1415, 1
    %v1417 = vadd.f32 %v1415, %v1416
    %v1418 = vrot.slane %v1385, 4
    %v1419 = vadd.f32 %v1385, %v1418
    %v1420 = vrot.slane %v1419, 2
    %v1421 = vadd.f32 %v1419, %v1420
    %v1422 = vrot.slane %v1421, 1
    %v1423 = vadd.f32 %v1421, %v1422
    %v1424 = vrot.slane %v1386, 4
    %v1425 = vadd.f32 %v1386, %v1424
    %v1426 = vrot.slane %v1425, 2
    %v1427 = vadd.f32 %v1425, %v1426
    %v1428 = vrot.slane %v1427, 1
    %v1429 = vadd.f32 %v1427, %v1428
    %v1430 = vrot.slane %v1387, 4
    %v1431 = vadd.f32 %v1387, %v1430
    %v1432 = vrot.slane %v1431, 2
    %v1433 = vadd.f32 %v1431, %v1432
    %v1434 = vrot.slane %v1433, 1
    %v1435 = vadd.f32 %v1433, %v1434
    %v1436 = vpack.c.bf16 %v1393, %v1393
    %v1437 = vpack.c.bf16 %v1399, %v1399
    %v1438 = vpack.c.bf16 %v1405, %v1405
    %v1439 = vpack.c.bf16 %v1411, %v1411
    %v1440 = vpack.c.bf16 %v1417, %v1417
    %v1441 = vpack.c.bf16 %v1423, %v1423
    %v1442 = vpack.c.bf16 %v1429, %v1429
    %v1443 = vpack.c.bf16 %v1435, %v1435
    %v1444 = vld [vmem:[#allocation8] sm:$0xf]
    %v1445 = vld [vmem:[#allocation8 + $0x4] sm:$0xf]
    %v1446 = vld [vmem:[#allocation8 + $0x8] sm:$0xf]
    %v1447 = vld [vmem:[#allocation8 + $0xc] sm:$0xf]
    %v1448 = vld [vmem:[#allocation8 + $0x10] sm:$0xf]
    %v1449 = vld [vmem:[#allocation8 + $0x14] sm:$0xf]
    %v1450 = vld [vmem:[#allocation8 + $0x18] sm:$0xf]
    %v1451 = vld [vmem:[#allocation8 + $0x1c] sm:$0xf]
    %v1452 = vld [vmem:[#allocation8 + $0x20] sm:$0xf]
    %v1453 = vld [vmem:[#allocation8 + $0x24] sm:$0xf]
    %v1454 = vld [vmem:[#allocation8 + $0x28] sm:$0xf]
    %v1455 = vld [vmem:[#allocation8 + $0x2c] sm:$0xf]
    %v1456 = vld [vmem:[#allocation8 + $0x30] sm:$0xf]
    %v1457 = vld [vmem:[#allocation8 + $0x34] sm:$0xf]
    %v1458 = vld [vmem:[#allocation8 + $0x38] sm:$0xf]
    %v1459 = vld [vmem:[#allocation8 + $0x3c] sm:$0xf]
    %v1460 = vld [vmem:[%s4] sm:$0x1]
    %v1462 = vlaneseq
    %v1463 = vshrl.u32 %v1462, 7
    %v1464 = vsub.s32 0, %v1463
    %v1465 = vrot.slane %v1460, %v1464
    %v1475 = vunpack.c.l.b16 %v1436
    %v1476 = vunpack.c.l.b16 %v1437
    %v1477 = vunpack.c.l.b16 %v1438
    %v1478 = vunpack.c.l.b16 %v1439
    %v1479 = vunpack.c.l.b16 %v1440
    %v1480 = vunpack.c.l.b16 %v1441
    %v1481 = vunpack.c.l.b16 %v1442
    %v1482 = vunpack.c.l.b16 %v1443
    %v1483 = vsel %vm134, %v1476, %v1475
    %v1484 = vsel %vm137, %v1477, %v1483
    %v1485 = vsel %vm140, %v1478, %v1484
    %v1486 = vsel %vm143, %v1479, %v1485
    %v1487 = vsel %vm146, %v1480, %v1486
    %v1488 = vsel %vm149, %v1481, %v1487
    %v1489 = vsel %vm152, %v1482, %v1488
    %v1490 = vpack.c.b16 %v1489, %v1489
    %v1508 = vunpack.c.l.b16 %v1444
    %v1509 = vunpack.c.l.b16 %v1445
    %v1510 = vunpack.c.l.b16 %v1446
    %v1511 = vunpack.c.l.b16 %v1447
    %v1512 = vunpack.c.l.b16 %v1448
    %v1513 = vunpack.c.l.b16 %v1449
    %v1514 = vunpack.c.l.b16 %v1450
    %v1515 = vunpack.c.l.b16 %v1451
    %v1516 = vunpack.c.l.b16 %v1452
    %v1517 = vunpack.c.l.b16 %v1453
    %v1518 = vunpack.c.l.b16 %v1454
    %v1519 = vunpack.c.l.b16 %v1455
    %v1520 = vunpack.c.l.b16 %v1456
    %v1521 = vunpack.c.l.b16 %v1457
    %v1522 = vunpack.c.l.b16 %v1458
    %v1523 = vunpack.c.l.b16 %v1459
    %v1524 = vpack.c.b16 %v1509, %v1508
    %v1525 = vpack.c.b16 %v1511, %v1510
    %v1526 = vpack.c.b16 %v1513, %v1512
    %v1527 = vpack.c.b16 %v1515, %v1514
    %v1528 = vpack.c.b16 %v1517, %v1516
    %v1529 = vpack.c.b16 %v1519, %v1518
    %v1530 = vpack.c.b16 %v1521, %v1520
    %v1531 = vpack.c.b16 %v1523, %v1522
    %1540 = vmatprep.subr.bf16.mxu0 0
    %1541 = vmatpush1.bf16.msra.mxu0 %v1531
    %1542 = vmatprep.subr.bf16.mxu0 0
    %1543 = vmatpush1.bf16.msra.mxu0 %v1530
    %1544 = vmatprep.subr.bf16.mxu0 0
    %1545 = vmatpush1.bf16.msra.mxu0 %v1529
    %1546 = vmatprep.subr.bf16.mxu0 0
    %1547 = vmatpush1.bf16.msra.mxu0 %v1528
    %1548 = vmatprep.subr.bf16.mxu0 0
    %1549 = vmatpush1.bf16.msra.mxu0 %v1527
    %1550 = vmatprep.subr.bf16.mxu0 0
    %1551 = vmatpush1.bf16.msra.mxu0 %v1526
    %1552 = vmatprep.subr.bf16.mxu0 0
    %1553 = vmatpush1.bf16.msra.mxu0 %v1525
    %1554 = vmatprep.subr.bf16.mxu0 0
    %1555 = vmatpush1.bf16.msra.mxu0 %v1524
    %1556 = vmatprep.subr.bf16.mxu0 0
    %1557 = vmatpush2.bf16.msra.mxu0 0
    %1558 = vmatprep.subr.bf16.mxu0 0
    %1559 = vmatpush2.bf16.msra.mxu0 0
    %1560 = vmatprep.subr.bf16.mxu0 0
    %1561 = vmatpush2.bf16.msra.mxu0 0
    %1562 = vmatprep.subr.bf16.mxu0 0
    %1563 = vmatpush2.bf16.msra.mxu0 0
    %1564 = vmatprep.subr.bf16.mxu0 0
    %1565 = vmatpush2.bf16.msra.mxu0 0
    %1566 = vmatprep.subr.bf16.mxu0 0
    %1567 = vmatpush2.bf16.msra.mxu0 0
    %1568 = vmatprep.subr.bf16.mxu0 0
    %1569 = vmatpush2.bf16.msra.mxu0 0
    %1570 = vmatprep.subr.bf16.mxu0 0
    %1571 = vmatpush2.bf16.msra.mxu0 0
    %1572 = vmatprep.mubr.bf16.mxu0 0
    %1573 = vmatmul.mubr.bf16.gmra.mxu0 %v1490
    %v1574 = vpop.f32.mrf.mxu0
    %v1575 = vadd.f32 %v1465, %v1574
    %v1576 = vpop.f32.mrf.mxu0
    %v1577 = vpop.f32.mrf.mxu0
    %v1578 = vpop.f32.mrf.mxu0
    %1579 = vdwg.mxu0
    %1580 = vst [vmem:[#allocation10] sm:$0xff] %v1575
    // Predicated region
    $region38: #{tpu_custom_call.1} parent=1 // pred_check
      _
    $region39: #{tpu_custom_call.1} parent=1 // pred_check_branch
      %1582 = sbr.rel (0) target = $region41
    $region40: #{tpu_custom_call.1} parent=1 // pred_region
      %s1584 = ssub.s32 128, 128
      %1585 = vsyncadd [#allocation4], %s1584
      %s1587 = sshll.u32 [#allocation10], 4
      %s1588 = int_to_ptr.vmem [resolvable:$true] %s1587
      %1590 = dma.vmem_to_hbm [thread:$0]  %s1588, 128, %s5, [#allocation4]
    $region41: #{tpu_custom_call.1} parent=1 // pred_fallthru
      _
    // Predicated region
    $region42: #{tpu_custom_call.1} parent=1 // pred_check
      _
    $region43: #{tpu_custom_call.1} parent=1 // pred_check_branch
      %1592 = sbr.rel (0) target = $region45
    $region44: #{tpu_custom_call.1} parent=1 // pred_region
      %1593 = dma.done [#allocation4], 128
    $region45: #{tpu_custom_call.1} parent=1 // pred_fallthru
      _
    %1594 = vsyncpa [#allocation3], 1
    %1595 = vsyncpa [#allocation6], 1
    %1596 = vsyncpa [#allocation9], 1
    %1597 = vsyncpa [#allocation4], 1

// kernel: tpu_custom_call.1
$region0: #{tpu_custom_call.1}
  #allocation0 [shape = 'u32[]', space=smem, size = 0x4, offset = 0x4, fixed_abs, tag = 'smem constant byte address 0x4 - core index']
  #allocation1 [shape = 'u32[144,128]{1,0:T(1,128)}', space=vmem, size = 0x12000, scoped, tag = 'internal scratch']
  %s0 = inlined_call_operand.hbm [shape: bf16[8,8,128], index: 0, kind: input, shape index: {}]
  %s1 = inlined_call_operand.hbm [shape: bf16[128,128], index: 1, kind: input, shape index: {}]
  %s2 = inlined_call_operand.hbm [shape: bf16[128,256], index: 2, kind: input, shape index: {}]
  %s3 = inlined_call_operand.hbm [shape: bf16[128,128], index: 3, kind: input, shape index: {}]
  %s4 = inlined_call_operand.vmem [shape: f32[1,128], index: 4, kind: input, shape index: {}]
  %s5 = inlined_call_operand.hbm [shape: f32[8,128], index: 5, kind: output, shape index: {}]
  %s6 = sld [smem:[#allocation0]]
  $region46: #{tpu_custom_call.1} parent=0
    _
  %s8 = ssub.s32 1, %s6
  %s9 = scalar_select 0, %s8, %s6
  $region1: #{tpu_custom_call.1} parent=0
    #allocation2 [shape = 'u8[16384]{0}', space=vmem, size = 0x4000, scoped, tag = 'input window, operand 0, single buffered']
    #allocation3 [shape = 's32[1]{0}', space=sflag, size = 0x4, scoped, tag = 'scoped memory for tpu_custom_call.1']
    #allocation4 [shape = 's32[1]{0}', space=sflag, size = 0x4, scoped, tag = 'scoped memory for tpu_custom_call.1']
    #allocation5 [shape = 'u8[32768]{0}', space=vmem, size = 0x8000, scoped, tag = 'input window, operand 1, single buffered']
    #allocation6 [shape = 's32[1]{0}', space=sflag, size = 0x4, scoped, tag = 'scoped memory for tpu_custom_call.1']
    #allocation7 [shape = 'u8[65536]{0}', space=vmem, size = 0x10000, scoped, tag = 'input window, operand 2, single buffered']
    #allocation8 [shape = 'u8[32768]{0}', space=vmem, size = 0x8000, scoped, tag = 'input window, operand 3, single buffered']
    #allocation9 [shape = 's32[1]{0}', space=sflag, size = 0x4, scoped, tag = 'scoped memory for tpu_custom_call.1']
    #allocation10 [shape = 'u8[4096]{0}', space=vmem, size = 0x1000, scoped, tag = 'output window, operand 0, single buffered']
    %10 = vsyncpa [#allocation3], 0
    %11 = vsyncpa [#allocation6], 0
    %12 = vsyncpa [#allocation9], 0
    %13 = vsyncpa [#allocation4], 0
    // Predicated region
    $region2: #{tpu_custom_call.1} parent=1 // pred_check
      _
    $region3: #{tpu_custom_call.1} parent=1 // pred_check_branch
      %15 = sbr.rel (0) target = $region5
    $region4: #{tpu_custom_call.1} parent=1 // pred_region
      %s17 = ssub.s32 512, 512
      %18 = vsyncadd [#allocation3], %s17
      %s19 = sshll.u32 [#allocation2], 4
      %s20 = int_to_ptr.vmem [resolvable:$true] %s19
      %25 = dma.hbm_to_vmem [thread:$0]  %s0, 512, %s20, [#allocation3], 64, 64, 4
    $region5: #{tpu_custom_call.1} parent=1 // pred_fallthru
      _
    // Predicated region
    $region6: #{tpu_custom_call.1} parent=1 // pred_check
      _
    $region7: #{tpu_custom_call.1} parent=1 // pred_check_branch
      %27 = sbr.rel (0) target = $region9
    $region8: #{tpu_custom_call.1} parent=1 // pred_region
      %s29 = ssub.s32 1024, 1024
      %30 = vsyncadd [#allocation6], %s29
      %s31 = sshll.u32 [#allocation5], 4
      %s32 = int_to_ptr.vmem [resolvable:$true] %s31
      %37 = dma.hbm_to_vmem [thread:$0]  %s1, 1024, %s32, [#allocation6], 64, 64, 4
    $region9: #{tpu_custom_call.1} parent=1 // pred_fallthru
      _
    // Predicated region
    $region10: #{tpu_custom_call.1} parent=1 // pred_check
      _
    $region11: #{tpu_custom_call.1} parent=1 // pred_check_branch
      %39 = sbr.rel (0) target = $region13
    $region12: #{tpu_custom_call.1} parent=1 // pred_region
      %s41 = ssub.s32 2048, 2048
      %42 = vsyncadd [#allocation6], %s41
      %s43 = sshll.u32 [#allocation7], 4
      %s44 = int_to_ptr.vmem [resolvable:$true] %s43
      %49 = dma.hbm_to_vmem [thread:$0]  %s2, 2048, %s44, [#allocation6], 128, 128, 8
    $region13: #{tpu_custom_call.1} parent=1 // pred_fallthru
      _
    // Predicated region
    $region14: #{tpu_custom_call.1} parent=1 // pred_check
      _
    $region15: #{tpu_custom_call.1} parent=1 // pred_check_branch
      %51 = sbr.rel (0) target = $region17
    $region16: #{tpu_custom_call.1} parent=1 // pred_region
      %s53 = ssub.s32 1024, 1024
      %54 = vsyncadd [#allocation9], %s53
      %s55 = sshll.u32 [#allocation8], 4
      %s56 = int_to_ptr.vmem [resolvable:$true] %s55
      %61 = dma.hbm_to_vmem [thread:$0]  %s3, 1024, %s56, [#allocation9], 64, 64, 4
    $region17: #{tpu_custom_call.1} parent=1 // pred_fallthru
      _
    // Predicated region
    $region18: #{tpu_custom_call.1} parent=1 // pred_check
      _
    $region19: #{tpu_custom_call.1} parent=1 // pred_check_branch
      %63 = sbr.rel (0) target = $region21
    $region20: #{tpu_custom_call.1} parent=1 // pred_region
      _
    $region21: #{tpu_custom_call.1} parent=1 // pred_fallthru
      _
    // Predicated region
    $region22: #{tpu_custom_call.1} parent=1 // pred_check
      _
    $region23: #{tpu_custom_call.1} parent=1 // pred_check_branch
      %65 = sbr.rel (0) target = $region25
    $region24: #{tpu_custom_call.1} parent=1 // pred_region
      %66 = dma.done [#allocation3], 512
    $region25: #{tpu_custom_call.1} parent=1 // pred_fallthru
      _
    // Predicated region
    $region26: #{tpu_custom_call.1} parent=1 // pred_check
      _
    $region27: #{tpu_custom_call.1} parent=1 // pred_check_branch
      %68 = sbr.rel (0) target = $region29
    $region28: #{tpu_custom_call.1} parent=1 // pred_region
      %69 = dma.done [#allocation6], 1024
    $region29: #{tpu_custom_call.1} parent=1 // pred_fallthru
      _
    // Predicated region
    $region30: #{tpu_custom_call.1} parent=1 // pred_check
      _
    $region31: #{tpu_custom_call.1} parent=1 // pred_check_branch
      %71 = sbr.rel (0) target = $region33
    $region32: #{tpu_custom_call.1} parent=1 // pred_region
      %72 = dma.done [#allocation6], 2048
    $region33: #{tpu_custom_call.1} parent=1 // pred_fallthru
      _
    // Predicated region
    $region34: #{tpu_custom_call.1} parent=1 // pred_check
      _
    $region35: #{tpu_custom_call.1} parent=1 // pred_check_branch
      %74 = sbr.rel (0) target = $region37
    $region36: #{tpu_custom_call.1} parent=1 // pred_region
      %75 = dma.done [#allocation9], 1024
    $region37: #{tpu_custom_call.1} parent=1 // pred_fallthru
      _
    %v77 = vld [vmem:[#allocation2] sm:$0xf]
    %v78 = vld [vmem:[#allocation2 + $0x4] sm:$0xf]
    %v79 = vld [vmem:[#allocation2 + $0x8] sm:$0xf]
    %v80 = vld [vmem:[#allocation2 + $0xc] sm:$0xf]
    %v81 = vld [vmem:[#allocation2 + $0x10] sm:$0xf]
    %v82 = vld [vmem:[#allocation2 + $0x14] sm:$0xf]
    %v83 = vld [vmem:[#allocation2 + $0x18] sm:$0xf]
    %v84 = vld [vmem:[#allocation2 + $0x1c] sm:$0xf]
    %v85 = vld [vmem:[#allocation5] sm:$0xf]
    %v86 = vld [vmem:[#allocation5 + $0x4] sm:$0xf]
    %v87 = vld [vmem:[#allocation5 + $0x8] sm:$0xf]
    %v88 = vld [vmem:[#allocation5 + $0xc] sm:$0xf]
    %v89 = vld [vmem:[#allocation5 + $0x10] sm:$0xf]
    %v90 = vld [vmem:[#allocation5 + $0x14] sm:$0xf]
    %v91 = vld [vmem:[#allocation5 + $0x18] sm:$0xf]
    %v92 = vld [vmem:[#allocation5 + $0x1c] sm:$0xf]
    %v93 = vld [vmem:[#allocation5 + $0x20] sm:$0xf]
    %v94 = vld [vmem:[#allocation5 + $0x24] sm:$0xf]
    %v95 = vld [vmem:[#allocation5 + $0x28] sm:$0xf]
    %v96 = vld [vmem:[#allocation5 + $0x2c] sm:$0xf]
    %v97 = vld [vmem:[#allocation5 + $0x30] sm:$0xf]
    %v98 = vld [vmem:[#allocation5 + $0x34] sm:$0xf]
    %v99 = vld [vmem:[#allocation5 + $0x38] sm:$0xf]
    %v100 = vld [vmem:[#allocation5 + $0x3c] sm:$0xf]
    %v109 = vunpack.c.l.b16 %v77
    %v110 = vunpack.c.l.b16 %v78
    %v111 = vunpack.c.l.b16 %v79
    %v112 = vunpack.c.l.b16 %v80
    %v113 = vunpack.c.l.b16 %v81
    %v114 = vunpack.c.l.b16 %v82
    %v115 = vunpack.c.l.b16 %v83
    %v116 = vunpack.c.l.b16 %v84
    %v117 = vpack.c.b16 %v109, %v109
    %v118 = vpack.c.b16 %v110, %v110
    %v119 = vpack.c.b16 %v111, %v111
    %v120 = vpack.c.b16 %v112, %v112
    %v121 = vpack.c.b16 %v113, %v113
    %v122 = vpack.c.b16 %v114, %v114
    %v123 = vpack.c.b16 %v115, %v115
    %v124 = vpack.c.b16 %v116, %v116
    %v125 = vunpack.c.l.b16 %v117
    %v126 = vunpack.c.l.b16 %v118
    %v127 = vunpack.c.l.b16 %v119
    %v128 = vunpack.c.l.b16 %v120
    %v129 = vunpack.c.l.b16 %v121
    %v130 = vunpack.c.l.b16 %v122
    %v131 = vunpack.c.l.b16 %v123
    %v132 = vunpack.c.l.b16 %v124
    %v133 = vrot.slane %v126, 7
    %vm134 = vcmask 1041409
    %v135 = vsel %vm134, %v133, %v125
    %v136 = vrot.slane %v127, 6
    %vm137 = vcmask 1042434
    %v138 = vsel %vm137, %v136, %v135
    %v139 = vrot.slane %v128, 5
    %vm140 = vcmask 1043459
    %v141 = vsel %vm140, %v139, %v138
    %v142 = vrot.slane %v129, 4
    %vm143 = vcmask 1044484
    %v144 = vsel %vm143, %v142, %v141
    %v145 = vrot.slane %v130, 3
    %vm146 = vcmask 1045509
    %v147 = vsel %vm146, %v145, %v144
    %v148 = vrot.slane %v131, 2
    %vm149 = vcmask 1046534
    %v150 = vsel %vm149, %v148, %v147
    %v151 = vrot.slane %v132, 1
    %vm152 = vcmask 1047559
    %v153 = vsel %vm152, %v151, %v150
    %v154 = vpack.c.b16 %v153, %v153
    %v172 = vunpack.c.l.b16 %v85
    %v173 = vunpack.c.l.b16 %v86
    %v174 = vunpack.c.l.b16 %v87
    %v175 = vunpack.c.l.b16 %v88
    %v176 = vunpack.c.l.b16 %v89
    %v177 = vunpack.c.l.b16 %v90
    %v178 = vunpack.c.l.b16 %v91
    %v179 = vunpack.c.l.b16 %v92
    %v180 = vunpack.c.l.b16 %v93
    %v181 = vunpack.c.l.b16 %v94
    %v182 = vunpack.c.l.b16 %v95
    %v183 = vunpack.c.l.b16 %v96
    %v184 = vunpack.c.l.b16 %v97
    %v185 = vunpack.c.l.b16 %v98
    %v186 = vunpack.c.l.b16 %v99
    %v187 = vunpack.c.l.b16 %v100
    %v188 = vpack.c.b16 %v173, %v172
    %v189 = vpack.c.b16 %v175, %v174
    %v190 = vpack.c.b16 %v177, %v176
    %v191 = vpack.c.b16 %v179, %v178
    %v192 = vpack.c.b16 %v181, %v180
    %v193 = vpack.c.b16 %v183, %v182
    %v194 = vpack.c.b16 %v185, %v184
    %v195 = vpack.c.b16 %v187, %v186
    %204 = vmatprep.subr.bf16.mxu0 0
    %205 = vmatpush1.bf16.msra.mxu0 %v195
    %206 = vmatprep.subr.bf16.mxu0 0
    %207 = vmatpush1.bf16.msra.mxu0 %v194
    %208 = vmatprep.subr.bf16.mxu0 0
    %209 = vmatpush1.bf16.msra.mxu0 %v193
    %210 = vmatprep.subr.bf16.mxu0 0
    %211 = vmatpush1.bf16.msra.mxu0 %v192
    %212 = vmatprep.subr.bf16.mxu0 0
    %213 = vmatpush1.bf16.msra.mxu0 %v191
    %214 = vmatprep.subr.bf16.mxu0 0
    %215 = vmatpush1.bf16.msra.mxu0 %v190
    %216 = vmatprep.subr.bf16.mxu0 0
    %217 = vmatpush1.bf16.msra.mxu0 %v189
    %218 = vmatprep.subr.bf16.mxu0 0
    %219 = vmatpush1.bf16.msra.mxu0 %v188
    %220 = vmatprep.subr.bf16.mxu0 0
    %221 = vmatpush2.bf16.msra.mxu0 0
    %222 = vmatprep.subr.bf16.mxu0 0
    %223 = vmatpush2.bf16.msra.mxu0 0
    %224 = vmatprep.subr.bf16.mxu0 0
    %225 = vmatpush2.bf16.msra.mxu0 0
    %226 = vmatprep.subr.bf16.mxu0 0
    %227 = vmatpush2.bf16.msra.mxu0 0
    %228 = vmatprep.subr.bf16.mxu0 0
    %229 = vmatpush2.bf16.msra.mxu0 0
    %230 = vmatprep.subr.bf16.mxu0 0
    %231 = vmatpush2.bf16.msra.mxu0 0
    %232 = vmatprep.subr.bf16.mxu0 0
    %233 = vmatpush2.bf16.msra.mxu0 0
    %234 = vmatprep.subr.bf16.mxu0 0
    %235 = vmatpush2.bf16.msra.mxu0 0
    %236 = vmatprep.mubr.bf16.mxu0 0
    %237 = vmatmul.mubr.bf16.gmra.mxu0 %v154
    %v238 = vpop.f32.mrf.mxu0
    %v239 = vadd.f32 0.0, %v238
    %v240 = vpop.f32.mrf.mxu0
    %v241 = vpop.f32.mrf.mxu0
    %v242 = vpop.f32.mrf.mxu0
    %243 = vdwg.mxu0
    %v244 = vld [vmem:[#allocation7] sm:$0xff]
    %v245 = vld [vmem:[#allocation7 + $0x8] sm:$0xff]
    %v246 = vld [vmem:[#allocation7 + $0x10] sm:$0xff]
    %v247 = vld [vmem:[#allocation7 + $0x18] sm:$0xff]
    %v248 = vld [vmem:[#allocation7 + $0x20] sm:$0xff]
    %v249 = vld [vmem:[#allocation7 + $0x28] sm:$0xff]
    %v250 = vld [vmem:[#allocation7 + $0x30] sm:$0xff]
    %v251 = vld [vmem:[#allocation7 + $0x38] sm:$0xff]
    %v252 = vld [vmem:[#allocation7 + $0x40] sm:$0xff]
    %v253 = vld [vmem:[#allocation7 + $0x48] sm:$0xff]
    %v254 = vld [vmem:[#allocation7 + $0x50] sm:$0xff]
    %v255 = vld [vmem:[#allocation7 + $0x58] sm:$0xff]
    %v256 = vld [vmem:[#allocation7 + $0x60] sm:$0xff]
    %v257 = vld [vmem:[#allocation7 + $0x68] sm:$0xff]
    %v258 = vld [vmem:[#allocation7 + $0x70] sm:$0xff]
    %v259 = vld [vmem:[#allocation7 + $0x78] sm:$0xff]
    %v260 = vpack.c.b16 %v110, %v109
    %v261 = vpack.c.b16 %v112, %v111
    %v262 = vpack.c.b16 %v114, %v113
    %v263 = vpack.c.b16 %v116, %v115
    %v284 = vunpack.c.l.b16 %v244
    %v285 = vunpack.c.h.b16 %v244
    %v286 = vunpack.c.l.b16 %v245
    %v287 = vunpack.c.h.b16 %v245
    %v288 = vunpack.c.l.b16 %v246
    %v289 = vunpack.c.h.b16 %v246
    %v290 = vunpack.c.l.b16 %v247
    %v291 = vunpack.c.h.b16 %v247
    %v292 = vunpack.c.l.b16 %v248
    %v293 = vunpack.c.h.b16 %v248
    %v294 = vunpack.c.l.b16 %v249
    %v295 = vunpack.c.h.b16 %v249
    %v296 = vunpack.c.l.b16 %v250
    %v297 = vunpack.c.h.b16 %v250
    %v298 = vunpack.c.l.b16 %v251
    %v299 = vunpack.c.h.b16 %v251
    %v300 = vunpack.c.l.b16 %v252
    %v301 = vunpack.c.h.b16 %v252
    %v302 = vunpack.c.l.b16 %v253
    %v303 = vunpack.c.h.b16 %v253
    %v304 = vunpack.c.l.b16 %v254
    %v305 = vunpack.c.h.b16 %v254
    %v306 = vunpack.c.l.b16 %v255
    %v307 = vunpack.c.h.b16 %v255
    %v308 = vunpack.c.l.b16 %v256
    %v309 = vunpack.c.h.b16 %v256
    %v310 = vunpack.c.l.b16 %v257
    %v311 = vunpack.c.h.b16 %v257
    %v312 = vunpack.c.l.b16 %v258
    %v313 = vunpack.c.h.b16 %v258
    %v314 = vunpack.c.l.b16 %v259
    %v315 = vunpack.c.h.b16 %v259
    %v316 = vpack.c.b16 %v286, %v284
    %v317 = vpack.c.b16 %v287, %v285
    %v318 = vpack.c.b16 %v290, %v288
    %v319 = vpack.c.b16 %v291, %v289
    %v320 = vpack.c.b16 %v294, %v292
    %v321 = vpack.c.b16 %v295, %v293
    %v322 = vpack.c.b16 %v298, %v296
    %v323 = vpack.c.b16 %v299, %v297
    %v324 = vpack.c.b16 %v302, %v300
    %v325 = vpack.c.b16 %v303, %v301
    %v326 = vpack.c.b16 %v306, %v304
    %v327 = vpack.c.b16 %v307, %v305
    %v328 = vpack.c.b16 %v310, %v308
    %v329 = vpack.c.b16 %v311, %v309
    %v330 = vpack.c.b16 %v314, %v312
    %v331 = vpack.c.b16 %v315, %v313
    %348 = vmatprep.subr.bf16.mxu0 %v331
    %349 = vmatpush1.bf16.msra.mxu0 %v330
    %350 = vmatprep.subr.bf16.mxu0 %v329
    %351 = vmatpush1.bf16.msra.mxu0 %v328
    %352 = vmatprep.subr.bf16.mxu0 %v327
    %353 = vmatpush1.bf16.msra.mxu0 %v326
    %354 = vmatprep.subr.bf16.mxu0 %v325
    %355 = vmatpush1.bf16.msra.mxu0 %v324
    %356 = vmatprep.subr.bf16.mxu0 %v323
    %357 = vmatpush1.bf16.msra.mxu0 %v322
    %358 = vmatprep.subr.bf16.mxu0 %v321
    %359 = vmatpush1.bf16.msra.mxu0 %v320
    %360 = vmatprep.subr.bf16.mxu0 %v319
    %361 = vmatpush1.bf16.msra.mxu0 %v318
    %362 = vmatprep.subr.bf16.mxu0 %v317
    %363 = vmatpush1.bf16.msra.mxu0 %v316
    %364 = vmatprep.subr.bf16.mxu0 0
    %365 = vmatpush2.bf16.msra.mxu0 0
    %366 = vmatprep.subr.bf16.mxu0 0
    %367 = vmatpush2.bf16.msra.mxu0 0
    %368 = vmatprep.subr.bf16.mxu0 0
    %369 = vmatpush2.bf16.msra.mxu0 0
    %370 = vmatprep.subr.bf16.mxu0 0
    %371 = vmatpush2.bf16.msra.mxu0 0
    %372 = vmatprep.subr.bf16.mxu0 0
    %373 = vmatpush2.bf16.msra.mxu0 0
    %374 = vmatprep.subr.bf16.mxu0 0
    %375 = vmatpush2.bf16.msra.mxu0 0
    %376 = vmatprep.subr.bf16.mxu0 0
    %377 = vmatpush2.bf16.msra.mxu0 0
    %378 = vmatprep.subr.bf16.mxu0 0
    %379 = vmatpush2.bf16.msra.mxu0 0
    %380 = vmatprep.mubr.bf16.mxu0 0
    %381 = vmatmul.mubr.bf16.gmra.mxu0 %v260
    %v382 = vpop.f32.mrf.mxu0
    %v383 = vadd.f32 0.0, %v382
    %v384 = vpop.f32.mrf.mxu0
    %v385 = vadd.f32 0.0, %v384
    %v386 = vpop.f32.mrf.mxu0
    %v387 = vadd.f32 0.0, %v386
    %v388 = vpop.f32.mrf.mxu0
    %v389 = vadd.f32 0.0, %v388
    %390 = vmatprep.mubr.bf16.mxu0 0
    %391 = vmatmul.mubr.bf16.gmra.mxu0 %v261
    %v392 = vpop.f32.mrf.mxu0
    %v393 = vadd.f32 0.0, %v392
    %v394 = vpop.f32.mrf.mxu0
    %v395 = vadd.f32 0.0, %v394
    %v396 = vpop.f32.mrf.mxu0
    %v397 = vadd.f32 0.0, %v396
    %v398 = vpop.f32.mrf.mxu0
    %v399 = vadd.f32 0.0, %v398
    %400 = vmatprep.mubr.bf16.mxu0 0
    %401 = vmatmul.mubr.bf16.gmra.mxu0 %v262
    %v402 = vpop.f32.mrf.mxu0
    %v403 = vadd.f32 0.0, %v402
    %v404 = vpop.f32.mrf.mxu0
    %v405 = vadd.f32 0.0, %v404
    %v406 = vpop.f32.mrf.mxu0
    %v407 = vadd.f32 0.0, %v406
    %v408 = vpop.f32.mrf.mxu0
    %v409 = vadd.f32 0.0, %v408
    %410 = vmatprep.mubr.bf16.mxu0 0
    %411 = vmatmul.mubr.bf16.gmra.mxu0 %v263
    %v412 = vpop.f32.mrf.mxu0
    %v413 = vadd.f32 0.0, %v412
    %v414 = vpop.f32.mrf.mxu0
    %v415 = vadd.f32 0.0, %v414
    %v416 = vpop.f32.mrf.mxu0
    %v417 = vadd.f32 0.0, %v416
    %v418 = vpop.f32.mrf.mxu0
    %v419 = vadd.f32 0.0, %v418
    %420 = vdwg.mxu0
    %v421 = vpack.c.bf16 %v387, %v383
    %v422 = vpack.c.bf16 %v389, %v385
    %v423 = vpack.c.bf16 %v397, %v393
    %v424 = vpack.c.bf16 %v399, %v395
    %v425 = vpack.c.bf16 %v407, %v403
    %v426 = vpack.c.bf16 %v409, %v405
    %v427 = vpack.c.bf16 %v417, %v413
    %v428 = vpack.c.bf16 %v419, %v415
    %v433 = vunpack.c.l.b16 %v421
    %v434 = vunpack.c.h.b16 %v421
    %v435 = vunpack.c.l.b16 %v423
    %v436 = vunpack.c.h.b16 %v423
    %v437 = vunpack.c.l.b16 %v425
    %v438 = vunpack.c.h.b16 %v425
    %v439 = vunpack.c.l.b16 %v427
    %v440 = vunpack.c.h.b16 %v427
    %v441 = vpack.c.b16 %v433, %v433
    %v442 = vpack.c.b16 %v434, %v434
    %v443 = vpack.c.b16 %v435, %v435
    %v444 = vpack.c.b16 %v436, %v436
    %v445 = vpack.c.b16 %v437, %v437
    %v446 = vpack.c.b16 %v438, %v438
    %v447 = vpack.c.b16 %v439, %v439
    %v448 = vpack.c.b16 %v440, %v440
    %v461 = vunpack.c.l.b16 %v422
    %v462 = vunpack.c.h.b16 %v422
    %v463 = vunpack.c.l.b16 %v424
    %v464 = vunpack.c.h.b16 %v424
    %v465 = vunpack.c.l.b16 %v426
    %v466 = vunpack.c.h.b16 %v426
    %v467 = vunpack.c.l.b16 %v428
    %v468 = vunpack.c.h.b16 %v428
    %v469 = vpack.c.b16 %v461, %v461
    %v470 = vpack.c.b16 %v462, %v462
    %v471 = vpack.c.b16 %v463, %v463
    %v472 = vpack.c.b16 %v464, %v464
    %v473 = vpack.c.b16 %v465, %v465
    %v474 = vpack.c.b16 %v466, %v466
    %v475 = vpack.c.b16 %v467, %v467
    %v476 = vpack.c.b16 %v468, %v468
    %v477 = vlaneseq
    %v478 = vshrl.u32 %v477, 7
    %v479 = vlaneseq
    %v480 = vand.u32 %v479, 127
    %v481 = vmul.u32 %v478, 16
    %vm482 = vcmp.ge.s32.totalorder %v480, %v481
    %v483 = vadd.s32 %v481, 16
    %vm484 = vcmp.lt.s32.totalorder %v480, %v483
    %vm485 = vmand %vm482, %vm484
    %v486 = vsel %vm485, 1, 0
    %v487 = vcvt.s32.f32 %v486
    %v489 = vcombine.high %v239, %v239
    %v491 = vunpack.c.l.s4 1966171168
    %v492 = vunpack.c.0.s8 %v491
    %v493 = vlaneseq
    %v494 = vshrl.u32 %v493, 7
    %v495 = vsub.s32 %v492, %v494
    %v496 = vrot.slane %v239, %v495
    %v498 = vunpack.c.l.s4 1966171168
    %v499 = vunpack.c.0.s8 %v498
    %v500 = vlaneseq
    %v501 = vshrl.u32 %v500, 7
    %v502 = vsub.s32 %v499, %v501
    %v503 = vrot.slane %v489, %v502
    %v504 = vcombine.high %v496, %v496
    %v505 = vcombine.high %v503, %v503
    %v507 = vunpack.c.l.s4 1966171168
    %v508 = vunpack.c.0.s8 %v507
    %v509 = vlaneseq
    %v510 = vshrl.u32 %v509, 7
    %v511 = vsub.s32 %v508, %v510
    %v512 = vrot.slane %v496, %v511
    %v514 = vunpack.c.l.s4 1966171168
    %v515 = vunpack.c.0.s8 %v514
    %v516 = vlaneseq
    %v517 = vshrl.u32 %v516, 7
    %v518 = vsub.s32 %v515, %v517
    %v519 = vrot.slane %v503, %v518
    %v521 = vunpack.c.l.s4 1966171168
    %v522 = vunpack.c.0.s8 %v521
    %v523 = vlaneseq
    %v524 = vshrl.u32 %v523, 7
    %v525 = vsub.s32 %v522, %v524
    %v526 = vrot.slane %v504, %v525
    %v528 = vunpack.c.l.s4 1966171168
    %v529 = vunpack.c.0.s8 %v528
    %v530 = vlaneseq
    %v531 = vshrl.u32 %v530, 7
    %v532 = vsub.s32 %v529, %v531
    %v533 = vrot.slane %v505, %v532
    %v534 = vcombine.high %v512, %v512
    %v535 = vcombine.high %v519, %v519
    %v536 = vcombine.high %v526, %v526
    %v537 = vcombine.high %v533, %v533
    %v538 = vlaneseq
    %v539 = vshrl.u32 %v538, 7
    %v540 = vsub.s32 0, %v539
    %v541 = vrot.slane %v512, %v540
    %v542 = vlaneseq
    %v543 = vshrl.u32 %v542, 7
    %v544 = vsub.s32 0, %v543
    %v545 = vrot.slane %v526, %v544
    %v546 = vlaneseq
    %v547 = vshrl.u32 %v546, 7
    %v548 = vsub.s32 0, %v547
    %v549 = vrot.slane %v534, %v548
    %v550 = vlaneseq
    %v551 = vshrl.u32 %v550, 7
    %v552 = vsub.s32 0, %v551
    %v553 = vrot.slane %v536, %v552
    %v554 = vlaneseq
    %v555 = vshrl.u32 %v554, 7
    %v556 = vsub.s32 0, %v555
    %v557 = vrot.slane %v519, %v556
    %v558 = vlaneseq
    %v559 = vshrl.u32 %v558, 7
    %v560 = vsub.s32 0, %v559
    %v561 = vrot.slane %v533, %v560
    %v562 = vlaneseq
    %v563 = vshrl.u32 %v562, 7
    %v564 = vsub.s32 0, %v563
    %v565 = vrot.slane %v535, %v564
    %v566 = vlaneseq
    %v567 = vshrl.u32 %v566, 7
    %v568 = vsub.s32 0, %v567
    %v569 = vrot.slane %v537, %v568
    %v578 = vmul.f32 %v541, %v487
    %v579 = vmul.f32 %v545, %v487
    %v580 = vmul.f32 %v549, %v487
    %v581 = vmul.f32 %v553, %v487
    %v582 = vmul.f32 %v557, %v487
    %v583 = vmul.f32 %v561, %v487
    %v584 = vmul.f32 %v565, %v487
    %v585 = vmul.f32 %v569, %v487
    %v586 = vpack.c.bf16 %v578, %v578
    %v587 = vpack.c.bf16 %v579, %v579
    %v588 = vpack.c.bf16 %v580, %v580
    %v589 = vpack.c.bf16 %v581, %v581
    %v590 = vpack.c.bf16 %v582, %v582
    %v591 = vpack.c.bf16 %v583, %v583
    %v592 = vpack.c.bf16 %v584, %v584
    %v593 = vpack.c.bf16 %v585, %v585
    %594 = vmatprep.subr.bf16.mxu0 0
    %595 = vmatpush1.bf16.xpose.msra.mxu0 0
    %596 = vmatprep.subr.bf16.mxu0 0
    %597 = vmatpush1.bf16.xpose.msra.mxu0 0
    %598 = vmatprep.subr.bf16.mxu0 0
    %599 = vmatpush1.bf16.xpose.msra.mxu0 0
    %600 = vmatprep.subr.bf16.mxu0 0
    %601 = vmatpush1.bf16.xpose.msra.mxu0 0
    %602 = vmatprep.subr.bf16.mxu0 0
    %603 = vmatpush1.bf16.xpose.msra.mxu0 0
    %604 = vmatprep.subr.bf16.mxu0 0
    %605 = vmatpush1.bf16.xpose.msra.mxu0 0
    %606 = vmatprep.subr.bf16.mxu0 0
    %607 = vmatpush1.bf16.xpose.msra.mxu0 0
    %608 = vmatprep.subr.bf16.mxu0 0
    %609 = vmatpush1.bf16.xpose.msra.mxu0 %v441
    %610 = vmatprep.subr.bf16.mxu0 0
    %611 = vmatpush2.bf16.xpose.msra.mxu0 0
    %612 = vmatprep.subr.bf16.mxu0 0
    %613 = vmatpush2.bf16.xpose.msra.mxu0 0
    %614 = vmatprep.subr.bf16.mxu0 0
    %615 = vmatpush2.bf16.xpose.msra.mxu0 0
    %616 = vmatprep.subr.bf16.mxu0 0
    %617 = vmatpush2.bf16.xpose.msra.mxu0 0
    %618 = vmatprep.subr.bf16.mxu0 0
    %619 = vmatpush2.bf16.xpose.msra.mxu0 0
    %620 = vmatprep.subr.bf16.mxu0 0
    %621 = vmatpush2.bf16.xpose.msra.mxu0 0
    %622 = vmatprep.subr.bf16.mxu0 0
    %623 = vmatpush2.bf16.xpose.msra.mxu0 0
    %624 = vmatprep.subr.bf16.mxu0 0
    %625 = vmatpush2.bf16.xpose.msra.mxu0 0
    %626 = vmatprep.mubr.bf16.mxu0 0
    %627 = vmatmul.mubr.bf16.gmra.mxu0 %v586
    %v628 = vpop.f32.mrf.mxu0
    %v629 = vadd.f32 0.0, %v628
    %v630 = vpop.f32.mrf.mxu0
    %v631 = vpop.f32.mrf.mxu0
    %v632 = vpop.f32.mrf.mxu0
    %633 = vdwg.mxu0
    %634 = vmatprep.subr.bf16.mxu0 0
    %635 = vmatpush1.bf16.xpose.msra.mxu0 0
    %636 = vmatprep.subr.bf16.mxu0 0
    %637 = vmatpush1.bf16.xpose.msra.mxu0 0
    %638 = vmatprep.subr.bf16.mxu0 0
    %639 = vmatpush1.bf16.xpose.msra.mxu0 0
    %640 = vmatprep.subr.bf16.mxu0 0
    %641 = vmatpush1.bf16.xpose.msra.mxu0 0
    %642 = vmatprep.subr.bf16.mxu0 0
    %643 = vmatpush1.bf16.xpose.msra.mxu0 0
    %644 = vmatprep.subr.bf16.mxu0 0
    %645 = vmatpush1.bf16.xpose.msra.mxu0 0
    %646 = vmatprep.subr.bf16.mxu0 0
    %647 = vmatpush1.bf16.xpose.msra.mxu0 0
    %648 = vmatprep.subr.bf16.mxu0 0
    %649 = vmatpush1.bf16.xpose.msra.mxu0 %v442
    %650 = vmatprep.subr.bf16.mxu0 0
    %651 = vmatpush2.bf16.xpose.msra.mxu0 0
    %652 = vmatprep.subr.bf16.mxu0 0
    %653 = vmatpush2.bf16.xpose.msra.mxu0 0
    %654 = vmatprep.subr.bf16.mxu0 0
    %655 = vmatpush2.bf16.xpose.msra.mxu0 0
    %656 = vmatprep.subr.bf16.mxu0 0
    %657 = vmatpush2.bf16.xpose.msra.mxu0 0
    %658 = vmatprep.subr.bf16.mxu0 0
    %659 = vmatpush2.bf16.xpose.msra.mxu0 0
    %660 = vmatprep.subr.bf16.mxu0 0
    %661 = vmatpush2.bf16.xpose.msra.mxu0 0
    %662 = vmatprep.subr.bf16.mxu0 0
    %663 = vmatpush2.bf16.xpose.msra.mxu0 0
    %664 = vmatprep.subr.bf16.mxu0 0
    %665 = vmatpush2.bf16.xpose.msra.mxu0 0
    %666 = vmatprep.mubr.bf16.mxu0 0
    %667 = vmatmul.mubr.bf16.gmra.mxu0 %v587
    %v668 = vpop.f32.mrf.mxu0
    %v669 = vadd.f32 0.0, %v668
    %v670 = vpop.f32.mrf.mxu0
    %v671 = vpop.f32.mrf.mxu0
    %v672 = vpop.f32.mrf.mxu0
    %673 = vdwg.mxu0
    %674 = vmatprep.subr.bf16.mxu0 0
    %675 = vmatpush1.bf16.xpose.msra.mxu0 0
    %676 = vmatprep.subr.bf16.mxu0 0
    %677 = vmatpush1.bf16.xpose.msra.mxu0 0
    %678 = vmatprep.subr.bf16.mxu0 0
    %679 = vmatpush1.bf16.xpose.msra.mxu0 0
    %680 = vmatprep.subr.bf16.mxu0 0
    %681 = vmatpush1.bf16.xpose.msra.mxu0 0
    %682 = vmatprep.subr.bf16.mxu0 0
    %683 = vmatpush1.bf16.xpose.msra.mxu0 0
    %684 = vmatprep.subr.bf16.mxu0 0
    %685 = vmatpush1.bf16.xpose.msra.mxu0 0
    %686 = vmatprep.subr.bf16.mxu0 0
    %687 = vmatpush1.bf16.xpose.msra.mxu0 0
    %688 = vmatprep.subr.bf16.mxu0 0
    %689 = vmatpush1.bf16.xpose.msra.mxu0 %v443
    %690 = vmatprep.subr.bf16.mxu0 0
    %691 = vmatpush2.bf16.xpose.msra.mxu0 0
    %692 = vmatprep.subr.bf16.mxu0 0
    %693 = vmatpush2.bf16.xpose.msra.mxu0 0
    %694 = vmatprep.subr.bf16.mxu0 0
    %695 = vmatpush2.bf16.xpose.msra.mxu0 0
    %696 = vmatprep.subr.bf16.mxu0 0
    %697 = vmatpush2.bf16.xpose.msra.mxu0 0
    %698 = vmatprep.subr.bf16.mxu0 0
    %699 = vmatpush2.bf16.xpose.msra.mxu0 0
    %700 = vmatprep.subr.bf16.mxu0 0
    %701 = vmatpush2.bf16.xpose.msra.mxu0 0
    %702 = vmatprep.subr.bf16.mxu0 0
    %703 = vmatpush2.bf16.xpose.msra.mxu0 0
    %704 = vmatprep.subr.bf16.mxu0 0
    %705 = vmatpush2.bf16.xpose.msra.mxu0 0
    %706 = vmatprep.mubr.bf16.mxu0 0
    %707 = vmatmul.mubr.bf16.gmra.mxu0 %v588
    %v708 = vpop.f32.mrf.mxu0
    %v709 = vadd.f32 0.0, %v708
    %v710 = vpop.f32.mrf.mxu0
    %v711 = vpop.f32.mrf.mxu0
    %v712 = vpop.f32.mrf.mxu0
    %713 = vdwg.mxu0
    %714 = vmatprep.subr.bf16.mxu0 0
    %715 = vmatpush1.bf16.xpose.msra.mxu0 0
    %716 = vmatprep.subr.bf16.mxu0 0
    %717 = vmatpush1.bf16.xpose.msra.mxu0 0
    %718 = vmatprep.subr.bf16.mxu0 0
    %719 = vmatpush1.bf16.xpose.msra.mxu0 0
    %720 = vmatprep.subr.bf16.mxu0 0
    %721 = vmatpush1.bf16.xpose.msra.mxu0 0
    %722 = vmatprep.subr.bf16.mxu0 0
    %723 = vmatpush1.bf16.xpose.msra.mxu0 0
    %724 = vmatprep.subr.bf16.mxu0 0
    %725 = vmatpush1.bf16.xpose.msra.mxu0 0
    %726 = vmatprep.subr.bf16.mxu0 0
    %727 = vmatpush1.bf16.xpose.msra.mxu0 0
    %728 = vmatprep.subr.bf16.mxu0 0
    %729 = vmatpush1.bf16.xpose.msra.mxu0 %v444
    %730 = vmatprep.subr.bf16.mxu0 0
    %731 = vmatpush2.bf16.xpose.msra.mxu0 0
    %732 = vmatprep.subr.bf16.mxu0 0
    %733 = vmatpush2.bf16.xpose.msra.mxu0 0
    %734 = vmatprep.subr.bf16.mxu0 0
    %735 = vmatpush2.bf16.xpose.msra.mxu0 0
    %736 = vmatprep.subr.bf16.mxu0 0
    %737 = vmatpush2.bf16.xpose.msra.mxu0 0
    %738 = vmatprep.subr.bf16.mxu0 0
    %739 = vmatpush2.bf16.xpose.msra.mxu0 0
    %740 = vmatprep.subr.bf16.mxu0 0
    %741 = vmatpush2.bf16.xpose.msra.mxu0 0
    %742 = vmatprep.subr.bf16.mxu0 0
    %743 = vmatpush2.bf16.xpose.msra.mxu0 0
    %744 = vmatprep.subr.bf16.mxu0 0
    %745 = vmatpush2.bf16.xpose.msra.mxu0 0
    %746 = vmatprep.mubr.bf16.mxu0 0
    %747 = vmatmul.mubr.bf16.gmra.mxu0 %v589
    %v748 = vpop.f32.mrf.mxu0
    %v749 = vadd.f32 0.0, %v748
    %v750 = vpop.f32.mrf.mxu0
    %v751 = vpop.f32.mrf.mxu0
    %v752 = vpop.f32.mrf.mxu0
    %753 = vdwg.mxu0
    %754 = vmatprep.subr.bf16.mxu0 0
    %755 = vmatpush1.bf16.xpose.msra.mxu0 0
    %756 = vmatprep.subr.bf16.mxu0 0
    %757 = vmatpush1.bf16.xpose.msra.mxu0 0
    %758 = vmatprep.subr.bf16.mxu0 0
    %759 = vmatpush1.bf16.xpose.msra.mxu0 0
    %760 = vmatprep.subr.bf16.mxu0 0
    %761 = vmatpush1.bf16.xpose.msra.mxu0 0
    %762 = vmatprep.subr.bf16.mxu0 0
    %763 = vmatpush1.bf16.xpose.msra.mxu0 0
    %764 = vmatprep.subr.bf16.mxu0 0
    %765 = vmatpush1.bf16.xpose.msra.mxu0 0
    %766 = vmatprep.subr.bf16.mxu0 0
    %767 = vmatpush1.bf16.xpose.msra.mxu0 0
    %768 = vmatprep.subr.bf16.mxu0 0
    %769 = vmatpush1.bf16.xpose.msra.mxu0 %v445
    %770 = vmatprep.subr.bf16.mxu0 0
    %771 = vmatpush2.bf16.xpose.msra.mxu0 0
    %772 = vmatprep.subr.bf16.mxu0 0
    %773 = vmatpush2.bf16.xpose.msra.mxu0 0
    %774 = vmatprep.subr.bf16.mxu0 0
    %775 = vmatpush2.bf16.xpose.msra.mxu0 0
    %776 = vmatprep.subr.bf16.mxu0 0
    %777 = vmatpush2.bf16.xpose.msra.mxu0 0
    %778 = vmatprep.subr.bf16.mxu0 0
    %779 = vmatpush2.bf16.xpose.msra.mxu0 0
    %780 = vmatprep.subr.bf16.mxu0 0
    %781 = vmatpush2.bf16.xpose.msra.mxu0 0
    %782 = vmatprep.subr.bf16.mxu0 0
    %783 = vmatpush2.bf16.xpose.msra.mxu0 0
    %784 = vmatprep.subr.bf16.mxu0 0
    %785 = vmatpush2.bf16.xpose.msra.mxu0 0
    %786 = vmatprep.mubr.bf16.mxu0 0
    %787 = vmatmul.mubr.bf16.gmra.mxu0 %v590
    %v788 = vpop.f32.mrf.mxu0
    %v789 = vadd.f32 0.0, %v788
    %v790 = vpop.f32.mrf.mxu0
    %v791 = vpop.f32.mrf.mxu0
    %v792 = vpop.f32.mrf.mxu0
    %793 = vdwg.mxu0
    %794 = vmatprep.subr.bf16.mxu0 0
    %795 = vmatpush1.bf16.xpose.msra.mxu0 0
    %796 = vmatprep.subr.bf16.mxu0 0
    %797 = vmatpush1.bf16.xpose.msra.mxu0 0
    %798 = vmatprep.subr.bf16.mxu0 0
    %799 = vmatpush1.bf16.xpose.msra.mxu0 0
    %800 = vmatprep.subr.bf16.mxu0 0
    %801 = vmatpush1.bf16.xpose.msra.mxu0 0
    %802 = vmatprep.subr.bf16.mxu0 0
    %803 = vmatpush1.bf16.xpose.msra.mxu0 0
    %804 = vmatprep.subr.bf16.mxu0 0
    %805 = vmatpush1.bf16.xpose.msra.mxu0 0
    %806 = vmatprep.subr.bf16.mxu0 0
    %807 = vmatpush1.bf16.xpose.msra.mxu0 0
    %808 = vmatprep.subr.bf16.mxu0 0
    %809 = vmatpush1.bf16.xpose.msra.mxu0 %v446
    %810 = vmatprep.subr.bf16.mxu0 0
    %811 = vmatpush2.bf16.xpose.msra.mxu0 0
    %812 = vmatprep.subr.bf16.mxu0 0
    %813 = vmatpush2.bf16.xpose.msra.mxu0 0
    %814 = vmatprep.subr.bf16.mxu0 0
    %815 = vmatpush2.bf16.xpose.msra.mxu0 0
    %816 = vmatprep.subr.bf16.mxu0 0
    %817 = vmatpush2.bf16.xpose.msra.mxu0 0
    %818 = vmatprep.subr.bf16.mxu0 0
    %819 = vmatpush2.bf16.xpose.msra.mxu0 0
    %820 = vmatprep.subr.bf16.mxu0 0
    %821 = vmatpush2.bf16.xpose.msra.mxu0 0
    %822 = vmatprep.subr.bf16.mxu0 0
    %823 = vmatpush2.bf16.xpose.msra.mxu0 0
    %824 = vmatprep.subr.bf16.mxu0 0
    %825 = vmatpush2.bf16.xpose.msra.mxu0 0
    %826 = vmatprep.mubr.bf16.mxu0 0
    %827 = vmatmul.mubr.bf16.gmra.mxu0 %v591
    %v828 = vpop.f32.mrf.mxu0
    %v829 = vadd.f32 0.0, %v828
    %v830 = vpop.f32.mrf.mxu0
    %v831 = vpop.f32.mrf.mxu0
    %v832 = vpop.f32.mrf.mxu0
    %833 = vdwg.mxu0
    %834 = vmatprep.subr.bf16.mxu0 0
    %835 = vmatpush1.bf16.xpose.msra.mxu0 0
    %836 = vmatprep.subr.bf16.mxu0 0
    %837 = vmatpush1.bf16.xpose.msra.mxu0 0
    %838 = vmatprep.subr.bf16.mxu0 0
    %839 = vmatpush1.bf16.xpose.msra.mxu0 0
    %840 = vmatprep.subr.bf16.mxu0 0
    %841 = vmatpush1.bf16.xpose.msra.mxu0 0
    %842 = vmatprep.subr.bf16.mxu0 0
    %843 = vmatpush1.bf16.xpose.msra.mxu0 0
    %844 = vmatprep.subr.bf16.mxu0 0
    %845 = vmatpush1.bf16.xpose.msra.mxu0 0
    %846 = vmatprep.subr.bf16.mxu0 0
    %847 = vmatpush1.bf16.xpose.msra.mxu0 0
    %848 = vmatprep.subr.bf16.mxu0 0
    %849 = vmatpush1.bf16.xpose.msra.mxu0 %v447
    %850 = vmatprep.subr.bf16.mxu0 0
    %851 = vmatpush2.bf16.xpose.msra.mxu0 0
    %852 = vmatprep.subr.bf16.mxu0 0
    %853 = vmatpush2.bf16.xpose.msra.mxu0 0
    %854 = vmatprep.subr.bf16.mxu0 0
    %855 = vmatpush2.bf16.xpose.msra.mxu0 0
    %856 = vmatprep.subr.bf16.mxu0 0
    %857 = vmatpush2.bf16.xpose.msra.mxu0 0
    %858 = vmatprep.subr.bf16.mxu0 0
    %859 = vmatpush2.bf16.xpose.msra.mxu0 0
    %860 = vmatprep.subr.bf16.mxu0 0
    %861 = vmatpush2.bf16.xpose.msra.mxu0 0
    %862 = vmatprep.subr.bf16.mxu0 0
    %863 = vmatpush2.bf16.xpose.msra.mxu0 0
    %864 = vmatprep.subr.bf16.mxu0 0
    %865 = vmatpush2.bf16.xpose.msra.mxu0 0
    %866 = vmatprep.mubr.bf16.mxu0 0
    %867 = vmatmul.mubr.bf16.gmra.mxu0 %v592
    %v868 = vpop.f32.mrf.mxu0
    %v869 = vadd.f32 0.0, %v868
    %v870 = vpop.f32.mrf.mxu0
    %v871 = vpop.f32.mrf.mxu0
    %v872 = vpop.f32.mrf.mxu0
    %873 = vdwg.mxu0
    %874 = vmatprep.subr.bf16.mxu0 0
    %875 = vmatpush1.bf16.xpose.msra.mxu0 0
    %876 = vmatprep.subr.bf16.mxu0 0
    %877 = vmatpush1.bf16.xpose.msra.mxu0 0
    %878 = vmatprep.subr.bf16.mxu0 0
    %879 = vmatpush1.bf16.xpose.msra.mxu0 0
    %880 = vmatprep.subr.bf16.mxu0 0
    %881 = vmatpush1.bf16.xpose.msra.mxu0 0
    %882 = vmatprep.subr.bf16.mxu0 0
    %883 = vmatpush1.bf16.xpose.msra.mxu0 0
    %884 = vmatprep.subr.bf16.mxu0 0
    %885 = vmatpush1.bf16.xpose.msra.mxu0 0
    %886 = vmatprep.subr.bf16.mxu0 0
    %887 = vmatpush1.bf16.xpose.msra.mxu0 0
    %888 = vmatprep.subr.bf16.mxu0 0
    %889 = vmatpush1.bf16.xpose.msra.mxu0 %v448
    %890 = vmatprep.subr.bf16.mxu0 0
    %891 = vmatpush2.bf16.xpose.msra.mxu0 0
    %892 = vmatprep.subr.bf16.mxu0 0
    %893 = vmatpush2.bf16.xpose.msra.mxu0 0
    %894 = vmatprep.subr.bf16.mxu0 0
    %895 = vmatpush2.bf16.xpose.msra.mxu0 0
    %896 = vmatprep.subr.bf16.mxu0 0
    %897 = vmatpush2.bf16.xpose.msra.mxu0 0
    %898 = vmatprep.subr.bf16.mxu0 0
    %899 = vmatpush2.bf16.xpose.msra.mxu0 0
    %900 = vmatprep.subr.bf16.mxu0 0
    %901 = vmatpush2.bf16.xpose.msra.mxu0 0
    %902 = vmatprep.subr.bf16.mxu0 0
    %903 = vmatpush2.bf16.xpose.msra.mxu0 0
    %904 = vmatprep.subr.bf16.mxu0 0
    %905 = vmatpush2.bf16.xpose.msra.mxu0 0
    %906 = vmatprep.mubr.bf16.mxu0 0
    %907 = vmatmul.mubr.bf16.gmra.mxu0 %v593
    %v908 = vpop.f32.mrf.mxu0
    %v909 = vadd.f32 0.0, %v908
    %v910 = vpop.f32.mrf.mxu0
    %v911 = vpop.f32.mrf.mxu0
    %v912 = vpop.f32.mrf.mxu0
    %913 = vdwg.mxu0
    %vm914 = vcmask 64512
    %v915 = vsel %vm914, %v629, -inf
    %916 = vmax.xlane.f32.xlu0 %v915
    %v917 = vpop.xlane.xlu0 %916
    %v918 = vsel %vm914, %v669, -inf
    %919 = vmax.xlane.f32.xlu0 %v918
    %v920 = vpop.xlane.xlu0 %919
    %v921 = vsel %vm914, %v709, -inf
    %922 = vmax.xlane.f32.xlu0 %v921
    %v923 = vpop.xlane.xlu0 %922
    %v924 = vsel %vm914, %v749, -inf
    %925 = vmax.xlane.f32.xlu0 %v924
    %v926 = vpop.xlane.xlu0 %925
    %v927 = vsel %vm914, %v789, -inf
    %928 = vmax.xlane.f32.xlu0 %v927
    %v929 = vpop.xlane.xlu0 %928
    %v930 = vsel %vm914, %v829, -inf
    %931 = vmax.xlane.f32.xlu0 %v930
    %v932 = vpop.xlane.xlu0 %931
    %v933 = vsel %vm914, %v869, -inf
    %934 = vmax.xlane.f32.xlu0 %v933
    %v935 = vpop.xlane.xlu0 %934
    %v936 = vsel %vm914, %v909, -inf
    %937 = vmax.xlane.f32.xlu0 %v936
    %v938 = vpop.xlane.xlu0 %937
    %v939 = vsub.f32 %v629, %v917
    %v940 = vsub.f32 %v669, %v920
    %v941 = vsub.f32 %v709, %v923
    %v942 = vsub.f32 %v749, %v926
    %v943 = vsub.f32 %v789, %v929
    %v944 = vsub.f32 %v829, %v932
    %v945 = vsub.f32 %v869, %v935
    %v946 = vsub.f32 %v909, %v938
    %v947 = vmul.f32 %v939, 1.442695
    %v948 = vpow.pop %v947
    %v949 = vmul.f32 %v940, 1.442695
    %v950 = vpow.pop %v949
    %v951 = vmul.f32 %v941, 1.442695
    %v952 = vpow.pop %v951
    %v953 = vmul.f32 %v942, 1.442695
    %v954 = vpow.pop %v953
    %v955 = vmul.f32 %v943, 1.442695
    %v956 = vpow.pop %v955
    %v957 = vmul.f32 %v944, 1.442695
    %v958 = vpow.pop %v957
    %v959 = vmul.f32 %v945, 1.442695
    %v960 = vpow.pop %v959
    %v961 = vmul.f32 %v946, 1.442695
    %v962 = vpow.pop %v961
    %v963 = vsel %vm914, %v948, 0.0
    %964 = vadd.xlane.f32.xlu0 %v963
    %v965 = vpop.xlane.xlu0 %964
    %v966 = vsel %vm914, %v950, 0.0
    %967 = vadd.xlane.f32.xlu0 %v966
    %v968 = vpop.xlane.xlu0 %967
    %v969 = vsel %vm914, %v952, 0.0
    %970 = vadd.xlane.f32.xlu0 %v969
    %v971 = vpop.xlane.xlu0 %970
    %v972 = vsel %vm914, %v954, 0.0
    %973 = vadd.xlane.f32.xlu0 %v972
    %v974 = vpop.xlane.xlu0 %973
    %v975 = vsel %vm914, %v956, 0.0
    %976 = vadd.xlane.f32.xlu0 %v975
    %v977 = vpop.xlane.xlu0 %976
    %v978 = vsel %vm914, %v958, 0.0
    %979 = vadd.xlane.f32.xlu0 %v978
    %v980 = vpop.xlane.xlu0 %979
    %v981 = vsel %vm914, %v960, 0.0
    %982 = vadd.xlane.f32.xlu0 %v981
    %v983 = vpop.xlane.xlu0 %982
    %v984 = vsel %vm914, %v962, 0.0
    %985 = vadd.xlane.f32.xlu0 %v984
    %v986 = vpop.xlane.xlu0 %985
    %v987 = vrcp.pop %v965
    %v988 = vrcp.pop %v968
    %v989 = vrcp.pop %v971
    %v990 = vrcp.pop %v974
    %v991 = vrcp.pop %v977
    %v992 = vrcp.pop %v980
    %v993 = vrcp.pop %v983
    %v994 = vrcp.pop %v986
    %v995 = vmul.f32 %v948, %v987
    %v996 = vmul.f32 %v950, %v988
    %v997 = vmul.f32 %v952, %v989
    %v998 = vmul.f32 %v954, %v990
    %v999 = vmul.f32 %v956, %v991
    %v1000 = vmul.f32 %v958, %v992
    %v1001 = vmul.f32 %v960, %v993
    %v1002 = vmul.f32 %v962, %v994
    %v1003 = vpack.c.bf16 %v995, %v995
    %v1004 = vpack.c.bf16 %v996, %v996
    %v1005 = vpack.c.bf16 %v997, %v997
    %v1006 = vpack.c.bf16 %v998, %v998
    %v1007 = vpack.c.bf16 %v999, %v999
    %v1008 = vpack.c.bf16 %v1000, %v1000
    %v1009 = vpack.c.bf16 %v1001, %v1001
    %v1010 = vpack.c.bf16 %v1002, %v1002
    %v1012 = vsel %vm914, %v1003, 0
    %vm1014 = vcmask 1043456
    %v1016 = vsel %vm1014, %v469, 0
    %1018 = vmatprep.subr.bf16.mxu0 0
    %1019 = vmatpush1.bf16.msra.mxu0 0
    %1020 = vmatprep.subr.bf16.mxu0 0
    %1021 = vmatpush1.bf16.msra.mxu0 0
    %1022 = vmatprep.subr.bf16.mxu0 0
    %1023 = vmatpush1.bf16.msra.mxu0 0
    %1024 = vmatprep.subr.bf16.mxu0 0
    %1025 = vmatpush1.bf16.msra.mxu0 0
    %1026 = vmatprep.subr.bf16.mxu0 0
    %1027 = vmatpush1.bf16.msra.mxu0 0
    %1028 = vmatprep.subr.bf16.mxu0 0
    %1029 = vmatpush1.bf16.msra.mxu0 0
    %1030 = vmatprep.subr.bf16.mxu0 0
    %1031 = vmatpush1.bf16.msra.mxu0 0
    %1032 = vmatprep.subr.bf16.mxu0 0
    %1033 = vmatpush1.bf16.msra.mxu0 %v1016
    %1034 = vmatprep.subr.bf16.mxu0 0
    %1035 = vmatpush2.bf16.msra.mxu0 0
    %1036 = vmatprep.subr.bf16.mxu0 0
    %1037 = vmatpush2.bf16.msra.mxu0 0
    %1038 = vmatprep.subr.bf16.mxu0 0
    %1039 = vmatpush2.bf16.msra.mxu0 0
    %1040 = vmatprep.subr.bf16.mxu0 0
    %1041 = vmatpush2.bf16.msra.mxu0 0
    %1042 = vmatprep.subr.bf16.mxu0 0
    %1043 = vmatpush2.bf16.msra.mxu0 0
    %1044 = vmatprep.subr.bf16.mxu0 0
    %1045 = vmatpush2.bf16.msra.mxu0 0
    %1046 = vmatprep.subr.bf16.mxu0 0
    %1047 = vmatpush2.bf16.msra.mxu0 0
    %1048 = vmatprep.subr.bf16.mxu0 0
    %1049 = vmatpush2.bf16.msra.mxu0 0
    %1050 = vmatprep.mubr.bf16.mxu0 0
    %1051 = vmatmul.mubr.bf16.gmra.mxu0 %v1012
    %v1052 = vpop.f32.mrf.mxu0
    %v1053 = vadd.f32 0.0, %v1052
    %v1054 = vpop.f32.mrf.mxu0
    %v1055 = vpop.f32.mrf.mxu0
    %v1056 = vpop.f32.mrf.mxu0
    %1057 = vdwg.mxu0
    %v1059 = vsel %vm914, %v1004, 0
    %v1062 = vsel %vm1014, %v470, 0
    %1064 = vmatprep.subr.bf16.mxu0 0
    %1065 = vmatpush1.bf16.msra.mxu0 0
    %1066 = vmatprep.subr.bf16.mxu0 0
    %1067 = vmatpush1.bf16.msra.mxu0 0
    %1068 = vmatprep.subr.bf16.mxu0 0
    %1069 = vmatpush1.bf16.msra.mxu0 0
    %1070 = vmatprep.subr.bf16.mxu0 0
    %1071 = vmatpush1.bf16.msra.mxu0 0
    %1072 = vmatprep.subr.bf16.mxu0 0
    %1073 = vmatpush1.bf16.msra.mxu0 0
    %1074 = vmatprep.subr.bf16.mxu0 0
    %1075 = vmatpush1.bf16.msra.mxu0 0
    %1076 = vmatprep.subr.bf16.mxu0 0
    %1077 = vmatpush1.bf16.msra.mxu0 0
    %1078 = vmatprep.subr.bf16.mxu0 0
    %1079 = vmatpush1.bf16.msra.mxu0 %v1062
    %1080 = vmatprep.subr.bf16.mxu0 0
    %1081 = vmatpush2.bf16.msra.mxu0 0
    %1082 = vmatprep.subr.bf16.mxu0 0
    %1083 = vmatpush2.bf16.msra.mxu0 0
    %1084 = vmatprep.subr.bf16.mxu0 0
    %1085 = vmatpush2.bf16.msra.mxu0 0
    %1086 = vmatprep.subr.bf16.mxu0 0
    %1087 = vmatpush2.bf16.msra.mxu0 0
    %1088 = vmatprep.subr.bf16.mxu0 0
    %1089 = vmatpush2.bf16.msra.mxu0 0
    %1090 = vmatprep.subr.bf16.mxu0 0
    %1091 = vmatpush2.bf16.msra.mxu0 0
    %1092 = vmatprep.subr.bf16.mxu0 0
    %1093 = vmatpush2.bf16.msra.mxu0 0
    %1094 = vmatprep.subr.bf16.mxu0 0
    %1095 = vmatpush2.bf16.msra.mxu0 0
    %1096 = vmatprep.mubr.bf16.mxu0 0
    %1097 = vmatmul.mubr.bf16.gmra.mxu0 %v1059
    %v1098 = vpop.f32.mrf.mxu0
    %v1099 = vadd.f32 0.0, %v1098
    %v1100 = vpop.f32.mrf.mxu0
    %v1101 = vpop.f32.mrf.mxu0
    %v1102 = vpop.f32.mrf.mxu0
    %1103 = vdwg.mxu0
    %v1105 = vsel %vm914, %v1005, 0
    %v1108 = vsel %vm1014, %v471, 0
    %1110 = vmatprep.subr.bf16.mxu0 0
    %1111 = vmatpush1.bf16.msra.mxu0 0
    %1112 = vmatprep.subr.bf16.mxu0 0
    %1113 = vmatpush1.bf16.msra.mxu0 0
    %1114 = vmatprep.subr.bf16.mxu0 0
    %1115 = vmatpush1.bf16.msra.mxu0 0
    %1116 = vmatprep.subr.bf16.mxu0 0
    %1117 = vmatpush1.bf16.msra.mxu0 0
    %1118 = vmatprep.subr.bf16.mxu0 0
    %1119 = vmatpush1.bf16.msra.mxu0 0
    %1120 = vmatprep.subr.bf16.mxu0 0
    %1121 = vmatpush1.bf16.msra.mxu0 0
    %1122 = vmatprep.subr.bf16.mxu0 0
    %1123 = vmatpush1.bf16.msra.mxu0 0
    %1124 = vmatprep.subr.bf16.mxu0 0
    %1125 = vmatpush1.bf16.msra.mxu0 %v1108
    %1126 = vmatprep.subr.bf16.mxu0 0
    %1127 = vmatpush2.bf16.msra.mxu0 0
    %1128 = vmatprep.subr.bf16.mxu0 0
    %1129 = vmatpush2.bf16.msra.mxu0 0
    %1130 = vmatprep.subr.bf16.mxu0 0
    %1131 = vmatpush2.bf16.msra.mxu0 0
    %1132 = vmatprep.subr.bf16.mxu0 0
    %1133 = vmatpush2.bf16.msra.mxu0 0
    %1134 = vmatprep.subr.bf16.mxu0 0
    %1135 = vmatpush2.bf16.msra.mxu0 0
    %1136 = vmatprep.subr.bf16.mxu0 0
    %1137 = vmatpush2.bf16.msra.mxu0 0
    %1138 = vmatprep.subr.bf16.mxu0 0
    %1139 = vmatpush2.bf16.msra.mxu0 0
    %1140 = vmatprep.subr.bf16.mxu0 0
    %1141 = vmatpush2.bf16.msra.mxu0 0
    %1142 = vmatprep.mubr.bf16.mxu0 0
    %1143 = vmatmul.mubr.bf16.gmra.mxu0 %v1105
    %v1144 = vpop.f32.mrf.mxu0
    %v1145 = vadd.f32 0.0, %v1144
    %v1146 = vpop.f32.mrf.mxu0
    %v1147 = vpop.f32.mrf.mxu0
    %v1148 = vpop.f32.mrf.mxu0
    %1149 = vdwg.mxu0
    %v1151 = vsel %vm914, %v1006, 0
    %v1154 = vsel %vm1014, %v472, 0
    %1156 = vmatprep.subr.bf16.mxu0 0
    %1157 = vmatpush1.bf16.msra.mxu0 0
    %1158 = vmatprep.subr.bf16.mxu0 0
    %1159 = vmatpush1.bf16.msra.mxu0 0
    %1160 = vmatprep.subr.bf16.mxu0 0
    %1161 = vmatpush1.bf16.msra.mxu0 0
    %1162 = vmatprep.subr.bf16.mxu0 0
    %1163 = vmatpush1.bf16.msra.mxu0 0
    %1164 = vmatprep.subr.bf16.mxu0 0
    %1165 = vmatpush1.bf16.msra.mxu0 0
    %1166 = vmatprep.subr.bf16.mxu0 0
    %1167 = vmatpush1.bf16.msra.mxu0 0
    %1168 = vmatprep.subr.bf16.mxu0 0
    %1169 = vmatpush1.bf16.msra.mxu0 0
    %1170 = vmatprep.subr.bf16.mxu0 0
    %1171 = vmatpush1.bf16.msra.mxu0 %v1154
    %1172 = vmatprep.subr.bf16.mxu0 0
    %1173 = vmatpush2.bf16.msra.mxu0 0
    %1174 = vmatprep.subr.bf16.mxu0 0
    %1175 = vmatpush2.bf16.msra.mxu0 0
    %1176 = vmatprep.subr.bf16.mxu0 0
    %1177 = vmatpush2.bf16.msra.mxu0 0
    %1178 = vmatprep.subr.bf16.mxu0 0
    %1179 = vmatpush2.bf16.msra.mxu0 0
    %1180 = vmatprep.subr.bf16.mxu0 0
    %1181 = vmatpush2.bf16.msra.mxu0 0
    %1182 = vmatprep.subr.bf16.mxu0 0
    %1183 = vmatpush2.bf16.msra.mxu0 0
    %1184 = vmatprep.subr.bf16.mxu0 0
    %1185 = vmatpush2.bf16.msra.mxu0 0
    %1186 = vmatprep.subr.bf16.mxu0 0
    %1187 = vmatpush2.bf16.msra.mxu0 0
    %1188 = vmatprep.mubr.bf16.mxu0 0
    %1189 = vmatmul.mubr.bf16.gmra.mxu0 %v1151
    %v1190 = vpop.f32.mrf.mxu0
    %v1191 = vadd.f32 0.0, %v1190
    %v1192 = vpop.f32.mrf.mxu0
    %v1193 = vpop.f32.mrf.mxu0
    %v1194 = vpop.f32.mrf.mxu0
    %1195 = vdwg.mxu0
    %v1197 = vsel %vm914, %v1007, 0
    %v1200 = vsel %vm1014, %v473, 0
    %1202 = vmatprep.subr.bf16.mxu0 0
    %1203 = vmatpush1.bf16.msra.mxu0 0
    %1204 = vmatprep.subr.bf16.mxu0 0
    %1205 = vmatpush1.bf16.msra.mxu0 0
    %1206 = vmatprep.subr.bf16.mxu0 0
    %1207 = vmatpush1.bf16.msra.mxu0 0
    %1208 = vmatprep.subr.bf16.mxu0 0
    %1209 = vmatpush1.bf16.msra.mxu0 0
    %1210 = vmatprep.subr.bf16.mxu0 0
    %1211 = vmatpush1.bf16.msra.mxu0 0
    %1212 = vmatprep.subr.bf16.mxu0 0
    %1213 = vmatpush1.bf16.msra.mxu0 0
    %1214 = vmatprep.subr.bf16.mxu0 0
    %1215 = vmatpush1.bf16.msra.mxu0 0
    %1216 = vmatprep.subr.bf16.mxu0 0
    %1217 = vmatpush1.bf16.msra.mxu0 %v1200
    %1218 = vmatprep.subr.bf16.mxu0 0
    %1219 = vmatpush2.bf16.msra.mxu0 0
    %1220 = vmatprep.subr.bf16.mxu0 0
    %1221 = vmatpush2.bf16.msra.mxu0 0
    %1222 = vmatprep.subr.bf16.mxu0 0
    %1223 = vmatpush2.bf16.msra.mxu0 0
    %1224 = vmatprep.subr.bf16.mxu0 0
    %1225 = vmatpush2.bf16.msra.mxu0 0
    %1226 = vmatprep.subr.bf16.mxu0 0
    %1227 = vmatpush2.bf16.msra.mxu0 0
    %1228 = vmatprep.subr.bf16.mxu0 0
    %1229 = vmatpush2.bf16.msra.mxu0 0
    %1230 = vmatprep.subr.bf16.mxu0 0
    %1231 = vmatpush2.bf16.msra.mxu0 0
    %1232 = vmatprep.subr.bf16.mxu0 0
    %1233 = vmatpush2.bf16.msra.mxu0 0
    %1234 = vmatprep.mubr.bf16.mxu0 0
    %1235 = vmatmul.mubr.bf16.gmra.mxu0 %v1197
    %v1236 = vpop.f32.mrf.mxu0
    %v1237 = vadd.f32 0.0, %v1236
    %v1238 = vpop.f32.mrf.mxu0
    %v1239 = vpop.f32.mrf.mxu0
    %v1240 = vpop.f32.mrf.mxu0
    %1241 = vdwg.mxu0
    %v1243 = vsel %vm914, %v1008, 0
    %v1246 = vsel %vm1014, %v474, 0
    %1248 = vmatprep.subr.bf16.mxu0 0
    %1249 = vmatpush1.bf16.msra.mxu0 0
    %1250 = vmatprep.subr.bf16.mxu0 0
    %1251 = vmatpush1.bf16.msra.mxu0 0
    %1252 = vmatprep.subr.bf16.mxu0 0
    %1253 = vmatpush1.bf16.msra.mxu0 0
    %1254 = vmatprep.subr.bf16.mxu0 0
    %1255 = vmatpush1.bf16.msra.mxu0 0
    %1256 = vmatprep.subr.bf16.mxu0 0
    %1257 = vmatpush1.bf16.msra.mxu0 0
    %1258 = vmatprep.subr.bf16.mxu0 0
    %1259 = vmatpush1.bf16.msra.mxu0 0
    %1260 = vmatprep.subr.bf16.mxu0 0
    %1261 = vmatpush1.bf16.msra.mxu0 0
    %1262 = vmatprep.subr.bf16.mxu0 0
    %1263 = vmatpush1.bf16.msra.mxu0 %v1246
    %1264 = vmatprep.subr.bf16.mxu0 0
    %1265 = vmatpush2.bf16.msra.mxu0 0
    %1266 = vmatprep.subr.bf16.mxu0 0
    %1267 = vmatpush2.bf16.msra.mxu0 0
    %1268 = vmatprep.subr.bf16.mxu0 0
    %1269 = vmatpush2.bf16.msra.mxu0 0
    %1270 = vmatprep.subr.bf16.mxu0 0
    %1271 = vmatpush2.bf16.msra.mxu0 0
    %1272 = vmatprep.subr.bf16.mxu0 0
    %1273 = vmatpush2.bf16.msra.mxu0 0
    %1274 = vmatprep.subr.bf16.mxu0 0
    %1275 = vmatpush2.bf16.msra.mxu0 0
    %1276 = vmatprep.subr.bf16.mxu0 0
    %1277 = vmatpush2.bf16.msra.mxu0 0
    %1278 = vmatprep.subr.bf16.mxu0 0
    %1279 = vmatpush2.bf16.msra.mxu0 0
    %1280 = vmatprep.mubr.bf16.mxu0 0
    %1281 = vmatmul.mubr.bf16.gmra.mxu0 %v1243
    %v1282 = vpop.f32.mrf.mxu0
    %v1283 = vadd.f32 0.0, %v1282
    %v1284 = vpop.f32.mrf.mxu0
    %v1285 = vpop.f32.mrf.mxu0
    %v1286 = vpop.f32.mrf.mxu0
    %1287 = vdwg.mxu0
    %v1289 = vsel %vm914, %v1009, 0
    %v1292 = vsel %vm1014, %v475, 0
    %1294 = vmatprep.subr.bf16.mxu0 0
    %1295 = vmatpush1.bf16.msra.mxu0 0
    %1296 = vmatprep.subr.bf16.mxu0 0
    %1297 = vmatpush1.bf16.msra.mxu0 0
    %1298 = vmatprep.subr.bf16.mxu0 0
    %1299 = vmatpush1.bf16.msra.mxu0 0
    %1300 = vmatprep.subr.bf16.mxu0 0
    %1301 = vmatpush1.bf16.msra.mxu0 0
    %1302 = vmatprep.subr.bf16.mxu0 0
    %1303 = vmatpush1.bf16.msra.mxu0 0
    %1304 = vmatprep.subr.bf16.mxu0 0
    %1305 = vmatpush1.bf16.msra.mxu0 0
    %1306 = vmatprep.subr.bf16.mxu0 0
    %1307 = vmatpush1.bf16.msra.mxu0 0
    %1308 = vmatprep.subr.bf16.mxu0 0
    %1309 = vmatpush1.bf16.msra.mxu0 %v1292
    %1310 = vmatprep.subr.bf16.mxu0 0
    %1311 = vmatpush2.bf16.msra.mxu0 0
    %1312 = vmatprep.subr.bf16.mxu0 0
    %1313 = vmatpush2.bf16.msra.mxu0 0
    %1314 = vmatprep.subr.bf16.mxu0 0
    %1315 = vmatpush2.bf16.msra.mxu0 0
    %1316 = vmatprep.subr.bf16.mxu0 0
    %1317 = vmatpush2.bf16.msra.mxu0 0
    %1318 = vmatprep.subr.bf16.mxu0 0
    %1319 = vmatpush2.bf16.msra.mxu0 0
    %1320 = vmatprep.subr.bf16.mxu0 0
    %1321 = vmatpush2.bf16.msra.mxu0 0
    %1322 = vmatprep.subr.bf16.mxu0 0
    %1323 = vmatpush2.bf16.msra.mxu0 0
    %1324 = vmatprep.subr.bf16.mxu0 0
    %1325 = vmatpush2.bf16.msra.mxu0 0
    %1326 = vmatprep.mubr.bf16.mxu0 0
    %1327 = vmatmul.mubr.bf16.gmra.mxu0 %v1289
    %v1328 = vpop.f32.mrf.mxu0
    %v1329 = vadd.f32 0.0, %v1328
    %v1330 = vpop.f32.mrf.mxu0
    %v1331 = vpop.f32.mrf.mxu0
    %v1332 = vpop.f32.mrf.mxu0
    %1333 = vdwg.mxu0
    %v1335 = vsel %vm914, %v1010, 0
    %v1338 = vsel %vm1014, %v476, 0
    %1340 = vmatprep.subr.bf16.mxu0 0
    %1341 = vmatpush1.bf16.msra.mxu0 0
    %1342 = vmatprep.subr.bf16.mxu0 0
    %1343 = vmatpush1.bf16.msra.mxu0 0
    %1344 = vmatprep.subr.bf16.mxu0 0
    %1345 = vmatpush1.bf16.msra.mxu0 0
    %1346 = vmatprep.subr.bf16.mxu0 0
    %1347 = vmatpush1.bf16.msra.mxu0 0
    %1348 = vmatprep.subr.bf16.mxu0 0
    %1349 = vmatpush1.bf16.msra.mxu0 0
    %1350 = vmatprep.subr.bf16.mxu0 0
    %1351 = vmatpush1.bf16.msra.mxu0 0
    %1352 = vmatprep.subr.bf16.mxu0 0
    %1353 = vmatpush1.bf16.msra.mxu0 0
    %1354 = vmatprep.subr.bf16.mxu0 0
    %1355 = vmatpush1.bf16.msra.mxu0 %v1338
    %1356 = vmatprep.subr.bf16.mxu0 0
    %1357 = vmatpush2.bf16.msra.mxu0 0
    %1358 = vmatprep.subr.bf16.mxu0 0
    %1359 = vmatpush2.bf16.msra.mxu0 0
    %1360 = vmatprep.subr.bf16.mxu0 0
    %1361 = vmatpush2.bf16.msra.mxu0 0
    %1362 = vmatprep.subr.bf16.mxu0 0
    %1363 = vmatpush2.bf16.msra.mxu0 0
    %1364 = vmatprep.subr.bf16.mxu0 0
    %1365 = vmatpush2.bf16.msra.mxu0 0
    %1366 = vmatprep.subr.bf16.mxu0 0
    %1367 = vmatpush2.bf16.msra.mxu0 0
    %1368 = vmatprep.subr.bf16.mxu0 0
    %1369 = vmatpush2.bf16.msra.mxu0 0
    %1370 = vmatprep.subr.bf16.mxu0 0
    %1371 = vmatpush2.bf16.msra.mxu0 0
    %1372 = vmatprep.mubr.bf16.mxu0 0
    %1373 = vmatmul.mubr.bf16.gmra.mxu0 %v1335
    %v1374 = vpop.f32.mrf.mxu0
    %v1375 = vadd.f32 0.0, %v1374
    %v1376 = vpop.f32.mrf.mxu0
    %v1377 = vpop.f32.mrf.mxu0
    %v1378 = vpop.f32.mrf.mxu0
    %1379 = vdwg.mxu0
    %v1380 = vmul.f32 %v1053, %v487
    %v1381 = vmul.f32 %v1099, %v487
    %v1382 = vmul.f32 %v1145, %v487
    %v1383 = vmul.f32 %v1191, %v487
    %v1384 = vmul.f32 %v1237, %v487
    %v1385 = vmul.f32 %v1283, %v487
    %v1386 = vmul.f32 %v1329, %v487
    %v1387 = vmul.f32 %v1375, %v487
    %v1388 = vrot.slane %v1380, 4
    %v1389 = vadd.f32 %v1380, %v1388
    %v1390 = vrot.slane %v1389, 2
    %v1391 = vadd.f32 %v1389, %v1390
    %v1392 = vrot.slane %v1391, 1
    %v1393 = vadd.f32 %v1391, %v1392
    %v1394 = vrot.slane %v1381, 4
    %v1395 = vadd.f32 %v1381, %v1394
    %v1396 = vrot.slane %v1395, 2
    %v1397 = vadd.f32 %v1395, %v1396
    %v1398 = vrot.slane %v1397, 1
    %v1399 = vadd.f32 %v1397, %v1398
    %v1400 = vrot.slane %v1382, 4
    %v1401 = vadd.f32 %v1382, %v1400
    %v1402 = vrot.slane %v1401, 2
    %v1403 = vadd.f32 %v1401, %v1402
    %v1404 = vrot.slane %v1403, 1
    %v1405 = vadd.f32 %v1403, %v1404
    %v1406 = vrot.slane %v1383, 4
    %v1407 = vadd.f32 %v1383, %v1406
    %v1408 = vrot.slane %v1407, 2
    %v1409 = vadd.f32 %v1407, %v1408
    %v1410 = vrot.slane %v1409, 1
    %v1411 = vadd.f32 %v1409, %v1410
    %v1412 = vrot.slane %v1384, 4
    %v1413 = vadd.f32 %v1384, %v1412
    %v1414 = vrot.slane %v1413, 2
    %v1415 = vadd.f32 %v1413, %v1414
    %v1416 = vrot.slane %v1415, 1
    %v1417 = vadd.f32 %v1415, %v1416
    %v1418 = vrot.slane %v1385, 4
    %v1419 = vadd.f32 %v1385, %v1418
    %v1420 = vrot.slane %v1419, 2
    %v1421 = vadd.f32 %v1419, %v1420
    %v1422 = vrot.slane %v1421, 1
    %v1423 = vadd.f32 %v1421, %v1422
    %v1424 = vrot.slane %v1386, 4
    %v1425 = vadd.f32 %v1386, %v1424
    %v1426 = vrot.slane %v1425, 2
    %v1427 = vadd.f32 %v1425, %v1426
    %v1428 = vrot.slane %v1427, 1
    %v1429 = vadd.f32 %v1427, %v1428
    %v1430 = vrot.slane %v1387, 4
    %v1431 = vadd.f32 %v1387, %v1430
    %v1432 = vrot.slane %v1431, 2
    %v1433 = vadd.f32 %v1431, %v1432
    %v1434 = vrot.slane %v1433, 1
    %v1435 = vadd.f32 %v1433, %v1434
    %v1436 = vpack.c.bf16 %v1393, %v1393
    %v1437 = vpack.c.bf16 %v1399, %v1399
    %v1438 = vpack.c.bf16 %v1405, %v1405
    %v1439 = vpack.c.bf16 %v1411, %v1411
    %v1440 = vpack.c.bf16 %v1417, %v1417
    %v1441 = vpack.c.bf16 %v1423, %v1423
    %v1442 = vpack.c.bf16 %v1429, %v1429
    %v1443 = vpack.c.bf16 %v1435, %v1435
    %v1444 = vld [vmem:[#allocation8] sm:$0xf]
    %v1445 = vld [vmem:[#allocation8 + $0x4] sm:$0xf]
    %v1446 = vld [vmem:[#allocation8 + $0x8] sm:$0xf]
    %v1447 = vld [vmem:[#allocation8 + $0xc] sm:$0xf]
    %v1448 = vld [vmem:[#allocation8 + $0x10] sm:$0xf]
    %v1449 = vld [vmem:[#allocation8 + $0x14] sm:$0xf]
    %v1450 = vld [vmem:[#allocation8 + $0x18] sm:$0xf]
    %v1451 = vld [vmem:[#allocation8 + $0x1c] sm:$0xf]
    %v1452 = vld [vmem:[#allocation8 + $0x20] sm:$0xf]
    %v1453 = vld [vmem:[#allocation8 + $0x24] sm:$0xf]
    %v1454 = vld [vmem:[#allocation8 + $0x28] sm:$0xf]
    %v1455 = vld [vmem:[#allocation8 + $0x2c] sm:$0xf]
    %v1456 = vld [vmem:[#allocation8 + $0x30] sm:$0xf]
    %v1457 = vld [vmem:[#allocation8 + $0x34] sm:$0xf]
    %v1458 = vld [vmem:[#allocation8 + $0x38] sm:$0xf]
    %v1459 = vld [vmem:[#allocation8 + $0x3c] sm:$0xf]
    %v1460 = vld [vmem:[%s4] sm:$0x1]
    %v1462 = vlaneseq
    %v1463 = vshrl.u32 %v1462, 7
    %v1464 = vsub.s32 0, %v1463
    %v1465 = vrot.slane %v1460, %v1464
    %v1475 = vunpack.c.l.b16 %v1436
    %v1476 = vunpack.c.l.b16 %v1437
    %v1477 = vunpack.c.l.b16 %v1438
    %v1478 = vunpack.c.l.b16 %v1439
    %v1479 = vunpack.c.l.b16 %v1440
    %v1480 = vunpack.c.l.b16 %v1441
    %v1481 = vunpack.c.l.b16 %v1442
    %v1482 = vunpack.c.l.b16 %v1443
    %v1483 = vsel %vm134, %v1476, %v1475
    %v1484 = vsel %vm137, %v1477, %v1483
    %v1485 = vsel %vm140, %v1478, %v1484
    %v1486 = vsel %vm143, %v1479, %v1485
    %v1487 = vsel %vm146, %v1480, %v1486
    %v1488 = vsel %vm149, %v1481, %v1487
    %v1489 = vsel %vm152, %v1482, %v1488
    %v1490 = vpack.c.b16 %v1489, %v1489
    %v1508 = vunpack.c.l.b16 %v1444
    %v1509 = vunpack.c.l.b16 %v1445
    %v1510 = vunpack.c.l.b16 %v1446
    %v1511 = vunpack.c.l.b16 %v1447
    %v1512 = vunpack.c.l.b16 %v1448
    %v1513 = vunpack.c.l.b16 %v1449
    %v1514 = vunpack.c.l.b16 %v1450
    %v1515 = vunpack.c.l.b16 %v1451
    %v1516 = vunpack.c.l.b16 %v1452
    %v1517 = vunpack.c.l.b16 %v1453
    %v1518 = vunpack.c.l.b16 %v1454
    %v1519 = vunpack.c.l.b16 %v1455
    %v1520 = vunpack.c.l.b16 %v1456
    %v1521 = vunpack.c.l.b16 %v1457
    %v1522 = vunpack.c.l.b16 %v1458
    %v1523 = vunpack.c.l.b16 %v1459
    %v1524 = vpack.c.b16 %v1509, %v1508
    %v1525 = vpack.c.b16 %v1511, %v1510
    %v1526 = vpack.c.b16 %v1513, %v1512
    %v1527 = vpack.c.b16 %v1515, %v1514
    %v1528 = vpack.c.b16 %v1517, %v1516
    %v1529 = vpack.c.b16 %v1519, %v1518
    %v1530 = vpack.c.b16 %v1521, %v1520
    %v1531 = vpack.c.b16 %v1523, %v1522
    %1540 = vmatprep.subr.bf16.mxu0 0
    %1541 = vmatpush1.bf16.msra.mxu0 %v1531
    %1542 = vmatprep.subr.bf16.mxu0 0
    %1543 = vmatpush1.bf16.msra.mxu0 %v1530
    %1544 = vmatprep.subr.bf16.mxu0 0
    %1545 = vmatpush1.bf16.msra.mxu0 %v1529
    %1546 = vmatprep.subr.bf16.mxu0 0
    %1547 = vmatpush1.bf16.msra.mxu0 %v1528
    %1548 = vmatprep.subr.bf16.mxu0 0
    %1549 = vmatpush1.bf16.msra.mxu0 %v1527
    %1550 = vmatprep.subr.bf16.mxu0 0
    %1551 = vmatpush1.bf16.msra.mxu0 %v1526
    %1552 = vmatprep.subr.bf16.mxu0 0
    %1553 = vmatpush1.bf16.msra.mxu0 %v1525
    %1554 = vmatprep.subr.bf16.mxu0 0
    %1555 = vmatpush1.bf16.msra.mxu0 %v1524
    %1556 = vmatprep.subr.bf16.mxu0 0
    %1557 = vmatpush2.bf16.msra.mxu0 0
    %1558 = vmatprep.subr.bf16.mxu0 0
    %1559 = vmatpush2.bf16.msra.mxu0 0
    %1560 = vmatprep.subr.bf16.mxu0 0
    %1561 = vmatpush2.bf16.msra.mxu0 0
    %1562 = vmatprep.subr.bf16.mxu0 0
    %1563 = vmatpush2.bf16.msra.mxu0 0
    %1564 = vmatprep.subr.bf16.mxu0 0
    %1565 = vmatpush2.bf16.msra.mxu0 0
    %1566 = vmatprep.subr.bf16.mxu0 0
    %1567 = vmatpush2.bf16.msra.mxu0 0
    %1568 = vmatprep.subr.bf16.mxu0 0
    %1569 = vmatpush2.bf16.msra.mxu0 0
    %1570 = vmatprep.subr.bf16.mxu0 0
    %1571 = vmatpush2.bf16.msra.mxu0 0
    %1572 = vmatprep.mubr.bf16.mxu0 0
    %1573 = vmatmul.mubr.bf16.gmra.mxu0 %v1490
    %v1574 = vpop.f32.mrf.mxu0
    %v1575 = vadd.f32 %v1465, %v1574
    %v1576 = vpop.f32.mrf.mxu0
    %v1577 = vpop.f32.mrf.mxu0
    %v1578 = vpop.f32.mrf.mxu0
    %1579 = vdwg.mxu0
    %1580 = vst [vmem:[#allocation10] sm:$0xff] %v1575
    // Predicated region
    $region38: #{tpu_custom_call.1} parent=1 // pred_check
      _
    $region39: #{tpu_custom_call.1} parent=1 // pred_check_branch
      %1582 = sbr.rel (0) target = $region41
    $region40: #{tpu_custom_call.1} parent=1 // pred_region
      %s1584 = ssub.s32 128, 128
      %1585 = vsyncadd [#allocation4], %s1584
      %s1587 = sshll.u32 [#allocation10], 4
      %s1588 = int_to_ptr.vmem [resolvable:$true] %s1587
      %1590 = dma.vmem_to_hbm [thread:$0]  %s1588, 128, %s5, [#allocation4]
    $region41: #{tpu_custom_call.1} parent=1 // pred_fallthru
      _
    // Predicated region
    $region42: #{tpu_custom_call.1} parent=1 // pred_check
      _
    $region43: #{tpu_custom_call.1} parent=1 // pred_check_branch
      %1592 = sbr.rel (0) target = $region45
    $region44: #{tpu_custom_call.1} parent=1 // pred_region
      %1593 = dma.done [#allocation4], 128
    $region45: #{tpu_custom_call.1} parent=1 // pred_fallthru
      _
    %1594 = vsyncpa [#allocation3], 1
    %1595 = vsyncpa [#allocation6], 1
    %1596 = vsyncpa [#allocation9], 1
    %1597 = vsyncpa [#allocation4], 1

</llo_original>
